<compile_context>
chip_gen: v7x
topology: tpu7x:2x2x1
jax: 0.10.0
libtpu: 0.0.40
codegen_flags: <defaults>
</compile_context>

<pallas_src>
import functools

import jax
import jax.numpy as jnp
from jax.experimental import pallas as pl
from jax.experimental.pallas import tpu as pltpu


def _trunc(x):
    return jnp.where(x < 0.0, jnp.ceil(x), jnp.floor(x))


def _fmod1(x):
    # torch.fmod(x, 1.0): C-style remainder, result keeps the sign of x.
    return x - _trunc(x)


def _track_pos_kernel(xproj_ref, dec_ref, wih_ref, whh_ref, b_ref,
                      whead_ref, bhead_ref, out_ref, *, hidden):
    Hp = hidden
    M = xproj_ref.shape[0]
    B = dec_ref.shape[0]
    HW = out_ref.shape[0]

    # Hoist all weight loads out of the (unrolled) loops.
    wih = wih_ref[...]          # (2, 4*Hp)
    whh = whh_ref[...]          # (Hp, 4*Hp)
    bias = b_ref[...]           # (1, 4*Hp)
    whead = whead_ref[...]      # (Hp, 4)  = [w_mot.T | w_dir.T] (rows >= H zero)
    bhead = bhead_ref[...]      # (1, 4)   = [b_mot | b_dir]

    def gates_to_state(gates, h, c):
        # PyTorch gate order i, f, g, o; each slice is a full 128-lane block.
        i = jax.nn.sigmoid(gates[:, 0:Hp])
        f = jax.nn.sigmoid(gates[:, Hp:2 * Hp])
        g = jnp.tanh(gates[:, 2 * Hp:3 * Hp])
        o = jax.nn.sigmoid(gates[:, 3 * Hp:4 * Hp])
        c_new = f * c + i * g
        h_new = o * jnp.tanh(c_new)
        return h_new, c_new

    h = jnp.zeros((B, Hp), jnp.float32)
    c = jnp.zeros((B, Hp), jnp.float32)

    # ---- encoder: input projection is precomputed; only the recurrent matmul
    #      + activations remain on the serial path.  Fully unrolled. ----
    for t in range(M):
        gates = xproj_ref[t] + jnp.dot(h, whh, preferred_element_type=jnp.float32)
        h, c = gates_to_state(gates, h, c)

    # ---- autoregressive decoder: fully unrolled. ----
    cur = dec_ref[...]                                        # (B, 2)
    outs = []
    for _ in range(HW):
        # input_size == 2 -> expand the tiny contraction as two broadcasts
        # (avoids a degenerate (B,2)@(2,4Hp) MXU op).
        xg = (cur[:, 0:1] * wih[0:1, :]
              + cur[:, 1:2] * wih[1:2, :]
              + bias)
        gates = xg + jnp.dot(h, whh, preferred_element_type=jnp.float32)
        h, c = gates_to_state(gates, h, c)

        # Fused mot/dir heads: one (B,Hp)@(Hp,4) MXU dot instead of 4 XLU
        # cross-lane reductions.
        head = jnp.dot(h, whead, preferred_element_type=jnp.float32) + bhead  # (B,4)
        motion = head[:, 0:2] * head[:, 2:4]                  # delta * delta_dir

        yaw_wo = cur[:, 0:1] + motion[:, 0:1]
        pitch_wo = cur[:, 1:2] + motion[:, 1:2]

        above = (pitch_wo > 1.0).astype(jnp.float32)
        correct = ((pitch_wo <= 1.0) & (pitch_wo >= 0.0)).astype(jnp.float32)
        below = (pitch_wo < 0.0).astype(jnp.float32)

        pitch = (above * (1.0 - (pitch_wo - 1.0))
                 + correct * pitch_wo
                 + below * (-pitch_wo))
        yaw = _fmod1(above * (yaw_wo - 0.5) + correct * yaw_wo + below * (yaw_wo - 0.5))

        pos = jnp.concatenate([yaw, pitch], axis=-1)          # (B, 2)
        outs.append(pos)
        cur = pos

    # One bulk store instead of HW partial stores.
    out_ref[...] = jnp.stack(outs, axis=0)                    # (HW, B, 2)


def make_params(key, hidden):
    # Deterministic synthetic init mirroring nn.LSTM / nn.Linear default ranges.
    k = float(1.0 / (hidden ** 0.5))
    keys = jax.random.split(key, 8)

    def u(kk, shape):
        return jax.random.uniform(kk, shape, jnp.float32, -k, k)

    return dict(
        w_ih=u(keys[0], (4 * hidden, 2)),
        w_hh=u(keys[1], (4 * hidden, hidden)),
        b_ih=u(keys[2], (4 * hidden,)),
        b_hh=u(keys[3], (4 * hidden,)),
        w_mot=u(keys[4], (2, hidden)),
        b_mot=u(keys[5], (2,)),
        w_dir=u(keys[6], (2, hidden)),
        b_dir=u(keys[7], (2,)),
    )


def track_pos_forward(params, encoder_inputs, decoder_inputs, h_window):
    B = encoder_inputs.shape[0]
    H = params["w_hh"].shape[1]
    # Pad hidden to a multiple of 128 lanes so every gate slice is vreg-aligned.
    Hp = max(128, ((H + 127) // 128) * 128)

    enc_tm = jnp.transpose(encoder_inputs, (1, 0, 2)).astype(jnp.float32)   # (M, B, 2)
    dec0 = decoder_inputs[:, 0, :].astype(jnp.float32)                      # (B, 2)

    wih_t = params["w_ih"].T.astype(jnp.float32)              # (2, 4H)
    whh_t = params["w_hh"].T.astype(jnp.float32)              # (H, 4H)
    b = (params["b_ih"] + params["b_hh"]).astype(jnp.float32) # (4H,)

    def pad_gates(w, rows_out):
        # (rows_in, 4H) -> (rows_out, 4*Hp); each gate's H columns land at the
        # start of its 128-aligned block, everything else is zero.
        rows_in = w.shape[0]
        out = jnp.zeros((rows_out, 4 * Hp), jnp.float32)
        for g in range(4):
            out = out.at[:rows_in, g * Hp:g * Hp + H].set(w[:, g * H:(g + 1) * H])
        return out

    wih_p = pad_gates(wih_t, 2)                               # (2, 4Hp)
    whh_p = pad_gates(whh_t, Hp)                              # (Hp, 4Hp)
    b_p = pad_gates(b[None, :], 1)                            # (1, 4Hp)

    # Fused mot/dir dense head: columns = [d_yaw, d_pitch, dir_yaw, dir_pitch].
    w_head = jnp.zeros((Hp, 4), jnp.float32).at[:H, :].set(
        jnp.concatenate([params["w_mot"].T, params["w_dir"].T], axis=1))
    b_head = jnp.concatenate([params["b_mot"], params["b_dir"]])[None, :]   # (1, 4)

    # Hoisted encoder input projection (+ combined bias) for all M timesteps.
    xproj = jnp.einsum("mbi,ih->mbh", enc_tm, wih_p) + b_p                   # (M, B, 4Hp)

    kernel = functools.partial(_track_pos_kernel, hidden=Hp)
    vmem = pl.BlockSpec(memory_space=pltpu.MemorySpace.VMEM)
    out_tm = pl.pallas_call(
        kernel,
        out_shape=jax.ShapeDtypeStruct((h_window, B, 2), jnp.float32),
        in_specs=[vmem] * 7,
        out_specs=vmem,
    )(xproj, dec0, wih_p, whh_p, b_p, w_head, b_head)

    # TODO(synk): if many independent TRACK_POS instances are run, add a leading
    # "parallel" grid axis over instances to use both v7x TensorCores.
    return jnp.transpose(out_tm, (1, 0, 2))                   # (B, H_WINDOW, 2)


# ---------------- pure-JAX reference (for correctness check) ----------------
def _lstm_step_ref(params, x, h, c):
    H = params["w_hh"].shape[1]
    gates = (x @ params["w_ih"].T + params["b_ih"]
             + h @ params["w_hh"].T + params["b_hh"])
    i = jax.nn.sigmoid(gates[:, 0:H])
    f = jax.nn.sigmoid(gates[:, H:2 * H])
    g = jnp.tanh(gates[:, 2 * H:3 * H])
    o = jax.nn.sigmoid(gates[:, 3 * H:4 * H])
    c = f * c + i * g
    h = o * jnp.tanh(c)
    return h, c


def _to_position_ref(inputs, delta, delta_dir):
    motion = delta * delta_dir
    yaw_wo = inputs[:, :, 0:1] + motion[:, :, 0:1]
    pitch_wo = inputs[:, :, 1:2] + motion[:, :, 1:2]
    above = (pitch_wo > 1.0).astype(jnp.float32)
    correct = ((pitch_wo <= 1.0) & (pitch_wo >= 0.0)).astype(jnp.float32)
    below = (pitch_wo < 0.0).astype(jnp.float32)
    pitch = above * (1.0 - (pitch_wo - 1.0)) + correct * pitch_wo + below * (-pitch_wo)
    yaw = jnp.fmod(above * (yaw_wo - 0.5) + correct * yaw_wo + below * (yaw_wo - 0.5), 1.0)
    return jnp.concatenate([yaw, pitch], axis=-1)


def track_pos_reference(params, encoder_inputs, decoder_inputs, h_window):
    B = encoder_inputs.shape[0]
    H = params["w_hh"].shape[1]
    h = jnp.zeros((B, H), jnp.float32)
    c = jnp.zeros((B, H), jnp.float32)
    for t in range(encoder_inputs.shape[1]):
        h, c = _lstm_step_ref(params, encoder_inputs[:, t, :], h, c)
    cur = decoder_inputs
    outs = []
    for _ in range(h_window):
        h, c = _lstm_step_ref(params, cur[:, 0, :], h, c)
        delta = h @ params["w_mot"].T + params["b_mot"]
        ddir = h @ params["w_dir"].T + params["b_dir"]
        pos = _to_position_ref(cur, delta[:, None, :], ddir[:, None, :])
        outs.append(pos)
        cur = pos
    return jnp.concatenate(outs, axis=1)


if __name__ == "__main__":
    B, M_WINDOW, H_WINDOW, HIDDEN = 2, 8, 4, 32
    key = jax.random.PRNGKey(0)
    pkey, ekey, dkey = jax.random.split(key, 3)

    params = make_params(pkey, HIDDEN)
    encoder_inputs = jax.random.uniform(ekey, (B, M_WINDOW, 2), jnp.float32)
    decoder_inputs = jax.random.uniform(dkey, (B, 1, 2), jnp.float32)

    out = jax.block_until_ready(
        track_pos_forward(params, encoder_inputs, decoder_inputs, H_WINDOW))
    assert out.shape == (B, H_WINDOW, 2)

    ref = track_pos_reference(params, encoder_inputs, decoder_inputs, H_WINDOW)
    assert jnp.allclose(out, ref, atol=1e-3, rtol=1e-3), float(jnp.max(jnp.abs(out - ref)))

    print("KERNEL_OK")
</pallas_src>

<mosaic_0001>
module attributes {stable_mosaic.version = 11 : i64} {
  func.func @_track_pos_kernel(%arg0: memref<8x2x512xf32, #tpu.memory_space<vmem>>, %arg1: memref<2x2xf32, #tpu.memory_space<vmem>>, %arg2: memref<2x512xf32, #tpu.memory_space<vmem>>, %arg3: memref<128x512xf32, #tpu.memory_space<vmem>>, %arg4: memref<1x512xf32, #tpu.memory_space<vmem>>, %arg5: memref<128x4xf32, #tpu.memory_space<vmem>>, %arg6: memref<1x4xf32, #tpu.memory_space<vmem>>, %arg7: memref<4x2x2xf32, #tpu.memory_space<vmem>>) attributes {dimension_semantics = [], scalar_prefetch = 0 : i64, scratch_operands = 0 : i64, tpu.core_type = #tpu.core_type<tc>} {
    %c0 = arith.constant 0 : index
    %c0_0 = arith.constant 0 : index
    %0 = vector.load %arg2[%c0, %c0_0] : memref<2x512xf32, #tpu.memory_space<vmem>>, vector<2x512xf32>
    %c0_1 = arith.constant 0 : index
    %c0_2 = arith.constant 0 : index
    %1 = vector.load %arg3[%c0_1, %c0_2] : memref<128x512xf32, #tpu.memory_space<vmem>>, vector<128x512xf32>
    %c0_3 = arith.constant 0 : index
    %c0_4 = arith.constant 0 : index
    %2 = vector.load %arg4[%c0_3, %c0_4] : memref<1x512xf32, #tpu.memory_space<vmem>>, vector<1x512xf32>
    %c0_5 = arith.constant 0 : index
    %c0_6 = arith.constant 0 : index
    %3 = vector.load %arg5[%c0_5, %c0_6] : memref<128x4xf32, #tpu.memory_space<vmem>>, vector<128x4xf32>
    %c0_7 = arith.constant 0 : index
    %c0_8 = arith.constant 0 : index
    %4 = vector.load %arg6[%c0_7, %c0_8] : memref<1x4xf32, #tpu.memory_space<vmem>>, vector<1x4xf32>
    %cst = arith.constant 0.000000e+00 : f32
    %5 = vector.broadcast %cst : f32 to vector<2x128xf32>
    %cst_9 = arith.constant 0.000000e+00 : f32
    %6 = vector.broadcast %cst_9 : f32 to vector<2x128xf32>
    %c0_10 = arith.constant 0 : index
    %c0_11 = arith.constant 0 : index
    %c0_12 = arith.constant 0 : index
    %7 = vector.load %arg0[%c0_10, %c0_11, %c0_12] : memref<8x2x512xf32, #tpu.memory_space<vmem>>, vector<1x2x512xf32>
    %8 = vector.shape_cast %7 : vector<1x2x512xf32> to vector<2x512xf32>
    %cst_13 = arith.constant dense<0.000000e+00> : vector<2x512xf32>
    %9 = tpu.matmul %5, %1, %cst_13 {dimension_numbers = #tpu.dot_dimension_numbers<[1], [0], [0], [1], [0, 0, 1, 1], [], []>} : vector<2x128xf32>, vector<128x512xf32>, vector<2x512xf32> -> vector<2x512xf32>
    %10 = arith.addf %8, %9 : vector<2x512xf32>
    %11 = vector.extract_strided_slice %10 {offsets = [0, 0], sizes = [2, 128], strides = [1, 1]} : vector<2x512xf32> to vector<2x128xf32>
    %12 = arith.negf %11 : vector<2x128xf32>
    %13 = math.exp %12 : vector<2x128xf32>
    %cst_14 = arith.constant 1.000000e+00 : f32
    %14 = vector.broadcast %cst_14 : f32 to vector<2x128xf32>
    %15 = arith.addf %14, %13 : vector<2x128xf32>
    %16 = arith.divf %14, %15 : vector<2x128xf32>
    %17 = vector.extract_strided_slice %10 {offsets = [0, 128], sizes = [2, 128], strides = [1, 1]} : vector<2x512xf32> to vector<2x128xf32>
    %18 = arith.negf %17 : vector<2x128xf32>
    %19 = math.exp %18 : vector<2x128xf32>
    %cst_15 = arith.constant 1.000000e+00 : f32
    %20 = vector.broadcast %cst_15 : f32 to vector<2x128xf32>
    %21 = arith.addf %20, %19 : vector<2x128xf32>
    %22 = arith.divf %20, %21 : vector<2x128xf32>
    %23 = vector.extract_strided_slice %10 {offsets = [0, 256], sizes = [2, 128], strides = [1, 1]} : vector<2x512xf32> to vector<2x128xf32>
    %24 = math.tanh %23 : vector<2x128xf32>
    %25 = vector.extract_strided_slice %10 {offsets = [0, 384], sizes = [2, 128], strides = [1, 1]} : vector<2x512xf32> to vector<2x128xf32>
    %26 = arith.negf %25 : vector<2x128xf32>
    %27 = math.exp %26 : vector<2x128xf32>
    %cst_16 = arith.constant 1.000000e+00 : f32
    %28 = vector.broadcast %cst_16 : f32 to vector<2x128xf32>
    %29 = arith.addf %28, %27 : vector<2x128xf32>
    %30 = arith.divf %28, %29 : vector<2x128xf32>
    %31 = arith.mulf %22, %6 : vector<2x128xf32>
    %32 = arith.mulf %16, %24 : vector<2x128xf32>
    %33 = arith.addf %31, %32 : vector<2x128xf32>
    %34 = math.tanh %33 : vector<2x128xf32>
    %35 = arith.mulf %30, %34 : vector<2x128xf32>
    %c1 = arith.constant 1 : index
    %c0_17 = arith.constant 0 : index
    %c0_18 = arith.constant 0 : index
    %36 = vector.load %arg0[%c1, %c0_17, %c0_18] : memref<8x2x512xf32, #tpu.memory_space<vmem>>, vector<1x2x512xf32>
    %37 = vector.shape_cast %36 : vector<1x2x512xf32> to vector<2x512xf32>
    %cst_19 = arith.constant dense<0.000000e+00> : vector<2x512xf32>
    %38 = tpu.matmul %35, %1, %cst_19 {dimension_numbers = #tpu.dot_dimension_numbers<[1], [0], [0], [1], [0, 0, 1, 1], [], []>} : vector<2x128xf32>, vector<128x512xf32>, vector<2x512xf32> -> vector<2x512xf32>
    %39 = arith.addf %37, %38 : vector<2x512xf32>
    %40 = vector.extract_strided_slice %39 {offsets = [0, 0], sizes = [2, 128], strides = [1, 1]} : vector<2x512xf32> to vector<2x128xf32>
    %41 = arith.negf %40 : vector<2x128xf32>
    %42 = math.exp %41 : vector<2x128xf32>
    %cst_20 = arith.constant 1.000000e+00 : f32
    %43 = vector.broadcast %cst_20 : f32 to vector<2x128xf32>
    %44 = arith.addf %43, %42 : vector<2x128xf32>
    %45 = arith.divf %43, %44 : vector<2x128xf32>
    %46 = vector.extract_strided_slice %39 {offsets = [0, 128], sizes = [2, 128], strides = [1, 1]} : vector<2x512xf32> to vector<2x128xf32>
    %47 = arith.negf %46 : vector<2x128xf32>
    %48 = math.exp %47 : vector<2x128xf32>
    %cst_21 = arith.constant 1.000000e+00 : f32
    %49 = vector.broadcast %cst_21 : f32 to vector<2x128xf32>
    %50 = arith.addf %49, %48 : vector<2x128xf32>
    %51 = arith.divf %49, %50 : vector<2x128xf32>
    %52 = vector.extract_strided_slice %39 {offsets = [0, 256], sizes = [2, 128], strides = [1, 1]} : vector<2x512xf32> to vector<2x128xf32>
    %53 = math.tanh %52 : vector<2x128xf32>
    %54 = vector.extract_strided_slice %39 {offsets = [0, 384], sizes = [2, 128], strides = [1, 1]} : vector<2x512xf32> to vector<2x128xf32>
    %55 = arith.negf %54 : vector<2x128xf32>
    %56 = math.exp %55 : vector<2x128xf32>
    %cst_22 = arith.constant 1.000000e+00 : f32
    %57 = vector.broadcast %cst_22 : f32 to vector<2x128xf32>
    %58 = arith.addf %57, %56 : vector<2x128xf32>
    %59 = arith.divf %57, %58 : vector<2x128xf32>
    %60 = arith.mulf %51, %33 : vector<2x128xf32>
    %61 = arith.mulf %45, %53 : vector<2x128xf32>
    %62 = arith.addf %60, %61 : vector<2x128xf32>
    %63 = math.tanh %62 : vector<2x128xf32>
    %64 = arith.mulf %59, %63 : vector<2x128xf32>
    %c2 = arith.constant 2 : index
    %c0_23 = arith.constant 0 : index
    %c0_24 = arith.constant 0 : index
    %65 = vector.load %arg0[%c2, %c0_23, %c0_24] : memref<8x2x512xf32, #tpu.memory_space<vmem>>, vector<1x2x512xf32>
    %66 = vector.shape_cast %65 : vector<1x2x512xf32> to vector<2x512xf32>
    %cst_25 = arith.constant dense<0.000000e+00> : vector<2x512xf32>
    %67 = tpu.matmul %64, %1, %cst_25 {dimension_numbers = #tpu.dot_dimension_numbers<[1], [0], [0], [1], [0, 0, 1, 1], [], []>} : vector<2x128xf32>, vector<128x512xf32>, vector<2x512xf32> -> vector<2x512xf32>
    %68 = arith.addf %66, %67 : vector<2x512xf32>
    %69 = vector.extract_strided_slice %68 {offsets = [0, 0], sizes = [2, 128], strides = [1, 1]} : vector<2x512xf32> to vector<2x128xf32>
    %70 = arith.negf %69 : vector<2x128xf32>
    %71 = math.exp %70 : vector<2x128xf32>
    %cst_26 = arith.constant 1.000000e+00 : f32
    %72 = vector.broadcast %cst_26 : f32 to vector<2x128xf32>
    %73 = arith.addf %72, %71 : vector<2x128xf32>
    %74 = arith.divf %72, %73 : vector<2x128xf32>
    %75 = vector.extract_strided_slice %68 {offsets = [0, 128], sizes = [2, 128], strides = [1, 1]} : vector<2x512xf32> to vector<2x128xf32>
    %76 = arith.negf %75 : vector<2x128xf32>
    %77 = math.exp %76 : vector<2x128xf32>
    %cst_27 = arith.constant 1.000000e+00 : f32
    %78 = vector.broadcast %cst_27 : f32 to vector<2x128xf32>
    %79 = arith.addf %78, %77 : vector<2x128xf32>
    %80 = arith.divf %78, %79 : vector<2x128xf32>
    %81 = vector.extract_strided_slice %68 {offsets = [0, 256], sizes = [2, 128], strides = [1, 1]} : vector<2x512xf32> to vector<2x128xf32>
    %82 = math.tanh %81 : vector<2x128xf32>
    %83 = vector.extract_strided_slice %68 {offsets = [0, 384], sizes = [2, 128], strides = [1, 1]} : vector<2x512xf32> to vector<2x128xf32>
    %84 = arith.negf %83 : vector<2x128xf32>
    %85 = math.exp %84 : vector<2x128xf32>
    %cst_28 = arith.constant 1.000000e+00 : f32
    %86 = vector.broadcast %cst_28 : f32 to vector<2x128xf32>
    %87 = arith.addf %86, %85 : vector<2x128xf32>
    %88 = arith.divf %86, %87 : vector<2x128xf32>
    %89 = arith.mulf %80, %62 : vector<2x128xf32>
    %90 = arith.mulf %74, %82 : vector<2x128xf32>
    %91 = arith.addf %89, %90 : vector<2x128xf32>
    %92 = math.tanh %91 : vector<2x128xf32>
    %93 = arith.mulf %88, %92 : vector<2x128xf32>
    %c3 = arith.constant 3 : index
    %c0_29 = arith.constant 0 : index
    %c0_30 = arith.constant 0 : index
    %94 = vector.load %arg0[%c3, %c0_29, %c0_30] : memref<8x2x512xf32, #tpu.memory_space<vmem>>, vector<1x2x512xf32>
    %95 = vector.shape_cast %94 : vector<1x2x512xf32> to vector<2x512xf32>
    %cst_31 = arith.constant dense<0.000000e+00> : vector<2x512xf32>
    %96 = tpu.matmul %93, %1, %cst_31 {dimension_numbers = #tpu.dot_dimension_numbers<[1], [0], [0], [1], [0, 0, 1, 1], [], []>} : vector<2x128xf32>, vector<128x512xf32>, vector<2x512xf32> -> vector<2x512xf32>
    %97 = arith.addf %95, %96 : vector<2x512xf32>
    %98 = vector.extract_strided_slice %97 {offsets = [0, 0], sizes = [2, 128], strides = [1, 1]} : vector<2x512xf32> to vector<2x128xf32>
    %99 = arith.negf %98 : vector<2x128xf32>
    %100 = math.exp %99 : vector<2x128xf32>
    %cst_32 = arith.constant 1.000000e+00 : f32
    %101 = vector.broadcast %cst_32 : f32 to vector<2x128xf32>
    %102 = arith.addf %101, %100 : vector<2x128xf32>
    %103 = arith.divf %101, %102 : vector<2x128xf32>
    %104 = vector.extract_strided_slice %97 {offsets = [0, 128], sizes = [2, 128], strides = [1, 1]} : vector<2x512xf32> to vector<2x128xf32>
    %105 = arith.negf %104 : vector<2x128xf32>
    %106 = math.exp %105 : vector<2x128xf32>
    %cst_33 = arith.constant 1.000000e+00 : f32
    %107 = vector.broadcast %cst_33 : f32 to vector<2x128xf32>
    %108 = arith.addf %107, %106 : vector<2x128xf32>
    %109 = arith.divf %107, %108 : vector<2x128xf32>
    %110 = vector.extract_strided_slice %97 {offsets = [0, 256], sizes = [2, 128], strides = [1, 1]} : vector<2x512xf32> to vector<2x128xf32>
    %111 = math.tanh %110 : vector<2x128xf32>
    %112 = vector.extract_strided_slice %97 {offsets = [0, 384], sizes = [2, 128], strides = [1, 1]} : vector<2x512xf32> to vector<2x128xf32>
    %113 = arith.negf %112 : vector<2x128xf32>
    %114 = math.exp %113 : vector<2x128xf32>
    %cst_34 = arith.constant 1.000000e+00 : f32
    %115 = vector.broadcast %cst_34 : f32 to vector<2x128xf32>
    %116 = arith.addf %115, %114 : vector<2x128xf32>
    %117 = arith.divf %115, %116 : vector<2x128xf32>
    %118 = arith.mulf %109, %91 : vector<2x128xf32>
    %119 = arith.mulf %103, %111 : vector<2x128xf32>
    %120 = arith.addf %118, %119 : vector<2x128xf32>
    %121 = math.tanh %120 : vector<2x128xf32>
    %122 = arith.mulf %117, %121 : vector<2x128xf32>
    %c4 = arith.constant 4 : index
    %c0_35 = arith.constant 0 : index
    %c0_36 = arith.constant 0 : index
    %123 = vector.load %arg0[%c4, %c0_35, %c0_36] : memref<8x2x512xf32, #tpu.memory_space<vmem>>, vector<1x2x512xf32>
    %124 = vector.shape_cast %123 : vector<1x2x512xf32> to vector<2x512xf32>
    %cst_37 = arith.constant dense<0.000000e+00> : vector<2x512xf32>
    %125 = tpu.matmul %122, %1, %cst_37 {dimension_numbers = #tpu.dot_dimension_numbers<[1], [0], [0], [1], [0, 0, 1, 1], [], []>} : vector<2x128xf32>, vector<128x512xf32>, vector<2x512xf32> -> vector<2x512xf32>
    %126 = arith.addf %124, %125 : vector<2x512xf32>
    %127 = vector.extract_strided_slice %126 {offsets = [0, 0], sizes = [2, 128], strides = [1, 1]} : vector<2x512xf32> to vector<2x128xf32>
    %128 = arith.negf %127 : vector<2x128xf32>
    %129 = math.exp %128 : vector<2x128xf32>
    %cst_38 = arith.constant 1.000000e+00 : f32
    %130 = vector.broadcast %cst_38 : f32 to vector<2x128xf32>
    %131 = arith.addf %130, %129 : vector<2x128xf32>
    %132 = arith.divf %130, %131 : vector<2x128xf32>
    %133 = vector.extract_strided_slice %126 {offsets = [0, 128], sizes = [2, 128], strides = [1, 1]} : vector<2x512xf32> to vector<2x128xf32>
    %134 = arith.negf %133 : vector<2x128xf32>
    %135 = math.exp %134 : vector<2x128xf32>
    %cst_39 = arith.constant 1.000000e+00 : f32
    %136 = vector.broadcast %cst_39 : f32 to vector<2x128xf32>
    %137 = arith.addf %136, %135 : vector<2x128xf32>
    %138 = arith.divf %136, %137 : vector<2x128xf32>
    %139 = vector.extract_strided_slice %126 {offsets = [0, 256], sizes = [2, 128], strides = [1, 1]} : vector<2x512xf32> to vector<2x128xf32>
    %140 = math.tanh %139 : vector<2x128xf32>
    %141 = vector.extract_strided_slice %126 {offsets = [0, 384], sizes = [2, 128], strides = [1, 1]} : vector<2x512xf32> to vector<2x128xf32>
    %142 = arith.negf %141 : vector<2x128xf32>
    %143 = math.exp %142 : vector<2x128xf32>
    %cst_40 = arith.constant 1.000000e+00 : f32
    %144 = vector.broadcast %cst_40 : f32 to vector<2x128xf32>
    %145 = arith.addf %144, %143 : vector<2x128xf32>
    %146 = arith.divf %144, %145 : vector<2x128xf32>
    %147 = arith.mulf %138, %120 : vector<2x128xf32>
    %148 = arith.mulf %132, %140 : vector<2x128xf32>
    %149 = arith.addf %147, %148 : vector<2x128xf32>
    %150 = math.tanh %149 : vector<2x128xf32>
    %151 = arith.mulf %146, %150 : vector<2x128xf32>
    %c5 = arith.constant 5 : index
    %c0_41 = arith.constant 0 : index
    %c0_42 = arith.constant 0 : index
    %152 = vector.load %arg0[%c5, %c0_41, %c0_42] : memref<8x2x512xf32, #tpu.memory_space<vmem>>, vector<1x2x512xf32>
    %153 = vector.shape_cast %152 : vector<1x2x512xf32> to vector<2x512xf32>
    %cst_43 = arith.constant dense<0.000000e+00> : vector<2x512xf32>
    %154 = tpu.matmul %151, %1, %cst_43 {dimension_numbers = #tpu.dot_dimension_numbers<[1], [0], [0], [1], [0, 0, 1, 1], [], []>} : vector<2x128xf32>, vector<128x512xf32>, vector<2x512xf32> -> vector<2x512xf32>
    %155 = arith.addf %153, %154 : vector<2x512xf32>
    %156 = vector.extract_strided_slice %155 {offsets = [0, 0], sizes = [2, 128], strides = [1, 1]} : vector<2x512xf32> to vector<2x128xf32>
    %157 = arith.negf %156 : vector<2x128xf32>
    %158 = math.exp %157 : vector<2x128xf32>
    %cst_44 = arith.constant 1.000000e+00 : f32
    %159 = vector.broadcast %cst_44 : f32 to vector<2x128xf32>
    %160 = arith.addf %159, %158 : vector<2x128xf32>
    %161 = arith.divf %159, %160 : vector<2x128xf32>
    %162 = vector.extract_strided_slice %155 {offsets = [0, 128], sizes = [2, 128], strides = [1, 1]} : vector<2x512xf32> to vector<2x128xf32>
    %163 = arith.negf %162 : vector<2x128xf32>
    %164 = math.exp %163 : vector<2x128xf32>
    %cst_45 = arith.constant 1.000000e+00 : f32
    %165 = vector.broadcast %cst_45 : f32 to vector<2x128xf32>
    %166 = arith.addf %165, %164 : vector<2x128xf32>
    %167 = arith.divf %165, %166 : vector<2x128xf32>
    %168 = vector.extract_strided_slice %155 {offsets = [0, 256], sizes = [2, 128], strides = [1, 1]} : vector<2x512xf32> to vector<2x128xf32>
    %169 = math.tanh %168 : vector<2x128xf32>
    %170 = vector.extract_strided_slice %155 {offsets = [0, 384], sizes = [2, 128], strides = [1, 1]} : vector<2x512xf32> to vector<2x128xf32>
    %171 = arith.negf %170 : vector<2x128xf32>
    %172 = math.exp %171 : vector<2x128xf32>
    %cst_46 = arith.constant 1.000000e+00 : f32
    %173 = vector.broadcast %cst_46 : f32 to vector<2x128xf32>
    %174 = arith.addf %173, %172 : vector<2x128xf32>
    %175 = arith.divf %173, %174 : vector<2x128xf32>
    %176 = arith.mulf %167, %149 : vector<2x128xf32>
    %177 = arith.mulf %161, %169 : vector<2x128xf32>
    %178 = arith.addf %176, %177 : vector<2x128xf32>
    %179 = math.tanh %178 : vector<2x128xf32>
    %180 = arith.mulf %175, %179 : vector<2x128xf32>
    %c6 = arith.constant 6 : index
    %c0_47 = arith.constant 0 : index
    %c0_48 = arith.constant 0 : index
    %181 = vector.load %arg0[%c6, %c0_47, %c0_48] : memref<8x2x512xf32, #tpu.memory_space<vmem>>, vector<1x2x512xf32>
    %182 = vector.shape_cast %181 : vector<1x2x512xf32> to vector<2x512xf32>
    %cst_49 = arith.constant dense<0.000000e+00> : vector<2x512xf32>
    %183 = tpu.matmul %180, %1, %cst_49 {dimension_numbers = #tpu.dot_dimension_numbers<[1], [0], [0], [1], [0, 0, 1, 1], [], []>} : vector<2x128xf32>, vector<128x512xf32>, vector<2x512xf32> -> vector<2x512xf32>
    %184 = arith.addf %182, %183 : vector<2x512xf32>
    %185 = vector.extract_strided_slice %184 {offsets = [0, 0], sizes = [2, 128], strides = [1, 1]} : vector<2x512xf32> to vector<2x128xf32>
    %186 = arith.negf %185 : vector<2x128xf32>
    %187 = math.exp %186 : vector<2x128xf32>
    %cst_50 = arith.constant 1.000000e+00 : f32
    %188 = vector.broadcast %cst_50 : f32 to vector<2x128xf32>
    %189 = arith.addf %188, %187 : vector<2x128xf32>
    %190 = arith.divf %188, %189 : vector<2x128xf32>
    %191 = vector.extract_strided_slice %184 {offsets = [0, 128], sizes = [2, 128], strides = [1, 1]} : vector<2x512xf32> to vector<2x128xf32>
    %192 = arith.negf %191 : vector<2x128xf32>
    %193 = math.exp %192 : vector<2x128xf32>
    %cst_51 = arith.constant 1.000000e+00 : f32
    %194 = vector.broadcast %cst_51 : f32 to vector<2x128xf32>
    %195 = arith.addf %194, %193 : vector<2x128xf32>
    %196 = arith.divf %194, %195 : vector<2x128xf32>
    %197 = vector.extract_strided_slice %184 {offsets = [0, 256], sizes = [2, 128], strides = [1, 1]} : vector<2x512xf32> to vector<2x128xf32>
    %198 = math.tanh %197 : vector<2x128xf32>
    %199 = vector.extract_strided_slice %184 {offsets = [0, 384], sizes = [2, 128], strides = [1, 1]} : vector<2x512xf32> to vector<2x128xf32>
    %200 = arith.negf %199 : vector<2x128xf32>
    %201 = math.exp %200 : vector<2x128xf32>
    %cst_52 = arith.constant 1.000000e+00 : f32
    %202 = vector.broadcast %cst_52 : f32 to vector<2x128xf32>
    %203 = arith.addf %202, %201 : vector<2x128xf32>
    %204 = arith.divf %202, %203 : vector<2x128xf32>
    %205 = arith.mulf %196, %178 : vector<2x128xf32>
    %206 = arith.mulf %190, %198 : vector<2x128xf32>
    %207 = arith.addf %205, %206 : vector<2x128xf32>
    %208 = math.tanh %207 : vector<2x128xf32>
    %209 = arith.mulf %204, %208 : vector<2x128xf32>
    %c7 = arith.constant 7 : index
    %c0_53 = arith.constant 0 : index
    %c0_54 = arith.constant 0 : index
    %210 = vector.load %arg0[%c7, %c0_53, %c0_54] : memref<8x2x512xf32, #tpu.memory_space<vmem>>, vector<1x2x512xf32>
    %211 = vector.shape_cast %210 : vector<1x2x512xf32> to vector<2x512xf32>
    %cst_55 = arith.constant dense<0.000000e+00> : vector<2x512xf32>
    %212 = tpu.matmul %209, %1, %cst_55 {dimension_numbers = #tpu.dot_dimension_numbers<[1], [0], [0], [1], [0, 0, 1, 1], [], []>} : vector<2x128xf32>, vector<128x512xf32>, vector<2x512xf32> -> vector<2x512xf32>
    %213 = arith.addf %211, %212 : vector<2x512xf32>
    %214 = vector.extract_strided_slice %213 {offsets = [0, 0], sizes = [2, 128], strides = [1, 1]} : vector<2x512xf32> to vector<2x128xf32>
    %215 = arith.negf %214 : vector<2x128xf32>
    %216 = math.exp %215 : vector<2x128xf32>
    %cst_56 = arith.constant 1.000000e+00 : f32
    %217 = vector.broadcast %cst_56 : f32 to vector<2x128xf32>
    %218 = arith.addf %217, %216 : vector<2x128xf32>
    %219 = arith.divf %217, %218 : vector<2x128xf32>
    %220 = vector.extract_strided_slice %213 {offsets = [0, 128], sizes = [2, 128], strides = [1, 1]} : vector<2x512xf32> to vector<2x128xf32>
    %221 = arith.negf %220 : vector<2x128xf32>
    %222 = math.exp %221 : vector<2x128xf32>
    %cst_57 = arith.constant 1.000000e+00 : f32
    %223 = vector.broadcast %cst_57 : f32 to vector<2x128xf32>
    %224 = arith.addf %223, %222 : vector<2x128xf32>
    %225 = arith.divf %223, %224 : vector<2x128xf32>
    %226 = vector.extract_strided_slice %213 {offsets = [0, 256], sizes = [2, 128], strides = [1, 1]} : vector<2x512xf32> to vector<2x128xf32>
    %227 = math.tanh %226 : vector<2x128xf32>
    %228 = vector.extract_strided_slice %213 {offsets = [0, 384], sizes = [2, 128], strides = [1, 1]} : vector<2x512xf32> to vector<2x128xf32>
    %229 = arith.negf %228 : vector<2x128xf32>
    %230 = math.exp %229 : vector<2x128xf32>
    %cst_58 = arith.constant 1.000000e+00 : f32
    %231 = vector.broadcast %cst_58 : f32 to vector<2x128xf32>
    %232 = arith.addf %231, %230 : vector<2x128xf32>
    %233 = arith.divf %231, %232 : vector<2x128xf32>
    %234 = arith.mulf %225, %207 : vector<2x128xf32>
    %235 = arith.mulf %219, %227 : vector<2x128xf32>
    %236 = arith.addf %234, %235 : vector<2x128xf32>
    %237 = math.tanh %236 : vector<2x128xf32>
    %238 = arith.mulf %233, %237 : vector<2x128xf32>
    %c0_59 = arith.constant 0 : index
    %c0_60 = arith.constant 0 : index
    %239 = vector.load %arg1[%c0_59, %c0_60] : memref<2x2xf32, #tpu.memory_space<vmem>>, vector<2x2xf32>
    %240 = vector.extract_strided_slice %239 {offsets = [0, 0], sizes = [2, 1], strides = [1, 1]} : vector<2x2xf32> to vector<2x1xf32>
    %241 = vector.extract_strided_slice %0 {offsets = [0, 0], sizes = [1, 512], strides = [1, 1]} : vector<2x512xf32> to vector<1x512xf32>
    %242 = vector.broadcast %240 : vector<2x1xf32> to vector<2x512xf32>
    %243 = vector.broadcast %241 : vector<1x512xf32> to vector<2x512xf32>
    %244 = arith.mulf %242, %243 : vector<2x512xf32>
    %245 = vector.extract_strided_slice %239 {offsets = [0, 1], sizes = [2, 1], strides = [1, 1]} : vector<2x2xf32> to vector<2x1xf32>
    %246 = vector.extract_strided_slice %0 {offsets = [1, 0], sizes = [1, 512], strides = [1, 1]} : vector<2x512xf32> to vector<1x512xf32>
    %247 = vector.broadcast %245 : vector<2x1xf32> to vector<2x512xf32>
    %248 = vector.broadcast %246 : vector<1x512xf32> to vector<2x512xf32>
    %249 = arith.mulf %247, %248 : vector<2x512xf32>
    %250 = arith.addf %244, %249 : vector<2x512xf32>
    %251 = vector.broadcast %2 : vector<1x512xf32> to vector<2x512xf32>
    %252 = arith.addf %250, %251 : vector<2x512xf32>
    %cst_61 = arith.constant dense<0.000000e+00> : vector<2x512xf32>
    %253 = tpu.matmul %238, %1, %cst_61 {dimension_numbers = #tpu.dot_dimension_numbers<[1], [0], [0], [1], [0, 0, 1, 1], [], []>} : vector<2x128xf32>, vector<128x512xf32>, vector<2x512xf32> -> vector<2x512xf32>
    %254 = arith.addf %252, %253 : vector<2x512xf32>
    %255 = vector.extract_strided_slice %254 {offsets = [0, 0], sizes = [2, 128], strides = [1, 1]} : vector<2x512xf32> to vector<2x128xf32>
    %256 = arith.negf %255 : vector<2x128xf32>
    %257 = math.exp %256 : vector<2x128xf32>
    %cst_62 = arith.constant 1.000000e+00 : f32
    %258 = vector.broadcast %cst_62 : f32 to vector<2x128xf32>
    %259 = arith.addf %258, %257 : vector<2x128xf32>
    %260 = arith.divf %258, %259 : vector<2x128xf32>
    %261 = vector.extract_strided_slice %254 {offsets = [0, 128], sizes = [2, 128], strides = [1, 1]} : vector<2x512xf32> to vector<2x128xf32>
    %262 = arith.negf %261 : vector<2x128xf32>
    %263 = math.exp %262 : vector<2x128xf32>
    %cst_63 = arith.constant 1.000000e+00 : f32
    %264 = vector.broadcast %cst_63 : f32 to vector<2x128xf32>
    %265 = arith.addf %264, %263 : vector<2x128xf32>
    %266 = arith.divf %264, %265 : vector<2x128xf32>
    %267 = vector.extract_strided_slice %254 {offsets = [0, 256], sizes = [2, 128], strides = [1, 1]} : vector<2x512xf32> to vector<2x128xf32>
    %268 = math.tanh %267 : vector<2x128xf32>
    %269 = vector.extract_strided_slice %254 {offsets = [0, 384], sizes = [2, 128], strides = [1, 1]} : vector<2x512xf32> to vector<2x128xf32>
    %270 = arith.negf %269 : vector<2x128xf32>
    %271 = math.exp %270 : vector<2x128xf32>
    %cst_64 = arith.constant 1.000000e+00 : f32
    %272 = vector.broadcast %cst_64 : f32 to vector<2x128xf32>
    %273 = arith.addf %272, %271 : vector<2x128xf32>
    %274 = arith.divf %272, %273 : vector<2x128xf32>
    %275 = arith.mulf %266, %236 : vector<2x128xf32>
    %276 = arith.mulf %260, %268 : vector<2x128xf32>
    %277 = arith.addf %275, %276 : vector<2x128xf32>
    %278 = math.tanh %277 : vector<2x128xf32>
    %279 = arith.mulf %274, %278 : vector<2x128xf32>
    %cst_65 = arith.constant dense<0.000000e+00> : vector<2x4xf32>
    %280 = tpu.matmul %279, %3, %cst_65 {dimension_numbers = #tpu.dot_dimension_numbers<[1], [0], [0], [1], [0, 0, 1, 1], [], []>} : vector<2x128xf32>, vector<128x4xf32>, vector<2x4xf32> -> vector<2x4xf32>
    %281 = vector.broadcast %4 : vector<1x4xf32> to vector<2x4xf32>
    %282 = arith.addf %280, %281 : vector<2x4xf32>
    %283 = vector.extract_strided_slice %282 {offsets = [0, 0], sizes = [2, 2], strides = [1, 1]} : vector<2x4xf32> to vector<2x2xf32>
    %284 = vector.extract_strided_slice %282 {offsets = [0, 2], sizes = [2, 2], strides = [1, 1]} : vector<2x4xf32> to vector<2x2xf32>
    %285 = arith.mulf %283, %284 : vector<2x2xf32>
    %286 = vector.extract_strided_slice %239 {offsets = [0, 0], sizes = [2, 1], strides = [1, 1]} : vector<2x2xf32> to vector<2x1xf32>
    %287 = vector.extract_strided_slice %285 {offsets = [0, 0], sizes = [2, 1], strides = [1, 1]} : vector<2x2xf32> to vector<2x1xf32>
    %288 = arith.addf %286, %287 : vector<2x1xf32>
    %289 = vector.extract_strided_slice %239 {offsets = [0, 1], sizes = [2, 1], strides = [1, 1]} : vector<2x2xf32> to vector<2x1xf32>
    %290 = vector.extract_strided_slice %285 {offsets = [0, 1], sizes = [2, 1], strides = [1, 1]} : vector<2x2xf32> to vector<2x1xf32>
    %291 = arith.addf %289, %290 : vector<2x1xf32>
    %cst_66 = arith.constant 1.000000e+00 : f32
    %292 = vector.broadcast %cst_66 : f32 to vector<2x1xf32>
    %293 = arith.cmpf ogt, %291, %292 : vector<2x1xf32>
    %294 = arith.extui %293 : vector<2x1xi1> to vector<2x1xi32>
    %295 = arith.sitofp %294 : vector<2x1xi32> to vector<2x1xf32>
    %cst_67 = arith.constant 1.000000e+00 : f32
    %296 = vector.broadcast %cst_67 : f32 to vector<2x1xf32>
    %297 = arith.cmpf ole, %291, %296 : vector<2x1xf32>
    %cst_68 = arith.constant 0.000000e+00 : f32
    %298 = vector.broadcast %cst_68 : f32 to vector<2x1xf32>
    %299 = arith.cmpf oge, %291, %298 : vector<2x1xf32>
    %300 = arith.andi %297, %299 : vector<2x1xi1>
    %301 = arith.extui %300 : vector<2x1xi1> to vector<2x1xi32>
    %302 = arith.sitofp %301 : vector<2x1xi32> to vector<2x1xf32>
    %cst_69 = arith.constant 0.000000e+00 : f32
    %303 = vector.broadcast %cst_69 : f32 to vector<2x1xf32>
    %304 = arith.cmpf olt, %291, %303 : vector<2x1xf32>
    %305 = arith.extui %304 : vector<2x1xi1> to vector<2x1xi32>
    %306 = arith.sitofp %305 : vector<2x1xi32> to vector<2x1xf32>
    %cst_70 = arith.constant 1.000000e+00 : f32
    %307 = vector.broadcast %cst_70 : f32 to vector<2x1xf32>
    %308 = arith.subf %291, %307 : vector<2x1xf32>
    %cst_71 = arith.constant 1.000000e+00 : f32
    %309 = vector.broadcast %cst_71 : f32 to vector<2x1xf32>
    %310 = arith.subf %309, %308 : vector<2x1xf32>
    %311 = arith.mulf %295, %310 : vector<2x1xf32>
    %312 = arith.mulf %302, %291 : vector<2x1xf32>
    %313 = arith.addf %311, %312 : vector<2x1xf32>
    %cst_72 = arith.constant 0.000000e+00 : f32
    %314 = vector.broadcast %cst_72 : f32 to vector<2x1xf32>
    %315 = arith.subf %314, %291 : vector<2x1xf32>
    %316 = arith.mulf %306, %315 : vector<2x1xf32>
    %317 = arith.addf %313, %316 : vector<2x1xf32>
    %cst_73 = arith.constant 5.000000e-01 : f32
    %318 = vector.broadcast %cst_73 : f32 to vector<2x1xf32>
    %319 = arith.subf %288, %318 : vector<2x1xf32>
    %320 = arith.mulf %295, %319 : vector<2x1xf32>
    %321 = arith.mulf %302, %288 : vector<2x1xf32>
    %322 = arith.addf %320, %321 : vector<2x1xf32>
    %cst_74 = arith.constant 5.000000e-01 : f32
    %323 = vector.broadcast %cst_74 : f32 to vector<2x1xf32>
    %324 = arith.subf %288, %323 : vector<2x1xf32>
    %325 = arith.mulf %306, %324 : vector<2x1xf32>
    %326 = arith.addf %322, %325 : vector<2x1xf32>
    %cst_75 = arith.constant 0.000000e+00 : f32
    %327 = vector.broadcast %cst_75 : f32 to vector<2x1xf32>
    %328 = arith.cmpf olt, %326, %327 : vector<2x1xf32>
    %329 = math.ceil %326 : vector<2x1xf32>
    %330 = math.floor %326 : vector<2x1xf32>
    %331 = arith.select %328, %329, %330 : vector<2x1xi1>, vector<2x1xf32>
    %332 = arith.subf %326, %331 : vector<2x1xf32>
    %333 = tpu.concatenate %332, %317 in 1 : vector<2x1xf32>, vector<2x1xf32> -> vector<2x2xf32>
    %334 = vector.extract_strided_slice %333 {offsets = [0, 0], sizes = [2, 1], strides = [1, 1]} : vector<2x2xf32> to vector<2x1xf32>
    %335 = vector.extract_strided_slice %0 {offsets = [0, 0], sizes = [1, 512], strides = [1, 1]} : vector<2x512xf32> to vector<1x512xf32>
    %336 = vector.broadcast %334 : vector<2x1xf32> to vector<2x512xf32>
    %337 = vector.broadcast %335 : vector<1x512xf32> to vector<2x512xf32>
    %338 = arith.mulf %336, %337 : vector<2x512xf32>
    %339 = vector.extract_strided_slice %333 {offsets = [0, 1], sizes = [2, 1], strides = [1, 1]} : vector<2x2xf32> to vector<2x1xf32>
    %340 = vector.extract_strided_slice %0 {offsets = [1, 0], sizes = [1, 512], strides = [1, 1]} : vector<2x512xf32> to vector<1x512xf32>
    %341 = vector.broadcast %339 : vector<2x1xf32> to vector<2x512xf32>
    %342 = vector.broadcast %340 : vector<1x512xf32> to vector<2x512xf32>
    %343 = arith.mulf %341, %342 : vector<2x512xf32>
    %344 = arith.addf %338, %343 : vector<2x512xf32>
    %345 = vector.broadcast %2 : vector<1x512xf32> to vector<2x512xf32>
    %346 = arith.addf %344, %345 : vector<2x512xf32>
    %cst_76 = arith.constant dense<0.000000e+00> : vector<2x512xf32>
    %347 = tpu.matmul %279, %1, %cst_76 {dimension_numbers = #tpu.dot_dimension_numbers<[1], [0], [0], [1], [0, 0, 1, 1], [], []>} : vector<2x128xf32>, vector<128x512xf32>, vector<2x512xf32> -> vector<2x512xf32>
    %348 = arith.addf %346, %347 : vector<2x512xf32>
    %349 = vector.extract_strided_slice %348 {offsets = [0, 0], sizes = [2, 128], strides = [1, 1]} : vector<2x512xf32> to vector<2x128xf32>
    %350 = arith.negf %349 : vector<2x128xf32>
    %351 = math.exp %350 : vector<2x128xf32>
    %cst_77 = arith.constant 1.000000e+00 : f32
    %352 = vector.broadcast %cst_77 : f32 to vector<2x128xf32>
    %353 = arith.addf %352, %351 : vector<2x128xf32>
    %354 = arith.divf %352, %353 : vector<2x128xf32>
    %355 = vector.extract_strided_slice %348 {offsets = [0, 128], sizes = [2, 128], strides = [1, 1]} : vector<2x512xf32> to vector<2x128xf32>
    %356 = arith.negf %355 : vector<2x128xf32>
    %357 = math.exp %356 : vector<2x128xf32>
    %cst_78 = arith.constant 1.000000e+00 : f32
    %358 = vector.broadcast %cst_78 : f32 to vector<2x128xf32>
    %359 = arith.addf %358, %357 : vector<2x128xf32>
    %360 = arith.divf %358, %359 : vector<2x128xf32>
    %361 = vector.extract_strided_slice %348 {offsets = [0, 256], sizes = [2, 128], strides = [1, 1]} : vector<2x512xf32> to vector<2x128xf32>
    %362 = math.tanh %361 : vector<2x128xf32>
    %363 = vector.extract_strided_slice %348 {offsets = [0, 384], sizes = [2, 128], strides = [1, 1]} : vector<2x512xf32> to vector<2x128xf32>
    %364 = arith.negf %363 : vector<2x128xf32>
    %365 = math.exp %364 : vector<2x128xf32>
    %cst_79 = arith.constant 1.000000e+00 : f32
    %366 = vector.broadcast %cst_79 : f32 to vector<2x128xf32>
    %367 = arith.addf %366, %365 : vector<2x128xf32>
    %368 = arith.divf %366, %367 : vector<2x128xf32>
    %369 = arith.mulf %360, %277 : vector<2x128xf32>
    %370 = arith.mulf %354, %362 : vector<2x128xf32>
    %371 = arith.addf %369, %370 : vector<2x128xf32>
    %372 = math.tanh %371 : vector<2x128xf32>
    %373 = arith.mulf %368, %372 : vector<2x128xf32>
    %cst_80 = arith.constant dense<0.000000e+00> : vector<2x4xf32>
    %374 = tpu.matmul %373, %3, %cst_80 {dimension_numbers = #tpu.dot_dimension_numbers<[1], [0], [0], [1], [0, 0, 1, 1], [], []>} : vector<2x128xf32>, vector<128x4xf32>, vector<2x4xf32> -> vector<2x4xf32>
    %375 = vector.broadcast %4 : vector<1x4xf32> to vector<2x4xf32>
    %376 = arith.addf %374, %375 : vector<2x4xf32>
    %377 = vector.extract_strided_slice %376 {offsets = [0, 0], sizes = [2, 2], strides = [1, 1]} : vector<2x4xf32> to vector<2x2xf32>
    %378 = vector.extract_strided_slice %376 {offsets = [0, 2], sizes = [2, 2], strides = [1, 1]} : vector<2x4xf32> to vector<2x2xf32>
    %379 = arith.mulf %377, %378 : vector<2x2xf32>
    %380 = vector.extract_strided_slice %333 {offsets = [0, 0], sizes = [2, 1], strides = [1, 1]} : vector<2x2xf32> to vector<2x1xf32>
    %381 = vector.extract_strided_slice %379 {offsets = [0, 0], sizes = [2, 1], strides = [1, 1]} : vector<2x2xf32> to vector<2x1xf32>
    %382 = arith.addf %380, %381 : vector<2x1xf32>
    %383 = vector.extract_strided_slice %333 {offsets = [0, 1], sizes = [2, 1], strides = [1, 1]} : vector<2x2xf32> to vector<2x1xf32>
    %384 = vector.extract_strided_slice %379 {offsets = [0, 1], sizes = [2, 1], strides = [1, 1]} : vector<2x2xf32> to vector<2x1xf32>
    %385 = arith.addf %383, %384 : vector<2x1xf32>
    %cst_81 = arith.constant 1.000000e+00 : f32
    %386 = vector.broadcast %cst_81 : f32 to vector<2x1xf32>
    %387 = arith.cmpf ogt, %385, %386 : vector<2x1xf32>
    %388 = arith.extui %387 : vector<2x1xi1> to vector<2x1xi32>
    %389 = arith.sitofp %388 : vector<2x1xi32> to vector<2x1xf32>
    %cst_82 = arith.constant 1.000000e+00 : f32
    %390 = vector.broadcast %cst_82 : f32 to vector<2x1xf32>
    %391 = arith.cmpf ole, %385, %390 : vector<2x1xf32>
    %cst_83 = arith.constant 0.000000e+00 : f32
    %392 = vector.broadcast %cst_83 : f32 to vector<2x1xf32>
    %393 = arith.cmpf oge, %385, %392 : vector<2x1xf32>
    %394 = arith.andi %391, %393 : vector<2x1xi1>
    %395 = arith.extui %394 : vector<2x1xi1> to vector<2x1xi32>
    %396 = arith.sitofp %395 : vector<2x1xi32> to vector<2x1xf32>
    %cst_84 = arith.constant 0.000000e+00 : f32
    %397 = vector.broadcast %cst_84 : f32 to vector<2x1xf32>
    %398 = arith.cmpf olt, %385, %397 : vector<2x1xf32>
    %399 = arith.extui %398 : vector<2x1xi1> to vector<2x1xi32>
    %400 = arith.sitofp %399 : vector<2x1xi32> to vector<2x1xf32>
    %cst_85 = arith.constant 1.000000e+00 : f32
    %401 = vector.broadcast %cst_85 : f32 to vector<2x1xf32>
    %402 = arith.subf %385, %401 : vector<2x1xf32>
    %cst_86 = arith.constant 1.000000e+00 : f32
    %403 = vector.broadcast %cst_86 : f32 to vector<2x1xf32>
    %404 = arith.subf %403, %402 : vector<2x1xf32>
    %405 = arith.mulf %389, %404 : vector<2x1xf32>
    %406 = arith.mulf %396, %385 : vector<2x1xf32>
    %407 = arith.addf %405, %406 : vector<2x1xf32>
    %cst_87 = arith.constant 0.000000e+00 : f32
    %408 = vector.broadcast %cst_87 : f32 to vector<2x1xf32>
    %409 = arith.subf %408, %385 : vector<2x1xf32>
    %410 = arith.mulf %400, %409 : vector<2x1xf32>
    %411 = arith.addf %407, %410 : vector<2x1xf32>
    %cst_88 = arith.constant 5.000000e-01 : f32
    %412 = vector.broadcast %cst_88 : f32 to vector<2x1xf32>
    %413 = arith.subf %382, %412 : vector<2x1xf32>
    %414 = arith.mulf %389, %413 : vector<2x1xf32>
    %415 = arith.mulf %396, %382 : vector<2x1xf32>
    %416 = arith.addf %414, %415 : vector<2x1xf32>
    %cst_89 = arith.constant 5.000000e-01 : f32
    %417 = vector.broadcast %cst_89 : f32 to vector<2x1xf32>
    %418 = arith.subf %382, %417 : vector<2x1xf32>
    %419 = arith.mulf %400, %418 : vector<2x1xf32>
    %420 = arith.addf %416, %419 : vector<2x1xf32>
    %cst_90 = arith.constant 0.000000e+00 : f32
    %421 = vector.broadcast %cst_90 : f32 to vector<2x1xf32>
    %422 = arith.cmpf olt, %420, %421 : vector<2x1xf32>
    %423 = math.ceil %420 : vector<2x1xf32>
    %424 = math.floor %420 : vector<2x1xf32>
    %425 = arith.select %422, %423, %424 : vector<2x1xi1>, vector<2x1xf32>
    %426 = arith.subf %420, %425 : vector<2x1xf32>
    %427 = tpu.concatenate %426, %411 in 1 : vector<2x1xf32>, vector<2x1xf32> -> vector<2x2xf32>
    %428 = vector.extract_strided_slice %427 {offsets = [0, 0], sizes = [2, 1], strides = [1, 1]} : vector<2x2xf32> to vector<2x1xf32>
    %429 = vector.extract_strided_slice %0 {offsets = [0, 0], sizes = [1, 512], strides = [1, 1]} : vector<2x512xf32> to vector<1x512xf32>
    %430 = vector.broadcast %428 : vector<2x1xf32> to vector<2x512xf32>
    %431 = vector.broadcast %429 : vector<1x512xf32> to vector<2x512xf32>
    %432 = arith.mulf %430, %431 : vector<2x512xf32>
    %433 = vector.extract_strided_slice %427 {offsets = [0, 1], sizes = [2, 1], strides = [1, 1]} : vector<2x2xf32> to vector<2x1xf32>
    %434 = vector.extract_strided_slice %0 {offsets = [1, 0], sizes = [1, 512], strides = [1, 1]} : vector<2x512xf32> to vector<1x512xf32>
    %435 = vector.broadcast %433 : vector<2x1xf32> to vector<2x512xf32>
    %436 = vector.broadcast %434 : vector<1x512xf32> to vector<2x512xf32>
    %437 = arith.mulf %435, %436 : vector<2x512xf32>
    %438 = arith.addf %432, %437 : vector<2x512xf32>
    %439 = vector.broadcast %2 : vector<1x512xf32> to vector<2x512xf32>
    %440 = arith.addf %438, %439 : vector<2x512xf32>
    %cst_91 = arith.constant dense<0.000000e+00> : vector<2x512xf32>
    %441 = tpu.matmul %373, %1, %cst_91 {dimension_numbers = #tpu.dot_dimension_numbers<[1], [0], [0], [1], [0, 0, 1, 1], [], []>} : vector<2x128xf32>, vector<128x512xf32>, vector<2x512xf32> -> vector<2x512xf32>
    %442 = arith.addf %440, %441 : vector<2x512xf32>
    %443 = vector.extract_strided_slice %442 {offsets = [0, 0], sizes = [2, 128], strides = [1, 1]} : vector<2x512xf32> to vector<2x128xf32>
    %444 = arith.negf %443 : vector<2x128xf32>
    %445 = math.exp %444 : vector<2x128xf32>
    %cst_92 = arith.constant 1.000000e+00 : f32
    %446 = vector.broadcast %cst_92 : f32 to vector<2x128xf32>
    %447 = arith.addf %446, %445 : vector<2x128xf32>
    %448 = arith.divf %446, %447 : vector<2x128xf32>
    %449 = vector.extract_strided_slice %442 {offsets = [0, 128], sizes = [2, 128], strides = [1, 1]} : vector<2x512xf32> to vector<2x128xf32>
    %450 = arith.negf %449 : vector<2x128xf32>
    %451 = math.exp %450 : vector<2x128xf32>
    %cst_93 = arith.constant 1.000000e+00 : f32
    %452 = vector.broadcast %cst_93 : f32 to vector<2x128xf32>
    %453 = arith.addf %452, %451 : vector<2x128xf32>
    %454 = arith.divf %452, %453 : vector<2x128xf32>
    %455 = vector.extract_strided_slice %442 {offsets = [0, 256], sizes = [2, 128], strides = [1, 1]} : vector<2x512xf32> to vector<2x128xf32>
    %456 = math.tanh %455 : vector<2x128xf32>
    %457 = vector.extract_strided_slice %442 {offsets = [0, 384], sizes = [2, 128], strides = [1, 1]} : vector<2x512xf32> to vector<2x128xf32>
    %458 = arith.negf %457 : vector<2x128xf32>
    %459 = math.exp %458 : vector<2x128xf32>
    %cst_94 = arith.constant 1.000000e+00 : f32
    %460 = vector.broadcast %cst_94 : f32 to vector<2x128xf32>
    %461 = arith.addf %460, %459 : vector<2x128xf32>
    %462 = arith.divf %460, %461 : vector<2x128xf32>
    %463 = arith.mulf %454, %371 : vector<2x128xf32>
    %464 = arith.mulf %448, %456 : vector<2x128xf32>
    %465 = arith.addf %463, %464 : vector<2x128xf32>
    %466 = math.tanh %465 : vector<2x128xf32>
    %467 = arith.mulf %462, %466 : vector<2x128xf32>
    %cst_95 = arith.constant dense<0.000000e+00> : vector<2x4xf32>
    %468 = tpu.matmul %467, %3, %cst_95 {dimension_numbers = #tpu.dot_dimension_numbers<[1], [0], [0], [1], [0, 0, 1, 1], [], []>} : vector<2x128xf32>, vector<128x4xf32>, vector<2x4xf32> -> vector<2x4xf32>
    %469 = vector.broadcast %4 : vector<1x4xf32> to vector<2x4xf32>
    %470 = arith.addf %468, %469 : vector<2x4xf32>
    %471 = vector.extract_strided_slice %470 {offsets = [0, 0], sizes = [2, 2], strides = [1, 1]} : vector<2x4xf32> to vector<2x2xf32>
    %472 = vector.extract_strided_slice %470 {offsets = [0, 2], sizes = [2, 2], strides = [1, 1]} : vector<2x4xf32> to vector<2x2xf32>
    %473 = arith.mulf %471, %472 : vector<2x2xf32>
    %474 = vector.extract_strided_slice %427 {offsets = [0, 0], sizes = [2, 1], strides = [1, 1]} : vector<2x2xf32> to vector<2x1xf32>
    %475 = vector.extract_strided_slice %473 {offsets = [0, 0], sizes = [2, 1], strides = [1, 1]} : vector<2x2xf32> to vector<2x1xf32>
    %476 = arith.addf %474, %475 : vector<2x1xf32>
    %477 = vector.extract_strided_slice %427 {offsets = [0, 1], sizes = [2, 1], strides = [1, 1]} : vector<2x2xf32> to vector<2x1xf32>
    %478 = vector.extract_strided_slice %473 {offsets = [0, 1], sizes = [2, 1], strides = [1, 1]} : vector<2x2xf32> to vector<2x1xf32>
    %479 = arith.addf %477, %478 : vector<2x1xf32>
    %cst_96 = arith.constant 1.000000e+00 : f32
    %480 = vector.broadcast %cst_96 : f32 to vector<2x1xf32>
    %481 = arith.cmpf ogt, %479, %480 : vector<2x1xf32>
    %482 = arith.extui %481 : vector<2x1xi1> to vector<2x1xi32>
    %483 = arith.sitofp %482 : vector<2x1xi32> to vector<2x1xf32>
    %cst_97 = arith.constant 1.000000e+00 : f32
    %484 = vector.broadcast %cst_97 : f32 to vector<2x1xf32>
    %485 = arith.cmpf ole, %479, %484 : vector<2x1xf32>
    %cst_98 = arith.constant 0.000000e+00 : f32
    %486 = vector.broadcast %cst_98 : f32 to vector<2x1xf32>
    %487 = arith.cmpf oge, %479, %486 : vector<2x1xf32>
    %488 = arith.andi %485, %487 : vector<2x1xi1>
    %489 = arith.extui %488 : vector<2x1xi1> to vector<2x1xi32>
    %490 = arith.sitofp %489 : vector<2x1xi32> to vector<2x1xf32>
    %cst_99 = arith.constant 0.000000e+00 : f32
    %491 = vector.broadcast %cst_99 : f32 to vector<2x1xf32>
    %492 = arith.cmpf olt, %479, %491 : vector<2x1xf32>
    %493 = arith.extui %492 : vector<2x1xi1> to vector<2x1xi32>
    %494 = arith.sitofp %493 : vector<2x1xi32> to vector<2x1xf32>
    %cst_100 = arith.constant 1.000000e+00 : f32
    %495 = vector.broadcast %cst_100 : f32 to vector<2x1xf32>
    %496 = arith.subf %479, %495 : vector<2x1xf32>
    %cst_101 = arith.constant 1.000000e+00 : f32
    %497 = vector.broadcast %cst_101 : f32 to vector<2x1xf32>
    %498 = arith.subf %497, %496 : vector<2x1xf32>
    %499 = arith.mulf %483, %498 : vector<2x1xf32>
    %500 = arith.mulf %490, %479 : vector<2x1xf32>
    %501 = arith.addf %499, %500 : vector<2x1xf32>
    %cst_102 = arith.constant 0.000000e+00 : f32
    %502 = vector.broadcast %cst_102 : f32 to vector<2x1xf32>
    %503 = arith.subf %502, %479 : vector<2x1xf32>
    %504 = arith.mulf %494, %503 : vector<2x1xf32>
    %505 = arith.addf %501, %504 : vector<2x1xf32>
    %cst_103 = arith.constant 5.000000e-01 : f32
    %506 = vector.broadcast %cst_103 : f32 to vector<2x1xf32>
    %507 = arith.subf %476, %506 : vector<2x1xf32>
    %508 = arith.mulf %483, %507 : vector<2x1xf32>
    %509 = arith.mulf %490, %476 : vector<2x1xf32>
    %510 = arith.addf %508, %509 : vector<2x1xf32>
    %cst_104 = arith.constant 5.000000e-01 : f32
    %511 = vector.broadcast %cst_104 : f32 to vector<2x1xf32>
    %512 = arith.subf %476, %511 : vector<2x1xf32>
    %513 = arith.mulf %494, %512 : vector<2x1xf32>
    %514 = arith.addf %510, %513 : vector<2x1xf32>
    %cst_105 = arith.constant 0.000000e+00 : f32
    %515 = vector.broadcast %cst_105 : f32 to vector<2x1xf32>
    %516 = arith.cmpf olt, %514, %515 : vector<2x1xf32>
    %517 = math.ceil %514 : vector<2x1xf32>
    %518 = math.floor %514 : vector<2x1xf32>
    %519 = arith.select %516, %517, %518 : vector<2x1xi1>, vector<2x1xf32>
    %520 = arith.subf %514, %519 : vector<2x1xf32>
    %521 = tpu.concatenate %520, %505 in 1 : vector<2x1xf32>, vector<2x1xf32> -> vector<2x2xf32>
    %522 = vector.extract_strided_slice %521 {offsets = [0, 0], sizes = [2, 1], strides = [1, 1]} : vector<2x2xf32> to vector<2x1xf32>
    %523 = vector.extract_strided_slice %0 {offsets = [0, 0], sizes = [1, 512], strides = [1, 1]} : vector<2x512xf32> to vector<1x512xf32>
    %524 = vector.broadcast %522 : vector<2x1xf32> to vector<2x512xf32>
    %525 = vector.broadcast %523 : vector<1x512xf32> to vector<2x512xf32>
    %526 = arith.mulf %524, %525 : vector<2x512xf32>
    %527 = vector.extract_strided_slice %521 {offsets = [0, 1], sizes = [2, 1], strides = [1, 1]} : vector<2x2xf32> to vector<2x1xf32>
    %528 = vector.extract_strided_slice %0 {offsets = [1, 0], sizes = [1, 512], strides = [1, 1]} : vector<2x512xf32> to vector<1x512xf32>
    %529 = vector.broadcast %527 : vector<2x1xf32> to vector<2x512xf32>
    %530 = vector.broadcast %528 : vector<1x512xf32> to vector<2x512xf32>
    %531 = arith.mulf %529, %530 : vector<2x512xf32>
    %532 = arith.addf %526, %531 : vector<2x512xf32>
    %533 = vector.broadcast %2 : vector<1x512xf32> to vector<2x512xf32>
    %534 = arith.addf %532, %533 : vector<2x512xf32>
    %cst_106 = arith.constant dense<0.000000e+00> : vector<2x512xf32>
    %535 = tpu.matmul %467, %1, %cst_106 {dimension_numbers = #tpu.dot_dimension_numbers<[1], [0], [0], [1], [0, 0, 1, 1], [], []>} : vector<2x128xf32>, vector<128x512xf32>, vector<2x512xf32> -> vector<2x512xf32>
    %536 = arith.addf %534, %535 : vector<2x512xf32>
    %537 = vector.extract_strided_slice %536 {offsets = [0, 0], sizes = [2, 128], strides = [1, 1]} : vector<2x512xf32> to vector<2x128xf32>
    %538 = arith.negf %537 : vector<2x128xf32>
    %539 = math.exp %538 : vector<2x128xf32>
    %cst_107 = arith.constant 1.000000e+00 : f32
    %540 = vector.broadcast %cst_107 : f32 to vector<2x128xf32>
    %541 = arith.addf %540, %539 : vector<2x128xf32>
    %542 = arith.divf %540, %541 : vector<2x128xf32>
    %543 = vector.extract_strided_slice %536 {offsets = [0, 128], sizes = [2, 128], strides = [1, 1]} : vector<2x512xf32> to vector<2x128xf32>
    %544 = arith.negf %543 : vector<2x128xf32>
    %545 = math.exp %544 : vector<2x128xf32>
    %cst_108 = arith.constant 1.000000e+00 : f32
    %546 = vector.broadcast %cst_108 : f32 to vector<2x128xf32>
    %547 = arith.addf %546, %545 : vector<2x128xf32>
    %548 = arith.divf %546, %547 : vector<2x128xf32>
    %549 = vector.extract_strided_slice %536 {offsets = [0, 256], sizes = [2, 128], strides = [1, 1]} : vector<2x512xf32> to vector<2x128xf32>
    %550 = math.tanh %549 : vector<2x128xf32>
    %551 = vector.extract_strided_slice %536 {offsets = [0, 384], sizes = [2, 128], strides = [1, 1]} : vector<2x512xf32> to vector<2x128xf32>
    %552 = arith.negf %551 : vector<2x128xf32>
    %553 = math.exp %552 : vector<2x128xf32>
    %cst_109 = arith.constant 1.000000e+00 : f32
    %554 = vector.broadcast %cst_109 : f32 to vector<2x128xf32>
    %555 = arith.addf %554, %553 : vector<2x128xf32>
    %556 = arith.divf %554, %555 : vector<2x128xf32>
    %557 = arith.mulf %548, %465 : vector<2x128xf32>
    %558 = arith.mulf %542, %550 : vector<2x128xf32>
    %559 = arith.addf %557, %558 : vector<2x128xf32>
    %560 = math.tanh %559 : vector<2x128xf32>
    %561 = arith.mulf %556, %560 : vector<2x128xf32>
    %cst_110 = arith.constant dense<0.000000e+00> : vector<2x4xf32>
    %562 = tpu.matmul %561, %3, %cst_110 {dimension_numbers = #tpu.dot_dimension_numbers<[1], [0], [0], [1], [0, 0, 1, 1], [], []>} : vector<2x128xf32>, vector<128x4xf32>, vector<2x4xf32> -> vector<2x4xf32>
    %563 = vector.broadcast %4 : vector<1x4xf32> to vector<2x4xf32>
    %564 = arith.addf %562, %563 : vector<2x4xf32>
    %565 = vector.extract_strided_slice %564 {offsets = [0, 0], sizes = [2, 2], strides = [1, 1]} : vector<2x4xf32> to vector<2x2xf32>
    %566 = vector.extract_strided_slice %564 {offsets = [0, 2], sizes = [2, 2], strides = [1, 1]} : vector<2x4xf32> to vector<2x2xf32>
    %567 = arith.mulf %565, %566 : vector<2x2xf32>
    %568 = vector.extract_strided_slice %521 {offsets = [0, 0], sizes = [2, 1], strides = [1, 1]} : vector<2x2xf32> to vector<2x1xf32>
    %569 = vector.extract_strided_slice %567 {offsets = [0, 0], sizes = [2, 1], strides = [1, 1]} : vector<2x2xf32> to vector<2x1xf32>
    %570 = arith.addf %568, %569 : vector<2x1xf32>
    %571 = vector.extract_strided_slice %521 {offsets = [0, 1], sizes = [2, 1], strides = [1, 1]} : vector<2x2xf32> to vector<2x1xf32>
    %572 = vector.extract_strided_slice %567 {offsets = [0, 1], sizes = [2, 1], strides = [1, 1]} : vector<2x2xf32> to vector<2x1xf32>
    %573 = arith.addf %571, %572 : vector<2x1xf32>
    %cst_111 = arith.constant 1.000000e+00 : f32
    %574 = vector.broadcast %cst_111 : f32 to vector<2x1xf32>
    %575 = arith.cmpf ogt, %573, %574 : vector<2x1xf32>
    %576 = arith.extui %575 : vector<2x1xi1> to vector<2x1xi32>
    %577 = arith.sitofp %576 : vector<2x1xi32> to vector<2x1xf32>
    %cst_112 = arith.constant 1.000000e+00 : f32
    %578 = vector.broadcast %cst_112 : f32 to vector<2x1xf32>
    %579 = arith.cmpf ole, %573, %578 : vector<2x1xf32>
    %cst_113 = arith.constant 0.000000e+00 : f32
    %580 = vector.broadcast %cst_113 : f32 to vector<2x1xf32>
    %581 = arith.cmpf oge, %573, %580 : vector<2x1xf32>
    %582 = arith.andi %579, %581 : vector<2x1xi1>
    %583 = arith.extui %582 : vector<2x1xi1> to vector<2x1xi32>
    %584 = arith.sitofp %583 : vector<2x1xi32> to vector<2x1xf32>
    %cst_114 = arith.constant 0.000000e+00 : f32
    %585 = vector.broadcast %cst_114 : f32 to vector<2x1xf32>
    %586 = arith.cmpf olt, %573, %585 : vector<2x1xf32>
    %587 = arith.extui %586 : vector<2x1xi1> to vector<2x1xi32>
    %588 = arith.sitofp %587 : vector<2x1xi32> to vector<2x1xf32>
    %cst_115 = arith.constant 1.000000e+00 : f32
    %589 = vector.broadcast %cst_115 : f32 to vector<2x1xf32>
    %590 = arith.subf %573, %589 : vector<2x1xf32>
    %cst_116 = arith.constant 1.000000e+00 : f32
    %591 = vector.broadcast %cst_116 : f32 to vector<2x1xf32>
    %592 = arith.subf %591, %590 : vector<2x1xf32>
    %593 = arith.mulf %577, %592 : vector<2x1xf32>
    %594 = arith.mulf %584, %573 : vector<2x1xf32>
    %595 = arith.addf %593, %594 : vector<2x1xf32>
    %cst_117 = arith.constant 0.000000e+00 : f32
    %596 = vector.broadcast %cst_117 : f32 to vector<2x1xf32>
    %597 = arith.subf %596, %573 : vector<2x1xf32>
    %598 = arith.mulf %588, %597 : vector<2x1xf32>
    %599 = arith.addf %595, %598 : vector<2x1xf32>
    %cst_118 = arith.constant 5.000000e-01 : f32
    %600 = vector.broadcast %cst_118 : f32 to vector<2x1xf32>
    %601 = arith.subf %570, %600 : vector<2x1xf32>
    %602 = arith.mulf %577, %601 : vector<2x1xf32>
    %603 = arith.mulf %584, %570 : vector<2x1xf32>
    %604 = arith.addf %602, %603 : vector<2x1xf32>
    %cst_119 = arith.constant 5.000000e-01 : f32
    %605 = vector.broadcast %cst_119 : f32 to vector<2x1xf32>
    %606 = arith.subf %570, %605 : vector<2x1xf32>
    %607 = arith.mulf %588, %606 : vector<2x1xf32>
    %608 = arith.addf %604, %607 : vector<2x1xf32>
    %cst_120 = arith.constant 0.000000e+00 : f32
    %609 = vector.broadcast %cst_120 : f32 to vector<2x1xf32>
    %610 = arith.cmpf olt, %608, %609 : vector<2x1xf32>
    %611 = math.ceil %608 : vector<2x1xf32>
    %612 = math.floor %608 : vector<2x1xf32>
    %613 = arith.select %610, %611, %612 : vector<2x1xi1>, vector<2x1xf32>
    %614 = arith.subf %608, %613 : vector<2x1xf32>
    %615 = tpu.concatenate %614, %599 in 1 : vector<2x1xf32>, vector<2x1xf32> -> vector<2x2xf32>
    %616 = vector.shape_cast %333 : vector<2x2xf32> to vector<1x2x2xf32>
    %617 = vector.shape_cast %427 : vector<2x2xf32> to vector<1x2x2xf32>
    %618 = vector.shape_cast %521 : vector<2x2xf32> to vector<1x2x2xf32>
    %619 = vector.shape_cast %615 : vector<2x2xf32> to vector<1x2x2xf32>
    %620 = tpu.concatenate %616, %617, %618, %619 in 0 : vector<1x2x2xf32>, vector<1x2x2xf32>, vector<1x2x2xf32>, vector<1x2x2xf32> -> vector<4x2x2xf32>
    %c0_121 = arith.constant 0 : index
    %c0_122 = arith.constant 0 : index
    %c0_123 = arith.constant 0 : index
    %621 = vector.load %arg7[%c0_121, %c0_122, %c0_123] : memref<4x2x2xf32, #tpu.memory_space<vmem>>, vector<4x2x2xf32>
    tpu.vector_store %arg7[%c0_121, %c0_122, %c0_123], %620 {strides = array<i32>} : memref<4x2x2xf32, #tpu.memory_space<vmem>>, vector<4x2x2xf32>,
    return
  }
}

</mosaic_0001>

<llo_original>
// kernel: tpu_custom_call.1
$region0: #{tpu_custom_call.1}
  #allocation0 [shape = 'u32[]', space=smem, size = 0x4, offset = 0x4, fixed_abs, tag = 'smem constant byte address 0x4 - core index']
  #allocation1 [shape = 'u32[144,128]{1,0:T(1,128)}', space=vmem, size = 0x12000, scoped, tag = 'internal scratch']
  %s0 = inlined_call_operand.vmem [shape: f32[8,2,512], index: 0, kind: input, shape index: {}]
  %s1 = inlined_call_operand.vmem [shape: f32[2,2], index: 1, kind: input, shape index: {}]
  %s2 = inlined_call_operand.vmem [shape: f32[2,512], index: 2, kind: input, shape index: {}]
  %s3 = inlined_call_operand.hbm [shape: f32[128,512], index: 3, kind: input, shape index: {}]
  %s4 = inlined_call_operand.vmem [shape: f32[1,512], index: 4, kind: input, shape index: {}]
  %s5 = inlined_call_operand.vmem [shape: f32[128,4], index: 5, kind: input, shape index: {}]
  %s6 = inlined_call_operand.vmem [shape: f32[1,4], index: 6, kind: input, shape index: {}]
  %s7 = inlined_call_operand.vmem [shape: f32[4,2,2], index: 7, kind: output, shape index: {}]
  %s8 = sld [smem:[#allocation0]]
  $region42: #{tpu_custom_call.1} parent=0
    _
  %s10 = ssub.s32 1, %s8
  %s11 = scalar_select 0, %s10, %s8
  $region1: #{tpu_custom_call.1} parent=0
    #allocation2 [shape = 'u8[262144]{0}', space=vmem, size = 0x40000, scoped, tag = 'input window, operand 3, single buffered']
    #allocation3 [shape = 's32[1]{0}', space=sflag, size = 0x4, scoped, tag = 'scoped memory for tpu_custom_call.1']
    %12 = vsyncpa [#allocation3], 0
    // Predicated region
    $region2: #{tpu_custom_call.1} parent=1 // pred_check
      _
    $region3: #{tpu_custom_call.1} parent=1 // pred_check_branch
      %14 = sbr.rel (0) target = $region5
    $region4: #{tpu_custom_call.1} parent=1 // pred_region
      _
    $region5: #{tpu_custom_call.1} parent=1 // pred_fallthru
      _
    // Predicated region
    $region6: #{tpu_custom_call.1} parent=1 // pred_check
      _
    $region7: #{tpu_custom_call.1} parent=1 // pred_check_branch
      %16 = sbr.rel (0) target = $region9
    $region8: #{tpu_custom_call.1} parent=1 // pred_region
      _
    $region9: #{tpu_custom_call.1} parent=1 // pred_fallthru
      _
    // Predicated region
    $region10: #{tpu_custom_call.1} parent=1 // pred_check
      _
    $region11: #{tpu_custom_call.1} parent=1 // pred_check_branch
      %18 = sbr.rel (0) target = $region13
    $region12: #{tpu_custom_call.1} parent=1 // pred_region
      _
    $region13: #{tpu_custom_call.1} parent=1 // pred_fallthru
      _
    // Predicated region
    $region14: #{tpu_custom_call.1} parent=1 // pred_check
      _
    $region15: #{tpu_custom_call.1} parent=1 // pred_check_branch
      %20 = sbr.rel (0) target = $region17
    $region16: #{tpu_custom_call.1} parent=1 // pred_region
      %s22 = ssub.s32 8192, 8192
      %23 = vsyncadd [#allocation3], %s22
      %s24 = sshll.u32 [#allocation2], 4
      %s25 = int_to_ptr.vmem [resolvable:$true] %s24
      %30 = dma.hbm_to_vmem [thread:$0]  %s3, 8192, %s25, [#allocation3], 512, 512, 32
    $region17: #{tpu_custom_call.1} parent=1 // pred_fallthru
      _
    // Predicated region
    $region18: #{tpu_custom_call.1} parent=1 // pred_check
      _
    $region19: #{tpu_custom_call.1} parent=1 // pred_check_branch
      %32 = sbr.rel (0) target = $region21
    $region20: #{tpu_custom_call.1} parent=1 // pred_region
      _
    $region21: #{tpu_custom_call.1} parent=1 // pred_fallthru
      _
    // Predicated region
    $region22: #{tpu_custom_call.1} parent=1 // pred_check
      _
    $region23: #{tpu_custom_call.1} parent=1 // pred_check_branch
      %34 = sbr.rel (0) target = $region25
    $region24: #{tpu_custom_call.1} parent=1 // pred_region
      _
    $region25: #{tpu_custom_call.1} parent=1 // pred_fallthru
      _
    // Predicated region
    $region26: #{tpu_custom_call.1} parent=1 // pred_check
      _
    $region27: #{tpu_custom_call.1} parent=1 // pred_check_branch
      %36 = sbr.rel (0) target = $region29
    $region28: #{tpu_custom_call.1} parent=1 // pred_region
      _
    $region29: #{tpu_custom_call.1} parent=1 // pred_fallthru
      _
    // Predicated region
    $region30: #{tpu_custom_call.1} parent=1 // pred_check
      _
    $region31: #{tpu_custom_call.1} parent=1 // pred_check_branch
      %38 = sbr.rel (0) target = $region33
    $region32: #{tpu_custom_call.1} parent=1 // pred_region
      %39 = dma.done [#allocation3], 8192
    $region33: #{tpu_custom_call.1} parent=1 // pred_fallthru
      _
    %v40 = vld [vmem:[%s2] sm:$0xff]
    %v41 = vld [vmem:[#allocation2] sm:$0xff]
    %v42 = vld [vmem:[#allocation2 + $0x8] sm:$0xff]
    %v43 = vld [vmem:[#allocation2 + $0x10] sm:$0xff]
    %v44 = vld [vmem:[#allocation2 + $0x18] sm:$0xff]
    %v45 = vld [vmem:[#allocation2 + $0x20] sm:$0xff]
    %v46 = vld [vmem:[#allocation2 + $0x28] sm:$0xff]
    %v47 = vld [vmem:[#allocation2 + $0x30] sm:$0xff]
    %v48 = vld [vmem:[#allocation2 + $0x38] sm:$0xff]
    %v49 = vld [vmem:[#allocation2 + $0x40] sm:$0xff]
    %v50 = vld [vmem:[#allocation2 + $0x48] sm:$0xff]
    %v51 = vld [vmem:[#allocation2 + $0x50] sm:$0xff]
    %v52 = vld [vmem:[#allocation2 + $0x58] sm:$0xff]
    %v53 = vld [vmem:[#allocation2 + $0x60] sm:$0xff]
    %v54 = vld [vmem:[#allocation2 + $0x68] sm:$0xff]
    %v55 = vld [vmem:[#allocation2 + $0x70] sm:$0xff]
    %v56 = vld [vmem:[#allocation2 + $0x78] sm:$0xff]
    %v57 = vld [vmem:[#allocation2 + $0x80] sm:$0xff]
    %v58 = vld [vmem:[#allocation2 + $0x88] sm:$0xff]
    %v59 = vld [vmem:[#allocation2 + $0x90] sm:$0xff]
    %v60 = vld [vmem:[#allocation2 + $0x98] sm:$0xff]
    %v61 = vld [vmem:[#allocation2 + $0xa0] sm:$0xff]
    %v62 = vld [vmem:[#allocation2 + $0xa8] sm:$0xff]
    %v63 = vld [vmem:[#allocation2 + $0xb0] sm:$0xff]
    %v64 = vld [vmem:[#allocation2 + $0xb8] sm:$0xff]
    %v65 = vld [vmem:[#allocation2 + $0xc0] sm:$0xff]
    %v66 = vld [vmem:[#allocation2 + $0xc8] sm:$0xff]
    %v67 = vld [vmem:[#allocation2 + $0xd0] sm:$0xff]
    %v68 = vld [vmem:[#allocation2 + $0xd8] sm:$0xff]
    %v69 = vld [vmem:[#allocation2 + $0xe0] sm:$0xff]
    %v70 = vld [vmem:[#allocation2 + $0xe8] sm:$0xff]
    %v71 = vld [vmem:[#allocation2 + $0xf0] sm:$0xff]
    %v72 = vld [vmem:[#allocation2 + $0xf8] sm:$0xff]
    %v73 = vld [vmem:[#allocation2 + $0x100] sm:$0xff]
    %v74 = vld [vmem:[#allocation2 + $0x108] sm:$0xff]
    %v75 = vld [vmem:[#allocation2 + $0x110] sm:$0xff]
    %v76 = vld [vmem:[#allocation2 + $0x118] sm:$0xff]
    %v77 = vld [vmem:[#allocation2 + $0x120] sm:$0xff]
    %v78 = vld [vmem:[#allocation2 + $0x128] sm:$0xff]
    %v79 = vld [vmem:[#allocation2 + $0x130] sm:$0xff]
    %v80 = vld [vmem:[#allocation2 + $0x138] sm:$0xff]
    %v81 = vld [vmem:[#allocation2 + $0x140] sm:$0xff]
    %v82 = vld [vmem:[#allocation2 + $0x148] sm:$0xff]
    %v83 = vld [vmem:[#allocation2 + $0x150] sm:$0xff]
    %v84 = vld [vmem:[#allocation2 + $0x158] sm:$0xff]
    %v85 = vld [vmem:[#allocation2 + $0x160] sm:$0xff]
    %v86 = vld [vmem:[#allocation2 + $0x168] sm:$0xff]
    %v87 = vld [vmem:[#allocation2 + $0x170] sm:$0xff]
    %v88 = vld [vmem:[#allocation2 + $0x178] sm:$0xff]
    %v89 = vld [vmem:[#allocation2 + $0x180] sm:$0xff]
    %v90 = vld [vmem:[#allocation2 + $0x188] sm:$0xff]
    %v91 = vld [vmem:[#allocation2 + $0x190] sm:$0xff]
    %v92 = vld [vmem:[#allocation2 + $0x198] sm:$0xff]
    %v93 = vld [vmem:[#allocation2 + $0x1a0] sm:$0xff]
    %v94 = vld [vmem:[#allocation2 + $0x1a8] sm:$0xff]
    %v95 = vld [vmem:[#allocation2 + $0x1b0] sm:$0xff]
    %v96 = vld [vmem:[#allocation2 + $0x1b8] sm:$0xff]
    %v97 = vld [vmem:[#allocation2 + $0x1c0] sm:$0xff]
    %v98 = vld [vmem:[#allocation2 + $0x1c8] sm:$0xff]
    %v99 = vld [vmem:[#allocation2 + $0x1d0] sm:$0xff]
    %v100 = vld [vmem:[#allocation2 + $0x1d8] sm:$0xff]
    %v101 = vld [vmem:[#allocation2 + $0x1e0] sm:$0xff]
    %v102 = vld [vmem:[#allocation2 + $0x1e8] sm:$0xff]
    %v103 = vld [vmem:[#allocation2 + $0x1f0] sm:$0xff]
    %v104 = vld [vmem:[#allocation2 + $0x1f8] sm:$0xff]
    %v105 = vld [vmem:[%s4] sm:$0xf]
    %v106 = vld [vmem:[%s5] sm:$0xff]
    %v107 = vld [vmem:[%s5 + $0x8] sm:$0xff]
    %v108 = vld [vmem:[%s5 + $0x10] sm:$0xff]
    %v109 = vld [vmem:[%s5 + $0x18] sm:$0xff]
    %v110 = vld [vmem:[%s5 + $0x20] sm:$0xff]
    %v111 = vld [vmem:[%s5 + $0x28] sm:$0xff]
    %v112 = vld [vmem:[%s5 + $0x30] sm:$0xff]
    %v113 = vld [vmem:[%s5 + $0x38] sm:$0xff]
    %v114 = vld [vmem:[%s5 + $0x40] sm:$0xff]
    %v115 = vld [vmem:[%s5 + $0x48] sm:$0xff]
    %v116 = vld [vmem:[%s5 + $0x50] sm:$0xff]
    %v117 = vld [vmem:[%s5 + $0x58] sm:$0xff]
    %v118 = vld [vmem:[%s5 + $0x60] sm:$0xff]
    %v119 = vld [vmem:[%s5 + $0x68] sm:$0xff]
    %v120 = vld [vmem:[%s5 + $0x70] sm:$0xff]
    %v121 = vld [vmem:[%s5 + $0x78] sm:$0xff]
    %v122 = vld [vmem:[%s6] sm:$0x1]
    %v123 = vld [vmem:[%s0] sm:$0xff]
    %124 = vmatprep.subr.mxu0 %v42
    %125 = vmatpush1.msra.mxu0 %v41
    %126 = vmatprep.subr.mxu0 %v46
    %127 = vmatpush1.msra.mxu0 %v45
    %128 = vmatprep.subr.mxu0 %v50
    %129 = vmatpush1.msra.mxu0 %v49
    %130 = vmatprep.subr.mxu0 %v54
    %131 = vmatpush1.msra.mxu0 %v53
    %132 = vmatprep.subr.mxu0 %v58
    %133 = vmatpush1.msra.mxu0 %v57
    %134 = vmatprep.subr.mxu0 %v62
    %135 = vmatpush1.msra.mxu0 %v61
    %136 = vmatprep.subr.mxu0 %v66
    %137 = vmatpush1.msra.mxu0 %v65
    %138 = vmatprep.subr.mxu0 %v70
    %139 = vmatpush1.msra.mxu0 %v69
    %140 = vmatprep.subr.mxu0 %v74
    %141 = vmatpush1.msra.mxu0 %v73
    %142 = vmatprep.subr.mxu0 %v78
    %143 = vmatpush1.msra.mxu0 %v77
    %144 = vmatprep.subr.mxu0 %v82
    %145 = vmatpush1.msra.mxu0 %v81
    %146 = vmatprep.subr.mxu0 %v86
    %147 = vmatpush1.msra.mxu0 %v85
    %148 = vmatprep.subr.mxu0 %v90
    %149 = vmatpush1.msra.mxu0 %v89
    %150 = vmatprep.subr.mxu0 %v94
    %151 = vmatpush1.msra.mxu0 %v93
    %152 = vmatprep.subr.mxu0 %v98
    %153 = vmatpush1.msra.mxu0 %v97
    %154 = vmatprep.subr.mxu0 %v102
    %155 = vmatpush1.msra.mxu0 %v101
    %156 = vmatprep.subr.mxu0 0.0
    %157 = vmatpush1.msra.mxu0 0.0
    %158 = vmatprep.subr.mxu0 0.0
    %159 = vmatpush1.msra.mxu0 0.0
    %160 = vmatprep.subr.mxu0 0.0
    %161 = vmatpush1.msra.mxu0 0.0
    %162 = vmatprep.subr.mxu0 0.0
    %163 = vmatpush1.msra.mxu0 0.0
    %164 = vmatprep.subr.mxu0 0.0
    %165 = vmatpush1.msra.mxu0 0.0
    %166 = vmatprep.subr.mxu0 0.0
    %167 = vmatpush1.msra.mxu0 0.0
    %168 = vmatprep.subr.mxu0 0.0
    %169 = vmatpush1.msra.mxu0 0.0
    %170 = vmatprep.subr.mxu0 0.0
    %171 = vmatpush1.msra.mxu0 0.0
    %172 = vmatprep.subr.mxu0 0.0
    %173 = vmatpush1.msra.mxu0 0.0
    %174 = vmatprep.subr.mxu0 0.0
    %175 = vmatpush1.msra.mxu0 0.0
    %176 = vmatprep.subr.mxu0 0.0
    %177 = vmatpush1.msra.mxu0 0.0
    %178 = vmatprep.subr.mxu0 0.0
    %179 = vmatpush1.msra.mxu0 0.0
    %180 = vmatprep.subr.mxu0 0.0
    %181 = vmatpush1.msra.mxu0 0.0
    %182 = vmatprep.subr.mxu0 0.0
    %183 = vmatpush1.msra.mxu0 0.0
    %184 = vmatprep.subr.mxu0 0.0
    %185 = vmatpush1.msra.mxu0 0.0
    %186 = vmatprep.subr.mxu0 0.0
    %187 = vmatpush1.msra.mxu0 0.0
    %188 = vmatprep.mubr.f32.mxu0 0.0
    %189 = vmatmul.mubr.f32.gmra.mrb[0].mxu0 0.0
    %v190 = vpop.f32.mrb[0].mxu0
    %v191 = vadd.f32 0.0, %v190
    %v192 = vpop.f32.mrb[0].mxu0
    %v193 = vadd.f32 0.0, %v192
    %194 = vdwg.mxu0
    %195 = vmatprep.subr.mxu0 %v44
    %196 = vmatpush1.msra.mxu0 %v43
    %197 = vmatprep.subr.mxu0 %v48
    %198 = vmatpush1.msra.mxu0 %v47
    %199 = vmatprep.subr.mxu0 %v52
    %200 = vmatpush1.msra.mxu0 %v51
    %201 = vmatprep.subr.mxu0 %v56
    %202 = vmatpush1.msra.mxu0 %v55
    %203 = vmatprep.subr.mxu0 %v60
    %204 = vmatpush1.msra.mxu0 %v59
    %205 = vmatprep.subr.mxu0 %v64
    %206 = vmatpush1.msra.mxu0 %v63
    %207 = vmatprep.subr.mxu0 %v68
    %208 = vmatpush1.msra.mxu0 %v67
    %209 = vmatprep.subr.mxu0 %v72
    %210 = vmatpush1.msra.mxu0 %v71
    %211 = vmatprep.subr.mxu0 %v76
    %212 = vmatpush1.msra.mxu0 %v75
    %213 = vmatprep.subr.mxu0 %v80
    %214 = vmatpush1.msra.mxu0 %v79
    %215 = vmatprep.subr.mxu0 %v84
    %216 = vmatpush1.msra.mxu0 %v83
    %217 = vmatprep.subr.mxu0 %v88
    %218 = vmatpush1.msra.mxu0 %v87
    %219 = vmatprep.subr.mxu0 %v92
    %220 = vmatpush1.msra.mxu0 %v91
    %221 = vmatprep.subr.mxu0 %v96
    %222 = vmatpush1.msra.mxu0 %v95
    %223 = vmatprep.subr.mxu0 %v100
    %224 = vmatpush1.msra.mxu0 %v99
    %225 = vmatprep.subr.mxu0 %v104
    %226 = vmatpush1.msra.mxu0 %v103
    %227 = vmatprep.subr.mxu0 0.0
    %228 = vmatpush1.msra.mxu0 0.0
    %229 = vmatprep.subr.mxu0 0.0
    %230 = vmatpush1.msra.mxu0 0.0
    %231 = vmatprep.subr.mxu0 0.0
    %232 = vmatpush1.msra.mxu0 0.0
    %233 = vmatprep.subr.mxu0 0.0
    %234 = vmatpush1.msra.mxu0 0.0
    %235 = vmatprep.subr.mxu0 0.0
    %236 = vmatpush1.msra.mxu0 0.0
    %237 = vmatprep.subr.mxu0 0.0
    %238 = vmatpush1.msra.mxu0 0.0
    %239 = vmatprep.subr.mxu0 0.0
    %240 = vmatpush1.msra.mxu0 0.0
    %241 = vmatprep.subr.mxu0 0.0
    %242 = vmatpush1.msra.mxu0 0.0
    %243 = vmatprep.subr.mxu0 0.0
    %244 = vmatpush1.msra.mxu0 0.0
    %245 = vmatprep.subr.mxu0 0.0
    %246 = vmatpush1.msra.mxu0 0.0
    %247 = vmatprep.subr.mxu0 0.0
    %248 = vmatpush1.msra.mxu0 0.0
    %249 = vmatprep.subr.mxu0 0.0
    %250 = vmatpush1.msra.mxu0 0.0
    %251 = vmatprep.subr.mxu0 0.0
    %252 = vmatpush1.msra.mxu0 0.0
    %253 = vmatprep.subr.mxu0 0.0
    %254 = vmatpush1.msra.mxu0 0.0
    %255 = vmatprep.subr.mxu0 0.0
    %256 = vmatpush1.msra.mxu0 0.0
    %257 = vmatprep.subr.mxu0 0.0
    %258 = vmatpush1.msra.mxu0 0.0
    %259 = vmatprep.mubr.f32.mxu0 0.0
    %260 = vmatmul.mubr.f32.gmra.mrb[0].mxu0 0.0
    %v261 = vpop.f32.mrb[0].mxu0
    %v262 = vadd.f32 0.0, %v261
    %v263 = vpop.f32.mrb[0].mxu0
    %v264 = vadd.f32 0.0, %v263
    %265 = vdwg.mxu0
    %v270 = vcombine.low %v191, %v193
    %v271 = vcombine.low %v262, %v264
    %v273 = vunpack.c.l.s4 1983009808
    %v274 = vunpack.c.0.s8 %v273
    %v275 = vlaneseq
    %v276 = vshrl.u32 %v275, 7
    %v277 = vsub.s32 %v274, %v276
    %v278 = vrot.slane %v270, %v277
    %v280 = vunpack.c.l.s4 1983009808
    %v281 = vunpack.c.0.s8 %v280
    %v282 = vlaneseq
    %v283 = vshrl.u32 %v282, 7
    %v284 = vsub.s32 %v281, %v283
    %v285 = vrot.slane %v271, %v284
    %v286 = vcombine.low %v278, %v285
    %v288 = vadd.f32 %v123, %v286
    %v289 = vxor.u32 %v288, 2147483648
    %v290 = vmul.f32 %v289, 1.442695
    %v291 = vpow.pop %v290
    %v292 = vadd.f32 %v291, 1.0
    %v293 = vrcp.pop %v292
    %v294 = vmul.f32 1.0, %v293
    %v296 = vrot.slane %v288, 2
    %v298 = vxor.u32 %v296, 2147483648
    %v299 = vmul.f32 %v298, 1.442695
    %v300 = vpow.pop %v299
    %v301 = vadd.f32 %v300, 1.0
    %v302 = vrcp.pop %v301
    %v303 = vmul.f32 1.0, %v302
    %v304 = vrot.slane %v288, 4
    %v306 = vtanh.pop %v304
    %v307 = vrot.slane %v288, 6
    %v309 = vxor.u32 %v307, 2147483648
    %v310 = vmul.f32 %v309, 1.442695
    %v311 = vpow.pop %v310
    %v312 = vadd.f32 %v311, 1.0
    %v313 = vrcp.pop %v312
    %v314 = vmul.f32 1.0, %v313
    %v315 = vmul.f32 %v303, 0.0
    %v316 = vmul.f32 %v294, %v306
    %v317 = vadd.f32 %v315, %v316
    %v318 = vtanh.pop %v317
    %v319 = vmul.f32 %v314, %v318
    %s320 = scalar_lea.vmem %s0, 8
    %v321 = vld [vmem:[%s320] sm:$0xff]
    %322 = vmatprep.subr.mxu0 %v42
    %323 = vmatpush1.msra.mxu0 %v41
    %324 = vmatprep.subr.mxu0 %v46
    %325 = vmatpush1.msra.mxu0 %v45
    %326 = vmatprep.subr.mxu0 %v50
    %327 = vmatpush1.msra.mxu0 %v49
    %328 = vmatprep.subr.mxu0 %v54
    %329 = vmatpush1.msra.mxu0 %v53
    %330 = vmatprep.subr.mxu0 %v58
    %331 = vmatpush1.msra.mxu0 %v57
    %332 = vmatprep.subr.mxu0 %v62
    %333 = vmatpush1.msra.mxu0 %v61
    %334 = vmatprep.subr.mxu0 %v66
    %335 = vmatpush1.msra.mxu0 %v65
    %336 = vmatprep.subr.mxu0 %v70
    %337 = vmatpush1.msra.mxu0 %v69
    %338 = vmatprep.subr.mxu0 %v74
    %339 = vmatpush1.msra.mxu0 %v73
    %340 = vmatprep.subr.mxu0 %v78
    %341 = vmatpush1.msra.mxu0 %v77
    %342 = vmatprep.subr.mxu0 %v82
    %343 = vmatpush1.msra.mxu0 %v81
    %344 = vmatprep.subr.mxu0 %v86
    %345 = vmatpush1.msra.mxu0 %v85
    %346 = vmatprep.subr.mxu0 %v90
    %347 = vmatpush1.msra.mxu0 %v89
    %348 = vmatprep.subr.mxu0 %v94
    %349 = vmatpush1.msra.mxu0 %v93
    %350 = vmatprep.subr.mxu0 %v98
    %351 = vmatpush1.msra.mxu0 %v97
    %352 = vmatprep.subr.mxu0 %v102
    %353 = vmatpush1.msra.mxu0 %v101
    %354 = vmatprep.subr.mxu0 0.0
    %355 = vmatpush1.msra.mxu0 0.0
    %356 = vmatprep.subr.mxu0 0.0
    %357 = vmatpush1.msra.mxu0 0.0
    %358 = vmatprep.subr.mxu0 0.0
    %359 = vmatpush1.msra.mxu0 0.0
    %360 = vmatprep.subr.mxu0 0.0
    %361 = vmatpush1.msra.mxu0 0.0
    %362 = vmatprep.subr.mxu0 0.0
    %363 = vmatpush1.msra.mxu0 0.0
    %364 = vmatprep.subr.mxu0 0.0
    %365 = vmatpush1.msra.mxu0 0.0
    %366 = vmatprep.subr.mxu0 0.0
    %367 = vmatpush1.msra.mxu0 0.0
    %368 = vmatprep.subr.mxu0 0.0
    %369 = vmatpush1.msra.mxu0 0.0
    %370 = vmatprep.subr.mxu0 0.0
    %371 = vmatpush1.msra.mxu0 0.0
    %372 = vmatprep.subr.mxu0 0.0
    %373 = vmatpush1.msra.mxu0 0.0
    %374 = vmatprep.subr.mxu0 0.0
    %375 = vmatpush1.msra.mxu0 0.0
    %376 = vmatprep.subr.mxu0 0.0
    %377 = vmatpush1.msra.mxu0 0.0
    %378 = vmatprep.subr.mxu0 0.0
    %379 = vmatpush1.msra.mxu0 0.0
    %380 = vmatprep.subr.mxu0 0.0
    %381 = vmatpush1.msra.mxu0 0.0
    %382 = vmatprep.subr.mxu0 0.0
    %383 = vmatpush1.msra.mxu0 0.0
    %384 = vmatprep.subr.mxu0 0.0
    %385 = vmatpush1.msra.mxu0 0.0
    %386 = vmatprep.mubr.f32.mxu0 0.0
    %387 = vmatmul.mubr.f32.gmra.mrb[0].mxu0 %v319
    %v388 = vpop.f32.mrb[0].mxu0
    %v389 = vadd.f32 0.0, %v388
    %v390 = vpop.f32.mrb[0].mxu0
    %v391 = vadd.f32 0.0, %v390
    %392 = vdwg.mxu0
    %393 = vmatprep.subr.mxu0 %v44
    %394 = vmatpush1.msra.mxu0 %v43
    %395 = vmatprep.subr.mxu0 %v48
    %396 = vmatpush1.msra.mxu0 %v47
    %397 = vmatprep.subr.mxu0 %v52
    %398 = vmatpush1.msra.mxu0 %v51
    %399 = vmatprep.subr.mxu0 %v56
    %400 = vmatpush1.msra.mxu0 %v55
    %401 = vmatprep.subr.mxu0 %v60
    %402 = vmatpush1.msra.mxu0 %v59
    %403 = vmatprep.subr.mxu0 %v64
    %404 = vmatpush1.msra.mxu0 %v63
    %405 = vmatprep.subr.mxu0 %v68
    %406 = vmatpush1.msra.mxu0 %v67
    %407 = vmatprep.subr.mxu0 %v72
    %408 = vmatpush1.msra.mxu0 %v71
    %409 = vmatprep.subr.mxu0 %v76
    %410 = vmatpush1.msra.mxu0 %v75
    %411 = vmatprep.subr.mxu0 %v80
    %412 = vmatpush1.msra.mxu0 %v79
    %413 = vmatprep.subr.mxu0 %v84
    %414 = vmatpush1.msra.mxu0 %v83
    %415 = vmatprep.subr.mxu0 %v88
    %416 = vmatpush1.msra.mxu0 %v87
    %417 = vmatprep.subr.mxu0 %v92
    %418 = vmatpush1.msra.mxu0 %v91
    %419 = vmatprep.subr.mxu0 %v96
    %420 = vmatpush1.msra.mxu0 %v95
    %421 = vmatprep.subr.mxu0 %v100
    %422 = vmatpush1.msra.mxu0 %v99
    %423 = vmatprep.subr.mxu0 %v104
    %424 = vmatpush1.msra.mxu0 %v103
    %425 = vmatprep.subr.mxu0 0.0
    %426 = vmatpush1.msra.mxu0 0.0
    %427 = vmatprep.subr.mxu0 0.0
    %428 = vmatpush1.msra.mxu0 0.0
    %429 = vmatprep.subr.mxu0 0.0
    %430 = vmatpush1.msra.mxu0 0.0
    %431 = vmatprep.subr.mxu0 0.0
    %432 = vmatpush1.msra.mxu0 0.0
    %433 = vmatprep.subr.mxu0 0.0
    %434 = vmatpush1.msra.mxu0 0.0
    %435 = vmatprep.subr.mxu0 0.0
    %436 = vmatpush1.msra.mxu0 0.0
    %437 = vmatprep.subr.mxu0 0.0
    %438 = vmatpush1.msra.mxu0 0.0
    %439 = vmatprep.subr.mxu0 0.0
    %440 = vmatpush1.msra.mxu0 0.0
    %441 = vmatprep.subr.mxu0 0.0
    %442 = vmatpush1.msra.mxu0 0.0
    %443 = vmatprep.subr.mxu0 0.0
    %444 = vmatpush1.msra.mxu0 0.0
    %445 = vmatprep.subr.mxu0 0.0
    %446 = vmatpush1.msra.mxu0 0.0
    %447 = vmatprep.subr.mxu0 0.0
    %448 = vmatpush1.msra.mxu0 0.0
    %449 = vmatprep.subr.mxu0 0.0
    %450 = vmatpush1.msra.mxu0 0.0
    %451 = vmatprep.subr.mxu0 0.0
    %452 = vmatpush1.msra.mxu0 0.0
    %453 = vmatprep.subr.mxu0 0.0
    %454 = vmatpush1.msra.mxu0 0.0
    %455 = vmatprep.subr.mxu0 0.0
    %456 = vmatpush1.msra.mxu0 0.0
    %457 = vmatprep.mubr.f32.mxu0 0.0
    %458 = vmatmul.mubr.f32.gmra.mrb[0].mxu0 %v319
    %v459 = vpop.f32.mrb[0].mxu0
    %v460 = vadd.f32 0.0, %v459
    %v461 = vpop.f32.mrb[0].mxu0
    %v462 = vadd.f32 0.0, %v461
    %463 = vdwg.mxu0
    %v468 = vcombine.low %v389, %v391
    %v469 = vcombine.low %v460, %v462
    %v471 = vunpack.c.l.s4 1983009808
    %v472 = vunpack.c.0.s8 %v471
    %v473 = vlaneseq
    %v474 = vshrl.u32 %v473, 7
    %v475 = vsub.s32 %v472, %v474
    %v476 = vrot.slane %v468, %v475
    %v478 = vunpack.c.l.s4 1983009808
    %v479 = vunpack.c.0.s8 %v478
    %v480 = vlaneseq
    %v481 = vshrl.u32 %v480, 7
    %v482 = vsub.s32 %v479, %v481
    %v483 = vrot.slane %v469, %v482
    %v484 = vcombine.low %v476, %v483
    %v486 = vadd.f32 %v321, %v484
    %v487 = vxor.u32 %v486, 2147483648
    %v488 = vmul.f32 %v487, 1.442695
    %v489 = vpow.pop %v488
    %v490 = vadd.f32 %v489, 1.0
    %v491 = vrcp.pop %v490
    %v492 = vmul.f32 1.0, %v491
    %v494 = vrot.slane %v486, 2
    %v496 = vxor.u32 %v494, 2147483648
    %v497 = vmul.f32 %v496, 1.442695
    %v498 = vpow.pop %v497
    %v499 = vadd.f32 %v498, 1.0
    %v500 = vrcp.pop %v499
    %v501 = vmul.f32 1.0, %v500
    %v502 = vrot.slane %v486, 4
    %v504 = vtanh.pop %v502
    %v505 = vrot.slane %v486, 6
    %v507 = vxor.u32 %v505, 2147483648
    %v508 = vmul.f32 %v507, 1.442695
    %v509 = vpow.pop %v508
    %v510 = vadd.f32 %v509, 1.0
    %v511 = vrcp.pop %v510
    %v512 = vmul.f32 1.0, %v511
    %v513 = vmul.f32 %v501, %v317
    %v514 = vmul.f32 %v492, %v504
    %v515 = vadd.f32 %v513, %v514
    %v516 = vtanh.pop %v515
    %v517 = vmul.f32 %v512, %v516
    %s518 = scalar_lea.vmem %s0, 16
    %v519 = vld [vmem:[%s518] sm:$0xff]
    %520 = vmatprep.subr.mxu0 %v42
    %521 = vmatpush1.msra.mxu0 %v41
    %522 = vmatprep.subr.mxu0 %v46
    %523 = vmatpush1.msra.mxu0 %v45
    %524 = vmatprep.subr.mxu0 %v50
    %525 = vmatpush1.msra.mxu0 %v49
    %526 = vmatprep.subr.mxu0 %v54
    %527 = vmatpush1.msra.mxu0 %v53
    %528 = vmatprep.subr.mxu0 %v58
    %529 = vmatpush1.msra.mxu0 %v57
    %530 = vmatprep.subr.mxu0 %v62
    %531 = vmatpush1.msra.mxu0 %v61
    %532 = vmatprep.subr.mxu0 %v66
    %533 = vmatpush1.msra.mxu0 %v65
    %534 = vmatprep.subr.mxu0 %v70
    %535 = vmatpush1.msra.mxu0 %v69
    %536 = vmatprep.subr.mxu0 %v74
    %537 = vmatpush1.msra.mxu0 %v73
    %538 = vmatprep.subr.mxu0 %v78
    %539 = vmatpush1.msra.mxu0 %v77
    %540 = vmatprep.subr.mxu0 %v82
    %541 = vmatpush1.msra.mxu0 %v81
    %542 = vmatprep.subr.mxu0 %v86
    %543 = vmatpush1.msra.mxu0 %v85
    %544 = vmatprep.subr.mxu0 %v90
    %545 = vmatpush1.msra.mxu0 %v89
    %546 = vmatprep.subr.mxu0 %v94
    %547 = vmatpush1.msra.mxu0 %v93
    %548 = vmatprep.subr.mxu0 %v98
    %549 = vmatpush1.msra.mxu0 %v97
    %550 = vmatprep.subr.mxu0 %v102
    %551 = vmatpush1.msra.mxu0 %v101
    %552 = vmatprep.subr.mxu0 0.0
    %553 = vmatpush1.msra.mxu0 0.0
    %554 = vmatprep.subr.mxu0 0.0
    %555 = vmatpush1.msra.mxu0 0.0
    %556 = vmatprep.subr.mxu0 0.0
    %557 = vmatpush1.msra.mxu0 0.0
    %558 = vmatprep.subr.mxu0 0.0
    %559 = vmatpush1.msra.mxu0 0.0
    %560 = vmatprep.subr.mxu0 0.0
    %561 = vmatpush1.msra.mxu0 0.0
    %562 = vmatprep.subr.mxu0 0.0
    %563 = vmatpush1.msra.mxu0 0.0
    %564 = vmatprep.subr.mxu0 0.0
    %565 = vmatpush1.msra.mxu0 0.0
    %566 = vmatprep.subr.mxu0 0.0
    %567 = vmatpush1.msra.mxu0 0.0
    %568 = vmatprep.subr.mxu0 0.0
    %569 = vmatpush1.msra.mxu0 0.0
    %570 = vmatprep.subr.mxu0 0.0
    %571 = vmatpush1.msra.mxu0 0.0
    %572 = vmatprep.subr.mxu0 0.0
    %573 = vmatpush1.msra.mxu0 0.0
    %574 = vmatprep.subr.mxu0 0.0
    %575 = vmatpush1.msra.mxu0 0.0
    %576 = vmatprep.subr.mxu0 0.0
    %577 = vmatpush1.msra.mxu0 0.0
    %578 = vmatprep.subr.mxu0 0.0
    %579 = vmatpush1.msra.mxu0 0.0
    %580 = vmatprep.subr.mxu0 0.0
    %581 = vmatpush1.msra.mxu0 0.0
    %582 = vmatprep.subr.mxu0 0.0
    %583 = vmatpush1.msra.mxu0 0.0
    %584 = vmatprep.mubr.f32.mxu0 0.0
    %585 = vmatmul.mubr.f32.gmra.mrb[0].mxu0 %v517
    %v586 = vpop.f32.mrb[0].mxu0
    %v587 = vadd.f32 0.0, %v586
    %v588 = vpop.f32.mrb[0].mxu0
    %v589 = vadd.f32 0.0, %v588
    %590 = vdwg.mxu0
    %591 = vmatprep.subr.mxu0 %v44
    %592 = vmatpush1.msra.mxu0 %v43
    %593 = vmatprep.subr.mxu0 %v48
    %594 = vmatpush1.msra.mxu0 %v47
    %595 = vmatprep.subr.mxu0 %v52
    %596 = vmatpush1.msra.mxu0 %v51
    %597 = vmatprep.subr.mxu0 %v56
    %598 = vmatpush1.msra.mxu0 %v55
    %599 = vmatprep.subr.mxu0 %v60
    %600 = vmatpush1.msra.mxu0 %v59
    %601 = vmatprep.subr.mxu0 %v64
    %602 = vmatpush1.msra.mxu0 %v63
    %603 = vmatprep.subr.mxu0 %v68
    %604 = vmatpush1.msra.mxu0 %v67
    %605 = vmatprep.subr.mxu0 %v72
    %606 = vmatpush1.msra.mxu0 %v71
    %607 = vmatprep.subr.mxu0 %v76
    %608 = vmatpush1.msra.mxu0 %v75
    %609 = vmatprep.subr.mxu0 %v80
    %610 = vmatpush1.msra.mxu0 %v79
    %611 = vmatprep.subr.mxu0 %v84
    %612 = vmatpush1.msra.mxu0 %v83
    %613 = vmatprep.subr.mxu0 %v88
    %614 = vmatpush1.msra.mxu0 %v87
    %615 = vmatprep.subr.mxu0 %v92
    %616 = vmatpush1.msra.mxu0 %v91
    %617 = vmatprep.subr.mxu0 %v96
    %618 = vmatpush1.msra.mxu0 %v95
    %619 = vmatprep.subr.mxu0 %v100
    %620 = vmatpush1.msra.mxu0 %v99
    %621 = vmatprep.subr.mxu0 %v104
    %622 = vmatpush1.msra.mxu0 %v103
    %623 = vmatprep.subr.mxu0 0.0
    %624 = vmatpush1.msra.mxu0 0.0
    %625 = vmatprep.subr.mxu0 0.0
    %626 = vmatpush1.msra.mxu0 0.0
    %627 = vmatprep.subr.mxu0 0.0
    %628 = vmatpush1.msra.mxu0 0.0
    %629 = vmatprep.subr.mxu0 0.0
    %630 = vmatpush1.msra.mxu0 0.0
    %631 = vmatprep.subr.mxu0 0.0
    %632 = vmatpush1.msra.mxu0 0.0
    %633 = vmatprep.subr.mxu0 0.0
    %634 = vmatpush1.msra.mxu0 0.0
    %635 = vmatprep.subr.mxu0 0.0
    %636 = vmatpush1.msra.mxu0 0.0
    %637 = vmatprep.subr.mxu0 0.0
    %638 = vmatpush1.msra.mxu0 0.0
    %639 = vmatprep.subr.mxu0 0.0
    %640 = vmatpush1.msra.mxu0 0.0
    %641 = vmatprep.subr.mxu0 0.0
    %642 = vmatpush1.msra.mxu0 0.0
    %643 = vmatprep.subr.mxu0 0.0
    %644 = vmatpush1.msra.mxu0 0.0
    %645 = vmatprep.subr.mxu0 0.0
    %646 = vmatpush1.msra.mxu0 0.0
    %647 = vmatprep.subr.mxu0 0.0
    %648 = vmatpush1.msra.mxu0 0.0
    %649 = vmatprep.subr.mxu0 0.0
    %650 = vmatpush1.msra.mxu0 0.0
    %651 = vmatprep.subr.mxu0 0.0
    %652 = vmatpush1.msra.mxu0 0.0
    %653 = vmatprep.subr.mxu0 0.0
    %654 = vmatpush1.msra.mxu0 0.0
    %655 = vmatprep.mubr.f32.mxu0 0.0
    %656 = vmatmul.mubr.f32.gmra.mrb[0].mxu0 %v517
    %v657 = vpop.f32.mrb[0].mxu0
    %v658 = vadd.f32 0.0, %v657
    %v659 = vpop.f32.mrb[0].mxu0
    %v660 = vadd.f32 0.0, %v659
    %661 = vdwg.mxu0
    %v666 = vcombine.low %v587, %v589
    %v667 = vcombine.low %v658, %v660
    %v669 = vunpack.c.l.s4 1983009808
    %v670 = vunpack.c.0.s8 %v669
    %v671 = vlaneseq
    %v672 = vshrl.u32 %v671, 7
    %v673 = vsub.s32 %v670, %v672
    %v674 = vrot.slane %v666, %v673
    %v676 = vunpack.c.l.s4 1983009808
    %v677 = vunpack.c.0.s8 %v676
    %v678 = vlaneseq
    %v679 = vshrl.u32 %v678, 7
    %v680 = vsub.s32 %v677, %v679
    %v681 = vrot.slane %v667, %v680
    %v682 = vcombine.low %v674, %v681
    %v684 = vadd.f32 %v519, %v682
    %v685 = vxor.u32 %v684, 2147483648
    %v686 = vmul.f32 %v685, 1.442695
    %v687 = vpow.pop %v686
    %v688 = vadd.f32 %v687, 1.0
    %v689 = vrcp.pop %v688
    %v690 = vmul.f32 1.0, %v689
    %v692 = vrot.slane %v684, 2
    %v694 = vxor.u32 %v692, 2147483648
    %v695 = vmul.f32 %v694, 1.442695
    %v696 = vpow.pop %v695
    %v697 = vadd.f32 %v696, 1.0
    %v698 = vrcp.pop %v697
    %v699 = vmul.f32 1.0, %v698
    %v700 = vrot.slane %v684, 4
    %v702 = vtanh.pop %v700
    %v703 = vrot.slane %v684, 6
    %v705 = vxor.u32 %v703, 2147483648
    %v706 = vmul.f32 %v705, 1.442695
    %v707 = vpow.pop %v706
    %v708 = vadd.f32 %v707, 1.0
    %v709 = vrcp.pop %v708
    %v710 = vmul.f32 1.0, %v709
    %v711 = vmul.f32 %v699, %v515
    %v712 = vmul.f32 %v690, %v702
    %v713 = vadd.f32 %v711, %v712
    %v714 = vtanh.pop %v713
    %v715 = vmul.f32 %v710, %v714
    %s716 = scalar_lea.vmem %s0, 24
    %v717 = vld [vmem:[%s716] sm:$0xff]
    %718 = vmatprep.subr.mxu0 %v42
    %719 = vmatpush1.msra.mxu0 %v41
    %720 = vmatprep.subr.mxu0 %v46
    %721 = vmatpush1.msra.mxu0 %v45
    %722 = vmatprep.subr.mxu0 %v50
    %723 = vmatpush1.msra.mxu0 %v49
    %724 = vmatprep.subr.mxu0 %v54
    %725 = vmatpush1.msra.mxu0 %v53
    %726 = vmatprep.subr.mxu0 %v58
    %727 = vmatpush1.msra.mxu0 %v57
    %728 = vmatprep.subr.mxu0 %v62
    %729 = vmatpush1.msra.mxu0 %v61
    %730 = vmatprep.subr.mxu0 %v66
    %731 = vmatpush1.msra.mxu0 %v65
    %732 = vmatprep.subr.mxu0 %v70
    %733 = vmatpush1.msra.mxu0 %v69
    %734 = vmatprep.subr.mxu0 %v74
    %735 = vmatpush1.msra.mxu0 %v73
    %736 = vmatprep.subr.mxu0 %v78
    %737 = vmatpush1.msra.mxu0 %v77
    %738 = vmatprep.subr.mxu0 %v82
    %739 = vmatpush1.msra.mxu0 %v81
    %740 = vmatprep.subr.mxu0 %v86
    %741 = vmatpush1.msra.mxu0 %v85
    %742 = vmatprep.subr.mxu0 %v90
    %743 = vmatpush1.msra.mxu0 %v89
    %744 = vmatprep.subr.mxu0 %v94
    %745 = vmatpush1.msra.mxu0 %v93
    %746 = vmatprep.subr.mxu0 %v98
    %747 = vmatpush1.msra.mxu0 %v97
    %748 = vmatprep.subr.mxu0 %v102
    %749 = vmatpush1.msra.mxu0 %v101
    %750 = vmatprep.subr.mxu0 0.0
    %751 = vmatpush1.msra.mxu0 0.0
    %752 = vmatprep.subr.mxu0 0.0
    %753 = vmatpush1.msra.mxu0 0.0
    %754 = vmatprep.subr.mxu0 0.0
    %755 = vmatpush1.msra.mxu0 0.0
    %756 = vmatprep.subr.mxu0 0.0
    %757 = vmatpush1.msra.mxu0 0.0
    %758 = vmatprep.subr.mxu0 0.0
    %759 = vmatpush1.msra.mxu0 0.0
    %760 = vmatprep.subr.mxu0 0.0
    %761 = vmatpush1.msra.mxu0 0.0
    %762 = vmatprep.subr.mxu0 0.0
    %763 = vmatpush1.msra.mxu0 0.0
    %764 = vmatprep.subr.mxu0 0.0
    %765 = vmatpush1.msra.mxu0 0.0
    %766 = vmatprep.subr.mxu0 0.0
    %767 = vmatpush1.msra.mxu0 0.0
    %768 = vmatprep.subr.mxu0 0.0
    %769 = vmatpush1.msra.mxu0 0.0
    %770 = vmatprep.subr.mxu0 0.0
    %771 = vmatpush1.msra.mxu0 0.0
    %772 = vmatprep.subr.mxu0 0.0
    %773 = vmatpush1.msra.mxu0 0.0
    %774 = vmatprep.subr.mxu0 0.0
    %775 = vmatpush1.msra.mxu0 0.0
    %776 = vmatprep.subr.mxu0 0.0
    %777 = vmatpush1.msra.mxu0 0.0
    %778 = vmatprep.subr.mxu0 0.0
    %779 = vmatpush1.msra.mxu0 0.0
    %780 = vmatprep.subr.mxu0 0.0
    %781 = vmatpush1.msra.mxu0 0.0
    %782 = vmatprep.mubr.f32.mxu0 0.0
    %783 = vmatmul.mubr.f32.gmra.mrb[0].mxu0 %v715
    %v784 = vpop.f32.mrb[0].mxu0
    %v785 = vadd.f32 0.0, %v784
    %v786 = vpop.f32.mrb[0].mxu0
    %v787 = vadd.f32 0.0, %v786
    %788 = vdwg.mxu0
    %789 = vmatprep.subr.mxu0 %v44
    %790 = vmatpush1.msra.mxu0 %v43
    %791 = vmatprep.subr.mxu0 %v48
    %792 = vmatpush1.msra.mxu0 %v47
    %793 = vmatprep.subr.mxu0 %v52
    %794 = vmatpush1.msra.mxu0 %v51
    %795 = vmatprep.subr.mxu0 %v56
    %796 = vmatpush1.msra.mxu0 %v55
    %797 = vmatprep.subr.mxu0 %v60
    %798 = vmatpush1.msra.mxu0 %v59
    %799 = vmatprep.subr.mxu0 %v64
    %800 = vmatpush1.msra.mxu0 %v63
    %801 = vmatprep.subr.mxu0 %v68
    %802 = vmatpush1.msra.mxu0 %v67
    %803 = vmatprep.subr.mxu0 %v72
    %804 = vmatpush1.msra.mxu0 %v71
    %805 = vmatprep.subr.mxu0 %v76
    %806 = vmatpush1.msra.mxu0 %v75
    %807 = vmatprep.subr.mxu0 %v80
    %808 = vmatpush1.msra.mxu0 %v79
    %809 = vmatprep.subr.mxu0 %v84
    %810 = vmatpush1.msra.mxu0 %v83
    %811 = vmatprep.subr.mxu0 %v88
    %812 = vmatpush1.msra.mxu0 %v87
    %813 = vmatprep.subr.mxu0 %v92
    %814 = vmatpush1.msra.mxu0 %v91
    %815 = vmatprep.subr.mxu0 %v96
    %816 = vmatpush1.msra.mxu0 %v95
    %817 = vmatprep.subr.mxu0 %v100
    %818 = vmatpush1.msra.mxu0 %v99
    %819 = vmatprep.subr.mxu0 %v104
    %820 = vmatpush1.msra.mxu0 %v103
    %821 = vmatprep.subr.mxu0 0.0
    %822 = vmatpush1.msra.mxu0 0.0
    %823 = vmatprep.subr.mxu0 0.0
    %824 = vmatpush1.msra.mxu0 0.0
    %825 = vmatprep.subr.mxu0 0.0
    %826 = vmatpush1.msra.mxu0 0.0
    %827 = vmatprep.subr.mxu0 0.0
    %828 = vmatpush1.msra.mxu0 0.0
    %829 = vmatprep.subr.mxu0 0.0
    %830 = vmatpush1.msra.mxu0 0.0
    %831 = vmatprep.subr.mxu0 0.0
    %832 = vmatpush1.msra.mxu0 0.0
    %833 = vmatprep.subr.mxu0 0.0
    %834 = vmatpush1.msra.mxu0 0.0
    %835 = vmatprep.subr.mxu0 0.0
    %836 = vmatpush1.msra.mxu0 0.0
    %837 = vmatprep.subr.mxu0 0.0
    %838 = vmatpush1.msra.mxu0 0.0
    %839 = vmatprep.subr.mxu0 0.0
    %840 = vmatpush1.msra.mxu0 0.0
    %841 = vmatprep.subr.mxu0 0.0
    %842 = vmatpush1.msra.mxu0 0.0
    %843 = vmatprep.subr.mxu0 0.0
    %844 = vmatpush1.msra.mxu0 0.0
    %845 = vmatprep.subr.mxu0 0.0
    %846 = vmatpush1.msra.mxu0 0.0
    %847 = vmatprep.subr.mxu0 0.0
    %848 = vmatpush1.msra.mxu0 0.0
    %849 = vmatprep.subr.mxu0 0.0
    %850 = vmatpush1.msra.mxu0 0.0
    %851 = vmatprep.subr.mxu0 0.0
    %852 = vmatpush1.msra.mxu0 0.0
    %853 = vmatprep.mubr.f32.mxu0 0.0
    %854 = vmatmul.mubr.f32.gmra.mrb[0].mxu0 %v715
    %v855 = vpop.f32.mrb[0].mxu0
    %v856 = vadd.f32 0.0, %v855
    %v857 = vpop.f32.mrb[0].mxu0
    %v858 = vadd.f32 0.0, %v857
    %859 = vdwg.mxu0
    %v864 = vcombine.low %v785, %v787
    %v865 = vcombine.low %v856, %v858
    %v867 = vunpack.c.l.s4 1983009808
    %v868 = vunpack.c.0.s8 %v867
    %v869 = vlaneseq
    %v870 = vshrl.u32 %v869, 7
    %v871 = vsub.s32 %v868, %v870
    %v872 = vrot.slane %v864, %v871
    %v874 = vunpack.c.l.s4 1983009808
    %v875 = vunpack.c.0.s8 %v874
    %v876 = vlaneseq
    %v877 = vshrl.u32 %v876, 7
    %v878 = vsub.s32 %v875, %v877
    %v879 = vrot.slane %v865, %v878
    %v880 = vcombine.low %v872, %v879
    %v882 = vadd.f32 %v717, %v880
    %v883 = vxor.u32 %v882, 2147483648
    %v884 = vmul.f32 %v883, 1.442695
    %v885 = vpow.pop %v884
    %v886 = vadd.f32 %v885, 1.0
    %v887 = vrcp.pop %v886
    %v888 = vmul.f32 1.0, %v887
    %v890 = vrot.slane %v882, 2
    %v892 = vxor.u32 %v890, 2147483648
    %v893 = vmul.f32 %v892, 1.442695
    %v894 = vpow.pop %v893
    %v895 = vadd.f32 %v894, 1.0
    %v896 = vrcp.pop %v895
    %v897 = vmul.f32 1.0, %v896
    %v898 = vrot.slane %v882, 4
    %v900 = vtanh.pop %v898
    %v901 = vrot.slane %v882, 6
    %v903 = vxor.u32 %v901, 2147483648
    %v904 = vmul.f32 %v903, 1.442695
    %v905 = vpow.pop %v904
    %v906 = vadd.f32 %v905, 1.0
    %v907 = vrcp.pop %v906
    %v908 = vmul.f32 1.0, %v907
    %v909 = vmul.f32 %v897, %v713
    %v910 = vmul.f32 %v888, %v900
    %v911 = vadd.f32 %v909, %v910
    %v912 = vtanh.pop %v911
    %v913 = vmul.f32 %v908, %v912
    %s914 = scalar_lea.vmem %s0, 32
    %v915 = vld [vmem:[%s914] sm:$0xff]
    %916 = vmatprep.subr.mxu0 %v42
    %917 = vmatpush1.msra.mxu0 %v41
    %918 = vmatprep.subr.mxu0 %v46
    %919 = vmatpush1.msra.mxu0 %v45
    %920 = vmatprep.subr.mxu0 %v50
    %921 = vmatpush1.msra.mxu0 %v49
    %922 = vmatprep.subr.mxu0 %v54
    %923 = vmatpush1.msra.mxu0 %v53
    %924 = vmatprep.subr.mxu0 %v58
    %925 = vmatpush1.msra.mxu0 %v57
    %926 = vmatprep.subr.mxu0 %v62
    %927 = vmatpush1.msra.mxu0 %v61
    %928 = vmatprep.subr.mxu0 %v66
    %929 = vmatpush1.msra.mxu0 %v65
    %930 = vmatprep.subr.mxu0 %v70
    %931 = vmatpush1.msra.mxu0 %v69
    %932 = vmatprep.subr.mxu0 %v74
    %933 = vmatpush1.msra.mxu0 %v73
    %934 = vmatprep.subr.mxu0 %v78
    %935 = vmatpush1.msra.mxu0 %v77
    %936 = vmatprep.subr.mxu0 %v82
    %937 = vmatpush1.msra.mxu0 %v81
    %938 = vmatprep.subr.mxu0 %v86
    %939 = vmatpush1.msra.mxu0 %v85
    %940 = vmatprep.subr.mxu0 %v90
    %941 = vmatpush1.msra.mxu0 %v89
    %942 = vmatprep.subr.mxu0 %v94
    %943 = vmatpush1.msra.mxu0 %v93
    %944 = vmatprep.subr.mxu0 %v98
    %945 = vmatpush1.msra.mxu0 %v97
    %946 = vmatprep.subr.mxu0 %v102
    %947 = vmatpush1.msra.mxu0 %v101
    %948 = vmatprep.subr.mxu0 0.0
    %949 = vmatpush1.msra.mxu0 0.0
    %950 = vmatprep.subr.mxu0 0.0
    %951 = vmatpush1.msra.mxu0 0.0
    %952 = vmatprep.subr.mxu0 0.0
    %953 = vmatpush1.msra.mxu0 0.0
    %954 = vmatprep.subr.mxu0 0.0
    %955 = vmatpush1.msra.mxu0 0.0
    %956 = vmatprep.subr.mxu0 0.0
    %957 = vmatpush1.msra.mxu0 0.0
    %958 = vmatprep.subr.mxu0 0.0
    %959 = vmatpush1.msra.mxu0 0.0
    %960 = vmatprep.subr.mxu0 0.0
    %961 = vmatpush1.msra.mxu0 0.0
    %962 = vmatprep.subr.mxu0 0.0
    %963 = vmatpush1.msra.mxu0 0.0
    %964 = vmatprep.subr.mxu0 0.0
    %965 = vmatpush1.msra.mxu0 0.0
    %966 = vmatprep.subr.mxu0 0.0
    %967 = vmatpush1.msra.mxu0 0.0
    %968 = vmatprep.subr.mxu0 0.0
    %969 = vmatpush1.msra.mxu0 0.0
    %970 = vmatprep.subr.mxu0 0.0
    %971 = vmatpush1.msra.mxu0 0.0
    %972 = vmatprep.subr.mxu0 0.0
    %973 = vmatpush1.msra.mxu0 0.0
    %974 = vmatprep.subr.mxu0 0.0
    %975 = vmatpush1.msra.mxu0 0.0
    %976 = vmatprep.subr.mxu0 0.0
    %977 = vmatpush1.msra.mxu0 0.0
    %978 = vmatprep.subr.mxu0 0.0
    %979 = vmatpush1.msra.mxu0 0.0
    %980 = vmatprep.mubr.f32.mxu0 0.0
    %981 = vmatmul.mubr.f32.gmra.mrb[0].mxu0 %v913
    %v982 = vpop.f32.mrb[0].mxu0
    %v983 = vadd.f32 0.0, %v982
    %v984 = vpop.f32.mrb[0].mxu0
    %v985 = vadd.f32 0.0, %v984
    %986 = vdwg.mxu0
    %987 = vmatprep.subr.mxu0 %v44
    %988 = vmatpush1.msra.mxu0 %v43
    %989 = vmatprep.subr.mxu0 %v48
    %990 = vmatpush1.msra.mxu0 %v47
    %991 = vmatprep.subr.mxu0 %v52
    %992 = vmatpush1.msra.mxu0 %v51
    %993 = vmatprep.subr.mxu0 %v56
    %994 = vmatpush1.msra.mxu0 %v55
    %995 = vmatprep.subr.mxu0 %v60
    %996 = vmatpush1.msra.mxu0 %v59
    %997 = vmatprep.subr.mxu0 %v64
    %998 = vmatpush1.msra.mxu0 %v63
    %999 = vmatprep.subr.mxu0 %v68
    %1000 = vmatpush1.msra.mxu0 %v67
    %1001 = vmatprep.subr.mxu0 %v72
    %1002 = vmatpush1.msra.mxu0 %v71
    %1003 = vmatprep.subr.mxu0 %v76
    %1004 = vmatpush1.msra.mxu0 %v75
    %1005 = vmatprep.subr.mxu0 %v80
    %1006 = vmatpush1.msra.mxu0 %v79
    %1007 = vmatprep.subr.mxu0 %v84
    %1008 = vmatpush1.msra.mxu0 %v83
    %1009 = vmatprep.subr.mxu0 %v88
    %1010 = vmatpush1.msra.mxu0 %v87
    %1011 = vmatprep.subr.mxu0 %v92
    %1012 = vmatpush1.msra.mxu0 %v91
    %1013 = vmatprep.subr.mxu0 %v96
    %1014 = vmatpush1.msra.mxu0 %v95
    %1015 = vmatprep.subr.mxu0 %v100
    %1016 = vmatpush1.msra.mxu0 %v99
    %1017 = vmatprep.subr.mxu0 %v104
    %1018 = vmatpush1.msra.mxu0 %v103
    %1019 = vmatprep.subr.mxu0 0.0
    %1020 = vmatpush1.msra.mxu0 0.0
    %1021 = vmatprep.subr.mxu0 0.0
    %1022 = vmatpush1.msra.mxu0 0.0
    %1023 = vmatprep.subr.mxu0 0.0
    %1024 = vmatpush1.msra.mxu0 0.0
    %1025 = vmatprep.subr.mxu0 0.0
    %1026 = vmatpush1.msra.mxu0 0.0
    %1027 = vmatprep.subr.mxu0 0.0
    %1028 = vmatpush1.msra.mxu0 0.0
    %1029 = vmatprep.subr.mxu0 0.0
    %1030 = vmatpush1.msra.mxu0 0.0
    %1031 = vmatprep.subr.mxu0 0.0
    %1032 = vmatpush1.msra.mxu0 0.0
    %1033 = vmatprep.subr.mxu0 0.0
    %1034 = vmatpush1.msra.mxu0 0.0
    %1035 = vmatprep.subr.mxu0 0.0
    %1036 = vmatpush1.msra.mxu0 0.0
    %1037 = vmatprep.subr.mxu0 0.0
    %1038 = vmatpush1.msra.mxu0 0.0
    %1039 = vmatprep.subr.mxu0 0.0
    %1040 = vmatpush1.msra.mxu0 0.0
    %1041 = vmatprep.subr.mxu0 0.0
    %1042 = vmatpush1.msra.mxu0 0.0
    %1043 = vmatprep.subr.mxu0 0.0
    %1044 = vmatpush1.msra.mxu0 0.0
    %1045 = vmatprep.subr.mxu0 0.0
    %1046 = vmatpush1.msra.mxu0 0.0
    %1047 = vmatprep.subr.mxu0 0.0
    %1048 = vmatpush1.msra.mxu0 0.0
    %1049 = vmatprep.subr.mxu0 0.0
    %1050 = vmatpush1.msra.mxu0 0.0
    %1051 = vmatprep.mubr.f32.mxu0 0.0
    %1052 = vmatmul.mubr.f32.gmra.mrb[0].mxu0 %v913
    %v1053 = vpop.f32.mrb[0].mxu0
    %v1054 = vadd.f32 0.0, %v1053
    %v1055 = vpop.f32.mrb[0].mxu0
    %v1056 = vadd.f32 0.0, %v1055
    %1057 = vdwg.mxu0
    %v1062 = vcombine.low %v983, %v985
    %v1063 = vcombine.low %v1054, %v1056
    %v1065 = vunpack.c.l.s4 1983009808
    %v1066 = vunpack.c.0.s8 %v1065
    %v1067 = vlaneseq
    %v1068 = vshrl.u32 %v1067, 7
    %v1069 = vsub.s32 %v1066, %v1068
    %v1070 = vrot.slane %v1062, %v1069
    %v1072 = vunpack.c.l.s4 1983009808
    %v1073 = vunpack.c.0.s8 %v1072
    %v1074 = vlaneseq
    %v1075 = vshrl.u32 %v1074, 7
    %v1076 = vsub.s32 %v1073, %v1075
    %v1077 = vrot.slane %v1063, %v1076
    %v1078 = vcombine.low %v1070, %v1077
    %v1080 = vadd.f32 %v915, %v1078
    %v1081 = vxor.u32 %v1080, 2147483648
    %v1082 = vmul.f32 %v1081, 1.442695
    %v1083 = vpow.pop %v1082
    %v1084 = vadd.f32 %v1083, 1.0
    %v1085 = vrcp.pop %v1084
    %v1086 = vmul.f32 1.0, %v1085
    %v1088 = vrot.slane %v1080, 2
    %v1090 = vxor.u32 %v1088, 2147483648
    %v1091 = vmul.f32 %v1090, 1.442695
    %v1092 = vpow.pop %v1091
    %v1093 = vadd.f32 %v1092, 1.0
    %v1094 = vrcp.pop %v1093
    %v1095 = vmul.f32 1.0, %v1094
    %v1096 = vrot.slane %v1080, 4
    %v1098 = vtanh.pop %v1096
    %v1099 = vrot.slane %v1080, 6
    %v1101 = vxor.u32 %v1099, 2147483648
    %v1102 = vmul.f32 %v1101, 1.442695
    %v1103 = vpow.pop %v1102
    %v1104 = vadd.f32 %v1103, 1.0
    %v1105 = vrcp.pop %v1104
    %v1106 = vmul.f32 1.0, %v1105
    %v1107 = vmul.f32 %v1095, %v911
    %v1108 = vmul.f32 %v1086, %v1098
    %v1109 = vadd.f32 %v1107, %v1108
    %v1110 = vtanh.pop %v1109
    %v1111 = vmul.f32 %v1106, %v1110
    %s1112 = scalar_lea.vmem %s0, 40
    %v1113 = vld [vmem:[%s1112] sm:$0xff]
    %1114 = vmatprep.subr.mxu0 %v42
    %1115 = vmatpush1.msra.mxu0 %v41
    %1116 = vmatprep.subr.mxu0 %v46
    %1117 = vmatpush1.msra.mxu0 %v45
    %1118 = vmatprep.subr.mxu0 %v50
    %1119 = vmatpush1.msra.mxu0 %v49
    %1120 = vmatprep.subr.mxu0 %v54
    %1121 = vmatpush1.msra.mxu0 %v53
    %1122 = vmatprep.subr.mxu0 %v58
    %1123 = vmatpush1.msra.mxu0 %v57
    %1124 = vmatprep.subr.mxu0 %v62
    %1125 = vmatpush1.msra.mxu0 %v61
    %1126 = vmatprep.subr.mxu0 %v66
    %1127 = vmatpush1.msra.mxu0 %v65
    %1128 = vmatprep.subr.mxu0 %v70
    %1129 = vmatpush1.msra.mxu0 %v69
    %1130 = vmatprep.subr.mxu0 %v74
    %1131 = vmatpush1.msra.mxu0 %v73
    %1132 = vmatprep.subr.mxu0 %v78
    %1133 = vmatpush1.msra.mxu0 %v77
    %1134 = vmatprep.subr.mxu0 %v82
    %1135 = vmatpush1.msra.mxu0 %v81
    %1136 = vmatprep.subr.mxu0 %v86
    %1137 = vmatpush1.msra.mxu0 %v85
    %1138 = vmatprep.subr.mxu0 %v90
    %1139 = vmatpush1.msra.mxu0 %v89
    %1140 = vmatprep.subr.mxu0 %v94
    %1141 = vmatpush1.msra.mxu0 %v93
    %1142 = vmatprep.subr.mxu0 %v98
    %1143 = vmatpush1.msra.mxu0 %v97
    %1144 = vmatprep.subr.mxu0 %v102
    %1145 = vmatpush1.msra.mxu0 %v101
    %1146 = vmatprep.subr.mxu0 0.0
    %1147 = vmatpush1.msra.mxu0 0.0
    %1148 = vmatprep.subr.mxu0 0.0
    %1149 = vmatpush1.msra.mxu0 0.0
    %1150 = vmatprep.subr.mxu0 0.0
    %1151 = vmatpush1.msra.mxu0 0.0
    %1152 = vmatprep.subr.mxu0 0.0
    %1153 = vmatpush1.msra.mxu0 0.0
    %1154 = vmatprep.subr.mxu0 0.0
    %1155 = vmatpush1.msra.mxu0 0.0
    %1156 = vmatprep.subr.mxu0 0.0
    %1157 = vmatpush1.msra.mxu0 0.0
    %1158 = vmatprep.subr.mxu0 0.0
    %1159 = vmatpush1.msra.mxu0 0.0
    %1160 = vmatprep.subr.mxu0 0.0
    %1161 = vmatpush1.msra.mxu0 0.0
    %1162 = vmatprep.subr.mxu0 0.0
    %1163 = vmatpush1.msra.mxu0 0.0
    %1164 = vmatprep.subr.mxu0 0.0
    %1165 = vmatpush1.msra.mxu0 0.0
    %1166 = vmatprep.subr.mxu0 0.0
    %1167 = vmatpush1.msra.mxu0 0.0
    %1168 = vmatprep.subr.mxu0 0.0
    %1169 = vmatpush1.msra.mxu0 0.0
    %1170 = vmatprep.subr.mxu0 0.0
    %1171 = vmatpush1.msra.mxu0 0.0
    %1172 = vmatprep.subr.mxu0 0.0
    %1173 = vmatpush1.msra.mxu0 0.0
    %1174 = vmatprep.subr.mxu0 0.0
    %1175 = vmatpush1.msra.mxu0 0.0
    %1176 = vmatprep.subr.mxu0 0.0
    %1177 = vmatpush1.msra.mxu0 0.0
    %1178 = vmatprep.mubr.f32.mxu0 0.0
    %1179 = vmatmul.mubr.f32.gmra.mrb[0].mxu0 %v1111
    %v1180 = vpop.f32.mrb[0].mxu0
    %v1181 = vadd.f32 0.0, %v1180
    %v1182 = vpop.f32.mrb[0].mxu0
    %v1183 = vadd.f32 0.0, %v1182
    %1184 = vdwg.mxu0
    %1185 = vmatprep.subr.mxu0 %v44
    %1186 = vmatpush1.msra.mxu0 %v43
    %1187 = vmatprep.subr.mxu0 %v48
    %1188 = vmatpush1.msra.mxu0 %v47
    %1189 = vmatprep.subr.mxu0 %v52
    %1190 = vmatpush1.msra.mxu0 %v51
    %1191 = vmatprep.subr.mxu0 %v56
    %1192 = vmatpush1.msra.mxu0 %v55
    %1193 = vmatprep.subr.mxu0 %v60
    %1194 = vmatpush1.msra.mxu0 %v59
    %1195 = vmatprep.subr.mxu0 %v64
    %1196 = vmatpush1.msra.mxu0 %v63
    %1197 = vmatprep.subr.mxu0 %v68
    %1198 = vmatpush1.msra.mxu0 %v67
    %1199 = vmatprep.subr.mxu0 %v72
    %1200 = vmatpush1.msra.mxu0 %v71
    %1201 = vmatprep.subr.mxu0 %v76
    %1202 = vmatpush1.msra.mxu0 %v75
    %1203 = vmatprep.subr.mxu0 %v80
    %1204 = vmatpush1.msra.mxu0 %v79
    %1205 = vmatprep.subr.mxu0 %v84
    %1206 = vmatpush1.msra.mxu0 %v83
    %1207 = vmatprep.subr.mxu0 %v88
    %1208 = vmatpush1.msra.mxu0 %v87
    %1209 = vmatprep.subr.mxu0 %v92
    %1210 = vmatpush1.msra.mxu0 %v91
    %1211 = vmatprep.subr.mxu0 %v96
    %1212 = vmatpush1.msra.mxu0 %v95
    %1213 = vmatprep.subr.mxu0 %v100
    %1214 = vmatpush1.msra.mxu0 %v99
    %1215 = vmatprep.subr.mxu0 %v104
    %1216 = vmatpush1.msra.mxu0 %v103
    %1217 = vmatprep.subr.mxu0 0.0
    %1218 = vmatpush1.msra.mxu0 0.0
    %1219 = vmatprep.subr.mxu0 0.0
    %1220 = vmatpush1.msra.mxu0 0.0
    %1221 = vmatprep.subr.mxu0 0.0
    %1222 = vmatpush1.msra.mxu0 0.0
    %1223 = vmatprep.subr.mxu0 0.0
    %1224 = vmatpush1.msra.mxu0 0.0
    %1225 = vmatprep.subr.mxu0 0.0
    %1226 = vmatpush1.msra.mxu0 0.0
    %1227 = vmatprep.subr.mxu0 0.0
    %1228 = vmatpush1.msra.mxu0 0.0
    %1229 = vmatprep.subr.mxu0 0.0
    %1230 = vmatpush1.msra.mxu0 0.0
    %1231 = vmatprep.subr.mxu0 0.0
    %1232 = vmatpush1.msra.mxu0 0.0
    %1233 = vmatprep.subr.mxu0 0.0
    %1234 = vmatpush1.msra.mxu0 0.0
    %1235 = vmatprep.subr.mxu0 0.0
    %1236 = vmatpush1.msra.mxu0 0.0
    %1237 = vmatprep.subr.mxu0 0.0
    %1238 = vmatpush1.msra.mxu0 0.0
    %1239 = vmatprep.subr.mxu0 0.0
    %1240 = vmatpush1.msra.mxu0 0.0
    %1241 = vmatprep.subr.mxu0 0.0
    %1242 = vmatpush1.msra.mxu0 0.0
    %1243 = vmatprep.subr.mxu0 0.0
    %1244 = vmatpush1.msra.mxu0 0.0
    %1245 = vmatprep.subr.mxu0 0.0
    %1246 = vmatpush1.msra.mxu0 0.0
    %1247 = vmatprep.subr.mxu0 0.0
    %1248 = vmatpush1.msra.mxu0 0.0
    %1249 = vmatprep.mubr.f32.mxu0 0.0
    %1250 = vmatmul.mubr.f32.gmra.mrb[0].mxu0 %v1111
    %v1251 = vpop.f32.mrb[0].mxu0
    %v1252 = vadd.f32 0.0, %v1251
    %v1253 = vpop.f32.mrb[0].mxu0
    %v1254 = vadd.f32 0.0, %v1253
    %1255 = vdwg.mxu0
    %v1260 = vcombine.low %v1181, %v1183
    %v1261 = vcombine.low %v1252, %v1254
    %v1263 = vunpack.c.l.s4 1983009808
    %v1264 = vunpack.c.0.s8 %v1263
    %v1265 = vlaneseq
    %v1266 = vshrl.u32 %v1265, 7
    %v1267 = vsub.s32 %v1264, %v1266
    %v1268 = vrot.slane %v1260, %v1267
    %v1270 = vunpack.c.l.s4 1983009808
    %v1271 = vunpack.c.0.s8 %v1270
    %v1272 = vlaneseq
    %v1273 = vshrl.u32 %v1272, 7
    %v1274 = vsub.s32 %v1271, %v1273
    %v1275 = vrot.slane %v1261, %v1274
    %v1276 = vcombine.low %v1268, %v1275
    %v1278 = vadd.f32 %v1113, %v1276
    %v1279 = vxor.u32 %v1278, 2147483648
    %v1280 = vmul.f32 %v1279, 1.442695
    %v1281 = vpow.pop %v1280
    %v1282 = vadd.f32 %v1281, 1.0
    %v1283 = vrcp.pop %v1282
    %v1284 = vmul.f32 1.0, %v1283
    %v1286 = vrot.slane %v1278, 2
    %v1288 = vxor.u32 %v1286, 2147483648
    %v1289 = vmul.f32 %v1288, 1.442695
    %v1290 = vpow.pop %v1289
    %v1291 = vadd.f32 %v1290, 1.0
    %v1292 = vrcp.pop %v1291
    %v1293 = vmul.f32 1.0, %v1292
    %v1294 = vrot.slane %v1278, 4
    %v1296 = vtanh.pop %v1294
    %v1297 = vrot.slane %v1278, 6
    %v1299 = vxor.u32 %v1297, 2147483648
    %v1300 = vmul.f32 %v1299, 1.442695
    %v1301 = vpow.pop %v1300
    %v1302 = vadd.f32 %v1301, 1.0
    %v1303 = vrcp.pop %v1302
    %v1304 = vmul.f32 1.0, %v1303
    %v1305 = vmul.f32 %v1293, %v1109
    %v1306 = vmul.f32 %v1284, %v1296
    %v1307 = vadd.f32 %v1305, %v1306
    %v1308 = vtanh.pop %v1307
    %v1309 = vmul.f32 %v1304, %v1308
    %s1310 = scalar_lea.vmem %s0, 48
    %v1311 = vld [vmem:[%s1310] sm:$0xff]
    %1312 = vmatprep.subr.mxu0 %v42
    %1313 = vmatpush1.msra.mxu0 %v41
    %1314 = vmatprep.subr.mxu0 %v46
    %1315 = vmatpush1.msra.mxu0 %v45
    %1316 = vmatprep.subr.mxu0 %v50
    %1317 = vmatpush1.msra.mxu0 %v49
    %1318 = vmatprep.subr.mxu0 %v54
    %1319 = vmatpush1.msra.mxu0 %v53
    %1320 = vmatprep.subr.mxu0 %v58
    %1321 = vmatpush1.msra.mxu0 %v57
    %1322 = vmatprep.subr.mxu0 %v62
    %1323 = vmatpush1.msra.mxu0 %v61
    %1324 = vmatprep.subr.mxu0 %v66
    %1325 = vmatpush1.msra.mxu0 %v65
    %1326 = vmatprep.subr.mxu0 %v70
    %1327 = vmatpush1.msra.mxu0 %v69
    %1328 = vmatprep.subr.mxu0 %v74
    %1329 = vmatpush1.msra.mxu0 %v73
    %1330 = vmatprep.subr.mxu0 %v78
    %1331 = vmatpush1.msra.mxu0 %v77
    %1332 = vmatprep.subr.mxu0 %v82
    %1333 = vmatpush1.msra.mxu0 %v81
    %1334 = vmatprep.subr.mxu0 %v86
    %1335 = vmatpush1.msra.mxu0 %v85
    %1336 = vmatprep.subr.mxu0 %v90
    %1337 = vmatpush1.msra.mxu0 %v89
    %1338 = vmatprep.subr.mxu0 %v94
    %1339 = vmatpush1.msra.mxu0 %v93
    %1340 = vmatprep.subr.mxu0 %v98
    %1341 = vmatpush1.msra.mxu0 %v97
    %1342 = vmatprep.subr.mxu0 %v102
    %1343 = vmatpush1.msra.mxu0 %v101
    %1344 = vmatprep.subr.mxu0 0.0
    %1345 = vmatpush1.msra.mxu0 0.0
    %1346 = vmatprep.subr.mxu0 0.0
    %1347 = vmatpush1.msra.mxu0 0.0
    %1348 = vmatprep.subr.mxu0 0.0
    %1349 = vmatpush1.msra.mxu0 0.0
    %1350 = vmatprep.subr.mxu0 0.0
    %1351 = vmatpush1.msra.mxu0 0.0
    %1352 = vmatprep.subr.mxu0 0.0
    %1353 = vmatpush1.msra.mxu0 0.0
    %1354 = vmatprep.subr.mxu0 0.0
    %1355 = vmatpush1.msra.mxu0 0.0
    %1356 = vmatprep.subr.mxu0 0.0
    %1357 = vmatpush1.msra.mxu0 0.0
    %1358 = vmatprep.subr.mxu0 0.0
    %1359 = vmatpush1.msra.mxu0 0.0
    %1360 = vmatprep.subr.mxu0 0.0
    %1361 = vmatpush1.msra.mxu0 0.0
    %1362 = vmatprep.subr.mxu0 0.0
    %1363 = vmatpush1.msra.mxu0 0.0
    %1364 = vmatprep.subr.mxu0 0.0
    %1365 = vmatpush1.msra.mxu0 0.0
    %1366 = vmatprep.subr.mxu0 0.0
    %1367 = vmatpush1.msra.mxu0 0.0
    %1368 = vmatprep.subr.mxu0 0.0
    %1369 = vmatpush1.msra.mxu0 0.0
    %1370 = vmatprep.subr.mxu0 0.0
    %1371 = vmatpush1.msra.mxu0 0.0
    %1372 = vmatprep.subr.mxu0 0.0
    %1373 = vmatpush1.msra.mxu0 0.0
    %1374 = vmatprep.subr.mxu0 0.0
    %1375 = vmatpush1.msra.mxu0 0.0
    %1376 = vmatprep.mubr.f32.mxu0 0.0
    %1377 = vmatmul.mubr.f32.gmra.mrb[0].mxu0 %v1309
    %v1378 = vpop.f32.mrb[0].mxu0
    %v1379 = vadd.f32 0.0, %v1378
    %v1380 = vpop.f32.mrb[0].mxu0
    %v1381 = vadd.f32 0.0, %v1380
    %1382 = vdwg.mxu0
    %1383 = vmatprep.subr.mxu0 %v44
    %1384 = vmatpush1.msra.mxu0 %v43
    %1385 = vmatprep.subr.mxu0 %v48
    %1386 = vmatpush1.msra.mxu0 %v47
    %1387 = vmatprep.subr.mxu0 %v52
    %1388 = vmatpush1.msra.mxu0 %v51
    %1389 = vmatprep.subr.mxu0 %v56
    %1390 = vmatpush1.msra.mxu0 %v55
    %1391 = vmatprep.subr.mxu0 %v60
    %1392 = vmatpush1.msra.mxu0 %v59
    %1393 = vmatprep.subr.mxu0 %v64
    %1394 = vmatpush1.msra.mxu0 %v63
    %1395 = vmatprep.subr.mxu0 %v68
    %1396 = vmatpush1.msra.mxu0 %v67
    %1397 = vmatprep.subr.mxu0 %v72
    %1398 = vmatpush1.msra.mxu0 %v71
    %1399 = vmatprep.subr.mxu0 %v76
    %1400 = vmatpush1.msra.mxu0 %v75
    %1401 = vmatprep.subr.mxu0 %v80
    %1402 = vmatpush1.msra.mxu0 %v79
    %1403 = vmatprep.subr.mxu0 %v84
    %1404 = vmatpush1.msra.mxu0 %v83
    %1405 = vmatprep.subr.mxu0 %v88
    %1406 = vmatpush1.msra.mxu0 %v87
    %1407 = vmatprep.subr.mxu0 %v92
    %1408 = vmatpush1.msra.mxu0 %v91
    %1409 = vmatprep.subr.mxu0 %v96
    %1410 = vmatpush1.msra.mxu0 %v95
    %1411 = vmatprep.subr.mxu0 %v100
    %1412 = vmatpush1.msra.mxu0 %v99
    %1413 = vmatprep.subr.mxu0 %v104
    %1414 = vmatpush1.msra.mxu0 %v103
    %1415 = vmatprep.subr.mxu0 0.0
    %1416 = vmatpush1.msra.mxu0 0.0
    %1417 = vmatprep.subr.mxu0 0.0
    %1418 = vmatpush1.msra.mxu0 0.0
    %1419 = vmatprep.subr.mxu0 0.0
    %1420 = vmatpush1.msra.mxu0 0.0
    %1421 = vmatprep.subr.mxu0 0.0
    %1422 = vmatpush1.msra.mxu0 0.0
    %1423 = vmatprep.subr.mxu0 0.0
    %1424 = vmatpush1.msra.mxu0 0.0
    %1425 = vmatprep.subr.mxu0 0.0
    %1426 = vmatpush1.msra.mxu0 0.0
    %1427 = vmatprep.subr.mxu0 0.0
    %1428 = vmatpush1.msra.mxu0 0.0
    %1429 = vmatprep.subr.mxu0 0.0
    %1430 = vmatpush1.msra.mxu0 0.0
    %1431 = vmatprep.subr.mxu0 0.0
    %1432 = vmatpush1.msra.mxu0 0.0
    %1433 = vmatprep.subr.mxu0 0.0
    %1434 = vmatpush1.msra.mxu0 0.0
    %1435 = vmatprep.subr.mxu0 0.0
    %1436 = vmatpush1.msra.mxu0 0.0
    %1437 = vmatprep.subr.mxu0 0.0
    %1438 = vmatpush1.msra.mxu0 0.0
    %1439 = vmatprep.subr.mxu0 0.0
    %1440 = vmatpush1.msra.mxu0 0.0
    %1441 = vmatprep.subr.mxu0 0.0
    %1442 = vmatpush1.msra.mxu0 0.0
    %1443 = vmatprep.subr.mxu0 0.0
    %1444 = vmatpush1.msra.mxu0 0.0
    %1445 = vmatprep.subr.mxu0 0.0
    %1446 = vmatpush1.msra.mxu0 0.0
    %1447 = vmatprep.mubr.f32.mxu0 0.0
    %1448 = vmatmul.mubr.f32.gmra.mrb[0].mxu0 %v1309
    %v1449 = vpop.f32.mrb[0].mxu0
    %v1450 = vadd.f32 0.0, %v1449
    %v1451 = vpop.f32.mrb[0].mxu0
    %v1452 = vadd.f32 0.0, %v1451
    %1453 = vdwg.mxu0
    %v1458 = vcombine.low %v1379, %v1381
    %v1459 = vcombine.low %v1450, %v1452
    %v1461 = vunpack.c.l.s4 1983009808
    %v1462 = vunpack.c.0.s8 %v1461
    %v1463 = vlaneseq
    %v1464 = vshrl.u32 %v1463, 7
    %v1465 = vsub.s32 %v1462, %v1464
    %v1466 = vrot.slane %v1458, %v1465
    %v1468 = vunpack.c.l.s4 1983009808
    %v1469 = vunpack.c.0.s8 %v1468
    %v1470 = vlaneseq
    %v1471 = vshrl.u32 %v1470, 7
    %v1472 = vsub.s32 %v1469, %v1471
    %v1473 = vrot.slane %v1459, %v1472
    %v1474 = vcombine.low %v1466, %v1473
    %v1476 = vadd.f32 %v1311, %v1474
    %v1477 = vxor.u32 %v1476, 2147483648
    %v1478 = vmul.f32 %v1477, 1.442695
    %v1479 = vpow.pop %v1478
    %v1480 = vadd.f32 %v1479, 1.0
    %v1481 = vrcp.pop %v1480
    %v1482 = vmul.f32 1.0, %v1481
    %v1484 = vrot.slane %v1476, 2
    %v1486 = vxor.u32 %v1484, 2147483648
    %v1487 = vmul.f32 %v1486, 1.442695
    %v1488 = vpow.pop %v1487
    %v1489 = vadd.f32 %v1488, 1.0
    %v1490 = vrcp.pop %v1489
    %v1491 = vmul.f32 1.0, %v1490
    %v1492 = vrot.slane %v1476, 4
    %v1494 = vtanh.pop %v1492
    %v1495 = vrot.slane %v1476, 6
    %v1497 = vxor.u32 %v1495, 2147483648
    %v1498 = vmul.f32 %v1497, 1.442695
    %v1499 = vpow.pop %v1498
    %v1500 = vadd.f32 %v1499, 1.0
    %v1501 = vrcp.pop %v1500
    %v1502 = vmul.f32 1.0, %v1501
    %v1503 = vmul.f32 %v1491, %v1307
    %v1504 = vmul.f32 %v1482, %v1494
    %v1505 = vadd.f32 %v1503, %v1504
    %v1506 = vtanh.pop %v1505
    %v1507 = vmul.f32 %v1502, %v1506
    %s1508 = scalar_lea.vmem %s0, 56
    %v1509 = vld [vmem:[%s1508] sm:$0xff]
    %1510 = vmatprep.subr.mxu0 %v42
    %1511 = vmatpush1.msra.mxu0 %v41
    %1512 = vmatprep.subr.mxu0 %v46
    %1513 = vmatpush1.msra.mxu0 %v45
    %1514 = vmatprep.subr.mxu0 %v50
    %1515 = vmatpush1.msra.mxu0 %v49
    %1516 = vmatprep.subr.mxu0 %v54
    %1517 = vmatpush1.msra.mxu0 %v53
    %1518 = vmatprep.subr.mxu0 %v58
    %1519 = vmatpush1.msra.mxu0 %v57
    %1520 = vmatprep.subr.mxu0 %v62
    %1521 = vmatpush1.msra.mxu0 %v61
    %1522 = vmatprep.subr.mxu0 %v66
    %1523 = vmatpush1.msra.mxu0 %v65
    %1524 = vmatprep.subr.mxu0 %v70
    %1525 = vmatpush1.msra.mxu0 %v69
    %1526 = vmatprep.subr.mxu0 %v74
    %1527 = vmatpush1.msra.mxu0 %v73
    %1528 = vmatprep.subr.mxu0 %v78
    %1529 = vmatpush1.msra.mxu0 %v77
    %1530 = vmatprep.subr.mxu0 %v82
    %1531 = vmatpush1.msra.mxu0 %v81
    %1532 = vmatprep.subr.mxu0 %v86
    %1533 = vmatpush1.msra.mxu0 %v85
    %1534 = vmatprep.subr.mxu0 %v90
    %1535 = vmatpush1.msra.mxu0 %v89
    %1536 = vmatprep.subr.mxu0 %v94
    %1537 = vmatpush1.msra.mxu0 %v93
    %1538 = vmatprep.subr.mxu0 %v98
    %1539 = vmatpush1.msra.mxu0 %v97
    %1540 = vmatprep.subr.mxu0 %v102
    %1541 = vmatpush1.msra.mxu0 %v101
    %1542 = vmatprep.subr.mxu0 0.0
    %1543 = vmatpush1.msra.mxu0 0.0
    %1544 = vmatprep.subr.mxu0 0.0
    %1545 = vmatpush1.msra.mxu0 0.0
    %1546 = vmatprep.subr.mxu0 0.0
    %1547 = vmatpush1.msra.mxu0 0.0
    %1548 = vmatprep.subr.mxu0 0.0
    %1549 = vmatpush1.msra.mxu0 0.0
    %1550 = vmatprep.subr.mxu0 0.0
    %1551 = vmatpush1.msra.mxu0 0.0
    %1552 = vmatprep.subr.mxu0 0.0
    %1553 = vmatpush1.msra.mxu0 0.0
    %1554 = vmatprep.subr.mxu0 0.0
    %1555 = vmatpush1.msra.mxu0 0.0
    %1556 = vmatprep.subr.mxu0 0.0
    %1557 = vmatpush1.msra.mxu0 0.0
    %1558 = vmatprep.subr.mxu0 0.0
    %1559 = vmatpush1.msra.mxu0 0.0
    %1560 = vmatprep.subr.mxu0 0.0
    %1561 = vmatpush1.msra.mxu0 0.0
    %1562 = vmatprep.subr.mxu0 0.0
    %1563 = vmatpush1.msra.mxu0 0.0
    %1564 = vmatprep.subr.mxu0 0.0
    %1565 = vmatpush1.msra.mxu0 0.0
    %1566 = vmatprep.subr.mxu0 0.0
    %1567 = vmatpush1.msra.mxu0 0.0
    %1568 = vmatprep.subr.mxu0 0.0
    %1569 = vmatpush1.msra.mxu0 0.0
    %1570 = vmatprep.subr.mxu0 0.0
    %1571 = vmatpush1.msra.mxu0 0.0
    %1572 = vmatprep.subr.mxu0 0.0
    %1573 = vmatpush1.msra.mxu0 0.0
    %1574 = vmatprep.mubr.f32.mxu0 0.0
    %1575 = vmatmul.mubr.f32.gmra.mrb[0].mxu0 %v1507
    %v1576 = vpop.f32.mrb[0].mxu0
    %v1577 = vadd.f32 0.0, %v1576
    %v1578 = vpop.f32.mrb[0].mxu0
    %v1579 = vadd.f32 0.0, %v1578
    %1580 = vdwg.mxu0
    %1581 = vmatprep.subr.mxu0 %v44
    %1582 = vmatpush1.msra.mxu0 %v43
    %1583 = vmatprep.subr.mxu0 %v48
    %1584 = vmatpush1.msra.mxu0 %v47
    %1585 = vmatprep.subr.mxu0 %v52
    %1586 = vmatpush1.msra.mxu0 %v51
    %1587 = vmatprep.subr.mxu0 %v56
    %1588 = vmatpush1.msra.mxu0 %v55
    %1589 = vmatprep.subr.mxu0 %v60
    %1590 = vmatpush1.msra.mxu0 %v59
    %1591 = vmatprep.subr.mxu0 %v64
    %1592 = vmatpush1.msra.mxu0 %v63
    %1593 = vmatprep.subr.mxu0 %v68
    %1594 = vmatpush1.msra.mxu0 %v67
    %1595 = vmatprep.subr.mxu0 %v72
    %1596 = vmatpush1.msra.mxu0 %v71
    %1597 = vmatprep.subr.mxu0 %v76
    %1598 = vmatpush1.msra.mxu0 %v75
    %1599 = vmatprep.subr.mxu0 %v80
    %1600 = vmatpush1.msra.mxu0 %v79
    %1601 = vmatprep.subr.mxu0 %v84
    %1602 = vmatpush1.msra.mxu0 %v83
    %1603 = vmatprep.subr.mxu0 %v88
    %1604 = vmatpush1.msra.mxu0 %v87
    %1605 = vmatprep.subr.mxu0 %v92
    %1606 = vmatpush1.msra.mxu0 %v91
    %1607 = vmatprep.subr.mxu0 %v96
    %1608 = vmatpush1.msra.mxu0 %v95
    %1609 = vmatprep.subr.mxu0 %v100
    %1610 = vmatpush1.msra.mxu0 %v99
    %1611 = vmatprep.subr.mxu0 %v104
    %1612 = vmatpush1.msra.mxu0 %v103
    %1613 = vmatprep.subr.mxu0 0.0
    %1614 = vmatpush1.msra.mxu0 0.0
    %1615 = vmatprep.subr.mxu0 0.0
    %1616 = vmatpush1.msra.mxu0 0.0
    %1617 = vmatprep.subr.mxu0 0.0
    %1618 = vmatpush1.msra.mxu0 0.0
    %1619 = vmatprep.subr.mxu0 0.0
    %1620 = vmatpush1.msra.mxu0 0.0
    %1621 = vmatprep.subr.mxu0 0.0
    %1622 = vmatpush1.msra.mxu0 0.0
    %1623 = vmatprep.subr.mxu0 0.0
    %1624 = vmatpush1.msra.mxu0 0.0
    %1625 = vmatprep.subr.mxu0 0.0
    %1626 = vmatpush1.msra.mxu0 0.0
    %1627 = vmatprep.subr.mxu0 0.0
    %1628 = vmatpush1.msra.mxu0 0.0
    %1629 = vmatprep.subr.mxu0 0.0
    %1630 = vmatpush1.msra.mxu0 0.0
    %1631 = vmatprep.subr.mxu0 0.0
    %1632 = vmatpush1.msra.mxu0 0.0
    %1633 = vmatprep.subr.mxu0 0.0
    %1634 = vmatpush1.msra.mxu0 0.0
    %1635 = vmatprep.subr.mxu0 0.0
    %1636 = vmatpush1.msra.mxu0 0.0
    %1637 = vmatprep.subr.mxu0 0.0
    %1638 = vmatpush1.msra.mxu0 0.0
    %1639 = vmatprep.subr.mxu0 0.0
    %1640 = vmatpush1.msra.mxu0 0.0
    %1641 = vmatprep.subr.mxu0 0.0
    %1642 = vmatpush1.msra.mxu0 0.0
    %1643 = vmatprep.subr.mxu0 0.0
    %1644 = vmatpush1.msra.mxu0 0.0
    %1645 = vmatprep.mubr.f32.mxu0 0.0
    %1646 = vmatmul.mubr.f32.gmra.mrb[0].mxu0 %v1507
    %v1647 = vpop.f32.mrb[0].mxu0
    %v1648 = vadd.f32 0.0, %v1647
    %v1649 = vpop.f32.mrb[0].mxu0
    %v1650 = vadd.f32 0.0, %v1649
    %1651 = vdwg.mxu0
    %v1656 = vcombine.low %v1577, %v1579
    %v1657 = vcombine.low %v1648, %v1650
    %v1659 = vunpack.c.l.s4 1983009808
    %v1660 = vunpack.c.0.s8 %v1659
    %v1661 = vlaneseq
    %v1662 = vshrl.u32 %v1661, 7
    %v1663 = vsub.s32 %v1660, %v1662
    %v1664 = vrot.slane %v1656, %v1663
    %v1666 = vunpack.c.l.s4 1983009808
    %v1667 = vunpack.c.0.s8 %v1666
    %v1668 = vlaneseq
    %v1669 = vshrl.u32 %v1668, 7
    %v1670 = vsub.s32 %v1667, %v1669
    %v1671 = vrot.slane %v1657, %v1670
    %v1672 = vcombine.low %v1664, %v1671
    %v1674 = vadd.f32 %v1509, %v1672
    %v1675 = vxor.u32 %v1674, 2147483648
    %v1676 = vmul.f32 %v1675, 1.442695
    %v1677 = vpow.pop %v1676
    %v1678 = vadd.f32 %v1677, 1.0
    %v1679 = vrcp.pop %v1678
    %v1680 = vmul.f32 1.0, %v1679
    %v1682 = vrot.slane %v1674, 2
    %v1684 = vxor.u32 %v1682, 2147483648
    %v1685 = vmul.f32 %v1684, 1.442695
    %v1686 = vpow.pop %v1685
    %v1687 = vadd.f32 %v1686, 1.0
    %v1688 = vrcp.pop %v1687
    %v1689 = vmul.f32 1.0, %v1688
    %v1690 = vrot.slane %v1674, 4
    %v1692 = vtanh.pop %v1690
    %v1693 = vrot.slane %v1674, 6
    %v1695 = vxor.u32 %v1693, 2147483648
    %v1696 = vmul.f32 %v1695, 1.442695
    %v1697 = vpow.pop %v1696
    %v1698 = vadd.f32 %v1697, 1.0
    %v1699 = vrcp.pop %v1698
    %v1700 = vmul.f32 1.0, %v1699
    %v1701 = vmul.f32 %v1689, %v1505
    %v1702 = vmul.f32 %v1680, %v1692
    %v1703 = vadd.f32 %v1701, %v1702
    %v1704 = vtanh.pop %v1703
    %v1705 = vmul.f32 %v1700, %v1704
    %v1706 = vld [vmem:[%s1] sm:$0x3]
    %1708 = vset.pattern.permute.xlu0 0
    %1709 = vperm.xlu0 %1708, %v1706
    %v1710 = vpop.permute.xlu0 %1709
    %v1713 = vlaneseq
    %v1714 = vshrl.u32 %v1713, 7
    %v1715 = vsub.s32 0, %v1714
    %v1716 = vrot.slane %v40, %v1715
    %v1717 = vlaneseq
    %v1718 = vshrl.u32 %v1717, 7
    %v1719 = vsub.s32 2, %v1718
    %v1720 = vrot.slane %v40, %v1719
    %v1721 = vlaneseq
    %v1722 = vshrl.u32 %v1721, 7
    %v1723 = vsub.s32 4, %v1722
    %v1724 = vrot.slane %v40, %v1723
    %v1725 = vlaneseq
    %v1726 = vshrl.u32 %v1725, 7
    %v1727 = vsub.s32 6, %v1726
    %v1728 = vrot.slane %v40, %v1727
    %v1733 = vlaneseq
    %v1734 = vshrl.u32 %v1733, 7
    %v1735 = vsub.s32 0, %v1734
    %v1736 = vrot.slane %v1716, %v1735
    %v1737 = vlaneseq
    %v1738 = vshrl.u32 %v1737, 7
    %v1739 = vsub.s32 0, %v1738
    %v1740 = vrot.slane %v1720, %v1739
    %v1741 = vlaneseq
    %v1742 = vshrl.u32 %v1741, 7
    %v1743 = vsub.s32 0, %v1742
    %v1744 = vrot.slane %v1724, %v1743
    %v1745 = vlaneseq
    %v1746 = vshrl.u32 %v1745, 7
    %v1747 = vsub.s32 0, %v1746
    %v1748 = vrot.slane %v1728, %v1747
    %v1749 = vmul.f32 %v1710, %v1736
    %v1750 = vmul.f32 %v1710, %v1740
    %v1751 = vmul.f32 %v1710, %v1744
    %v1752 = vmul.f32 %v1710, %v1748
    %1753 = vset.pattern.permute.xlu0 1
    %1754 = vperm.xlu0 %1753, %v1706
    %v1755 = vpop.permute.xlu0 %1754
    %v1757 = vlaneseq
    %v1758 = vshrl.u32 %v1757, 7
    %v1759 = vsub.s32 1, %v1758
    %v1760 = vrot.slane %v40, %v1759
    %v1761 = vlaneseq
    %v1762 = vshrl.u32 %v1761, 7
    %v1763 = vsub.s32 3, %v1762
    %v1764 = vrot.slane %v40, %v1763
    %v1765 = vlaneseq
    %v1766 = vshrl.u32 %v1765, 7
    %v1767 = vsub.s32 5, %v1766
    %v1768 = vrot.slane %v40, %v1767
    %v1769 = vlaneseq
    %v1770 = vshrl.u32 %v1769, 7
    %v1771 = vsub.s32 7, %v1770
    %v1772 = vrot.slane %v40, %v1771
    %v1777 = vlaneseq
    %v1778 = vshrl.u32 %v1777, 7
    %v1779 = vsub.s32 1, %v1778
    %v1780 = vrot.slane %v1760, %v1779
    %v1781 = vlaneseq
    %v1782 = vshrl.u32 %v1781, 7
    %v1783 = vsub.s32 1, %v1782
    %v1784 = vrot.slane %v1764, %v1783
    %v1785 = vlaneseq
    %v1786 = vshrl.u32 %v1785, 7
    %v1787 = vsub.s32 1, %v1786
    %v1788 = vrot.slane %v1768, %v1787
    %v1789 = vlaneseq
    %v1790 = vshrl.u32 %v1789, 7
    %v1791 = vsub.s32 1, %v1790
    %v1792 = vrot.slane %v1772, %v1791
    %v1793 = vmul.f32 %v1755, %v1780
    %v1794 = vmul.f32 %v1755, %v1784
    %v1795 = vmul.f32 %v1755, %v1788
    %v1796 = vmul.f32 %v1755, %v1792
    %v1797 = vadd.f32 %v1749, %v1793
    %v1798 = vadd.f32 %v1750, %v1794
    %v1799 = vadd.f32 %v1751, %v1795
    %v1800 = vadd.f32 %v1752, %v1796
    %v1802 = vlaneseq
    %v1803 = vshrl.u32 %v1802, 7
    %v1804 = vsub.s32 0, %v1803
    %v1805 = vrot.slane %v105, %v1804
    %v1806 = vlaneseq
    %v1807 = vshrl.u32 %v1806, 7
    %v1808 = vsub.s32 1, %v1807
    %v1809 = vrot.slane %v105, %v1808
    %v1810 = vlaneseq
    %v1811 = vshrl.u32 %v1810, 7
    %v1812 = vsub.s32 2, %v1811
    %v1813 = vrot.slane %v105, %v1812
    %v1814 = vlaneseq
    %v1815 = vshrl.u32 %v1814, 7
    %v1816 = vsub.s32 3, %v1815
    %v1817 = vrot.slane %v105, %v1816
    %v1822 = vadd.f32 %v1797, %v1805
    %v1823 = vadd.f32 %v1798, %v1809
    %v1824 = vadd.f32 %v1799, %v1813
    %v1825 = vadd.f32 %v1800, %v1817
    %1826 = vmatprep.subr.mxu0 %v42
    %1827 = vmatpush1.msra.mxu0 %v41
    %1828 = vmatprep.subr.mxu0 %v46
    %1829 = vmatpush1.msra.mxu0 %v45
    %1830 = vmatprep.subr.mxu0 %v50
    %1831 = vmatpush1.msra.mxu0 %v49
    %1832 = vmatprep.subr.mxu0 %v54
    %1833 = vmatpush1.msra.mxu0 %v53
    %1834 = vmatprep.subr.mxu0 %v58
    %1835 = vmatpush1.msra.mxu0 %v57
    %1836 = vmatprep.subr.mxu0 %v62
    %1837 = vmatpush1.msra.mxu0 %v61
    %1838 = vmatprep.subr.mxu0 %v66
    %1839 = vmatpush1.msra.mxu0 %v65
    %1840 = vmatprep.subr.mxu0 %v70
    %1841 = vmatpush1.msra.mxu0 %v69
    %1842 = vmatprep.subr.mxu0 %v74
    %1843 = vmatpush1.msra.mxu0 %v73
    %1844 = vmatprep.subr.mxu0 %v78
    %1845 = vmatpush1.msra.mxu0 %v77
    %1846 = vmatprep.subr.mxu0 %v82
    %1847 = vmatpush1.msra.mxu0 %v81
    %1848 = vmatprep.subr.mxu0 %v86
    %1849 = vmatpush1.msra.mxu0 %v85
    %1850 = vmatprep.subr.mxu0 %v90
    %1851 = vmatpush1.msra.mxu0 %v89
    %1852 = vmatprep.subr.mxu0 %v94
    %1853 = vmatpush1.msra.mxu0 %v93
    %1854 = vmatprep.subr.mxu0 %v98
    %1855 = vmatpush1.msra.mxu0 %v97
    %1856 = vmatprep.subr.mxu0 %v102
    %1857 = vmatpush1.msra.mxu0 %v101
    %1858 = vmatprep.subr.mxu0 0.0
    %1859 = vmatpush1.msra.mxu0 0.0
    %1860 = vmatprep.subr.mxu0 0.0
    %1861 = vmatpush1.msra.mxu0 0.0
    %1862 = vmatprep.subr.mxu0 0.0
    %1863 = vmatpush1.msra.mxu0 0.0
    %1864 = vmatprep.subr.mxu0 0.0
    %1865 = vmatpush1.msra.mxu0 0.0
    %1866 = vmatprep.subr.mxu0 0.0
    %1867 = vmatpush1.msra.mxu0 0.0
    %1868 = vmatprep.subr.mxu0 0.0
    %1869 = vmatpush1.msra.mxu0 0.0
    %1870 = vmatprep.subr.mxu0 0.0
    %1871 = vmatpush1.msra.mxu0 0.0
    %1872 = vmatprep.subr.mxu0 0.0
    %1873 = vmatpush1.msra.mxu0 0.0
    %1874 = vmatprep.subr.mxu0 0.0
    %1875 = vmatpush1.msra.mxu0 0.0
    %1876 = vmatprep.subr.mxu0 0.0
    %1877 = vmatpush1.msra.mxu0 0.0
    %1878 = vmatprep.subr.mxu0 0.0
    %1879 = vmatpush1.msra.mxu0 0.0
    %1880 = vmatprep.subr.mxu0 0.0
    %1881 = vmatpush1.msra.mxu0 0.0
    %1882 = vmatprep.subr.mxu0 0.0
    %1883 = vmatpush1.msra.mxu0 0.0
    %1884 = vmatprep.subr.mxu0 0.0
    %1885 = vmatpush1.msra.mxu0 0.0
    %1886 = vmatprep.subr.mxu0 0.0
    %1887 = vmatpush1.msra.mxu0 0.0
    %1888 = vmatprep.subr.mxu0 0.0
    %1889 = vmatpush1.msra.mxu0 0.0
    %1890 = vmatprep.mubr.f32.mxu0 0.0
    %1891 = vmatmul.mubr.f32.gmra.mrb[0].mxu0 %v1705
    %v1892 = vpop.f32.mrb[0].mxu0
    %v1893 = vadd.f32 0.0, %v1892
    %v1894 = vpop.f32.mrb[0].mxu0
    %v1895 = vadd.f32 0.0, %v1894
    %1896 = vdwg.mxu0
    %1897 = vmatprep.subr.mxu0 %v44
    %1898 = vmatpush1.msra.mxu0 %v43
    %1899 = vmatprep.subr.mxu0 %v48
    %1900 = vmatpush1.msra.mxu0 %v47
    %1901 = vmatprep.subr.mxu0 %v52
    %1902 = vmatpush1.msra.mxu0 %v51
    %1903 = vmatprep.subr.mxu0 %v56
    %1904 = vmatpush1.msra.mxu0 %v55
    %1905 = vmatprep.subr.mxu0 %v60
    %1906 = vmatpush1.msra.mxu0 %v59
    %1907 = vmatprep.subr.mxu0 %v64
    %1908 = vmatpush1.msra.mxu0 %v63
    %1909 = vmatprep.subr.mxu0 %v68
    %1910 = vmatpush1.msra.mxu0 %v67
    %1911 = vmatprep.subr.mxu0 %v72
    %1912 = vmatpush1.msra.mxu0 %v71
    %1913 = vmatprep.subr.mxu0 %v76
    %1914 = vmatpush1.msra.mxu0 %v75
    %1915 = vmatprep.subr.mxu0 %v80
    %1916 = vmatpush1.msra.mxu0 %v79
    %1917 = vmatprep.subr.mxu0 %v84
    %1918 = vmatpush1.msra.mxu0 %v83
    %1919 = vmatprep.subr.mxu0 %v88
    %1920 = vmatpush1.msra.mxu0 %v87
    %1921 = vmatprep.subr.mxu0 %v92
    %1922 = vmatpush1.msra.mxu0 %v91
    %1923 = vmatprep.subr.mxu0 %v96
    %1924 = vmatpush1.msra.mxu0 %v95
    %1925 = vmatprep.subr.mxu0 %v100
    %1926 = vmatpush1.msra.mxu0 %v99
    %1927 = vmatprep.subr.mxu0 %v104
    %1928 = vmatpush1.msra.mxu0 %v103
    %1929 = vmatprep.subr.mxu0 0.0
    %1930 = vmatpush1.msra.mxu0 0.0
    %1931 = vmatprep.subr.mxu0 0.0
    %1932 = vmatpush1.msra.mxu0 0.0
    %1933 = vmatprep.subr.mxu0 0.0
    %1934 = vmatpush1.msra.mxu0 0.0
    %1935 = vmatprep.subr.mxu0 0.0
    %1936 = vmatpush1.msra.mxu0 0.0
    %1937 = vmatprep.subr.mxu0 0.0
    %1938 = vmatpush1.msra.mxu0 0.0
    %1939 = vmatprep.subr.mxu0 0.0
    %1940 = vmatpush1.msra.mxu0 0.0
    %1941 = vmatprep.subr.mxu0 0.0
    %1942 = vmatpush1.msra.mxu0 0.0
    %1943 = vmatprep.subr.mxu0 0.0
    %1944 = vmatpush1.msra.mxu0 0.0
    %1945 = vmatprep.subr.mxu0 0.0
    %1946 = vmatpush1.msra.mxu0 0.0
    %1947 = vmatprep.subr.mxu0 0.0
    %1948 = vmatpush1.msra.mxu0 0.0
    %1949 = vmatprep.subr.mxu0 0.0
    %1950 = vmatpush1.msra.mxu0 0.0
    %1951 = vmatprep.subr.mxu0 0.0
    %1952 = vmatpush1.msra.mxu0 0.0
    %1953 = vmatprep.subr.mxu0 0.0
    %1954 = vmatpush1.msra.mxu0 0.0
    %1955 = vmatprep.subr.mxu0 0.0
    %1956 = vmatpush1.msra.mxu0 0.0
    %1957 = vmatprep.subr.mxu0 0.0
    %1958 = vmatpush1.msra.mxu0 0.0
    %1959 = vmatprep.subr.mxu0 0.0
    %1960 = vmatpush1.msra.mxu0 0.0
    %1961 = vmatprep.mubr.f32.mxu0 0.0
    %1962 = vmatmul.mubr.f32.gmra.mrb[0].mxu0 %v1705
    %v1963 = vpop.f32.mrb[0].mxu0
    %v1964 = vadd.f32 0.0, %v1963
    %v1965 = vpop.f32.mrb[0].mxu0
    %v1966 = vadd.f32 0.0, %v1965
    %1967 = vdwg.mxu0
    %v1968 = vadd.f32 %v1822, %v1893
    %v1969 = vadd.f32 %v1823, %v1895
    %v1970 = vadd.f32 %v1824, %v1964
    %v1971 = vadd.f32 %v1825, %v1966
    %v1972 = vxor.u32 %v1968, 2147483648
    %v1973 = vmul.f32 %v1972, 1.442695
    %v1974 = vpow.pop %v1973
    %v1975 = vadd.f32 %v1974, 1.0
    %v1976 = vrcp.pop %v1975
    %v1977 = vmul.f32 1.0, %v1976
    %v1978 = vxor.u32 %v1969, 2147483648
    %v1979 = vmul.f32 %v1978, 1.442695
    %v1980 = vpow.pop %v1979
    %v1981 = vadd.f32 %v1980, 1.0
    %v1982 = vrcp.pop %v1981
    %v1983 = vmul.f32 1.0, %v1982
    %v1984 = vtanh.pop %v1970
    %v1985 = vxor.u32 %v1971, 2147483648
    %v1986 = vmul.f32 %v1985, 1.442695
    %v1987 = vpow.pop %v1986
    %v1988 = vadd.f32 %v1987, 1.0
    %v1989 = vrcp.pop %v1988
    %v1990 = vmul.f32 1.0, %v1989
    %v1991 = vmul.f32 %v1983, %v1703
    %v1992 = vmul.f32 %v1977, %v1984
    %v1993 = vadd.f32 %v1991, %v1992
    %v1994 = vtanh.pop %v1993
    %v1995 = vmul.f32 %v1990, %v1994
    %v1997 = vlaneseq
    %v1998 = vshrl.u32 %v1997, 7
    %v1999 = vsub.s32 0, %v1998
    %v2000 = vrot.slane %v122, %v1999
    %2002 = vmatprep.subr.mxu0 0.0
    %2003 = vmatpush1.msra.mxu0 %v106
    %2004 = vmatprep.subr.mxu0 0.0
    %2005 = vmatpush1.msra.mxu0 %v107
    %2006 = vmatprep.subr.mxu0 0.0
    %2007 = vmatpush1.msra.mxu0 %v108
    %2008 = vmatprep.subr.mxu0 0.0
    %2009 = vmatpush1.msra.mxu0 %v109
    %2010 = vmatprep.subr.mxu0 0.0
    %2011 = vmatpush1.msra.mxu0 %v110
    %2012 = vmatprep.subr.mxu0 0.0
    %2013 = vmatpush1.msra.mxu0 %v111
    %2014 = vmatprep.subr.mxu0 0.0
    %2015 = vmatpush1.msra.mxu0 %v112
    %2016 = vmatprep.subr.mxu0 0.0
    %2017 = vmatpush1.msra.mxu0 %v113
    %2018 = vmatprep.subr.mxu0 0.0
    %2019 = vmatpush1.msra.mxu0 %v114
    %2020 = vmatprep.subr.mxu0 0.0
    %2021 = vmatpush1.msra.mxu0 %v115
    %2022 = vmatprep.subr.mxu0 0.0
    %2023 = vmatpush1.msra.mxu0 %v116
    %2024 = vmatprep.subr.mxu0 0.0
    %2025 = vmatpush1.msra.mxu0 %v117
    %2026 = vmatprep.subr.mxu0 0.0
    %2027 = vmatpush1.msra.mxu0 %v118
    %2028 = vmatprep.subr.mxu0 0.0
    %2029 = vmatpush1.msra.mxu0 %v119
    %2030 = vmatprep.subr.mxu0 0.0
    %2031 = vmatpush1.msra.mxu0 %v120
    %2032 = vmatprep.subr.mxu0 0.0
    %2033 = vmatpush1.msra.mxu0 %v121
    %2034 = vmatprep.subr.mxu0 0.0
    %2035 = vmatpush1.msra.mxu0 0.0
    %2036 = vmatprep.subr.mxu0 0.0
    %2037 = vmatpush1.msra.mxu0 0.0
    %2038 = vmatprep.subr.mxu0 0.0
    %2039 = vmatpush1.msra.mxu0 0.0
    %2040 = vmatprep.subr.mxu0 0.0
    %2041 = vmatpush1.msra.mxu0 0.0
    %2042 = vmatprep.subr.mxu0 0.0
    %2043 = vmatpush1.msra.mxu0 0.0
    %2044 = vmatprep.subr.mxu0 0.0
    %2045 = vmatpush1.msra.mxu0 0.0
    %2046 = vmatprep.subr.mxu0 0.0
    %2047 = vmatpush1.msra.mxu0 0.0
    %2048 = vmatprep.subr.mxu0 0.0
    %2049 = vmatpush1.msra.mxu0 0.0
    %2050 = vmatprep.subr.mxu0 0.0
    %2051 = vmatpush1.msra.mxu0 0.0
    %2052 = vmatprep.subr.mxu0 0.0
    %2053 = vmatpush1.msra.mxu0 0.0
    %2054 = vmatprep.subr.mxu0 0.0
    %2055 = vmatpush1.msra.mxu0 0.0
    %2056 = vmatprep.subr.mxu0 0.0
    %2057 = vmatpush1.msra.mxu0 0.0
    %2058 = vmatprep.subr.mxu0 0.0
    %2059 = vmatpush1.msra.mxu0 0.0
    %2060 = vmatprep.subr.mxu0 0.0
    %2061 = vmatpush1.msra.mxu0 0.0
    %2062 = vmatprep.subr.mxu0 0.0
    %2063 = vmatpush1.msra.mxu0 0.0
    %2064 = vmatprep.subr.mxu0 0.0
    %2065 = vmatpush1.msra.mxu0 0.0
    %2066 = vmatprep.mubr.f32.mxu0 0.0
    %2067 = vmatmul.mubr.f32.gmra.mrb[0].mxu0 %v1995
    %v2068 = vpop.f32.mrb[0].mxu0
    %v2069 = vadd.f32 %v2000, %v2068
    %v2070 = vpop.f32.mrb[0].mxu0
    %2071 = vdwg.mxu0
    %2073 = vrot.lane.b32.xlu0 %v2069, 126
    %v2074 = vpop.permute.xlu0 %2073
    %v2076 = vmul.f32 %v2069, %v2074
    %v2077 = vadd.f32 %v1706, %v2076
    %vm2078 = vcmp.gt.f32.partialorder %v2077, 1.0
    %v2079 = vsel %vm2078, 1, 0
    %v2080 = vcvt.s32.f32 %v2079
    %vm2081 = vcmp.le.f32.partialorder %v2077, 1.0
    %vm2082 = vcmp.ge.f32.partialorder %v2077, 0.0
    %vm2083 = vmand %vm2081, %vm2082
    %v2084 = vsel %vm2083, 1, 0
    %v2085 = vcvt.s32.f32 %v2084
    %vm2086 = vcmp.lt.f32.partialorder %v2077, 0.0
    %v2087 = vsel %vm2086, 1, 0
    %v2088 = vcvt.s32.f32 %v2087
    %v2089 = vsub.f32 %v2077, 1.0
    %v2090 = vsub.f32 1.0, %v2089
    %v2091 = vmul.f32 %v2080, %v2090
    %v2092 = vmul.f32 %v2085, %v2077
    %v2093 = vadd.f32 %v2091, %v2092
    %v2094 = vsub.f32 0.0, %v2077
    %v2095 = vmul.f32 %v2088, %v2094
    %v2096 = vadd.f32 %v2093, %v2095
    %v2097 = vsub.f32 %v2077, 0.5
    %2099 = vrot.lane.b32.xlu0 %v2097, 1
    %v2100 = vpop.permute.xlu0 %2099
    %v2102 = vmul.f32 %v2080, %v2100
    %2104 = vrot.lane.b32.xlu0 %v2077, 1
    %v2105 = vpop.permute.xlu0 %2104
    %v2107 = vmul.f32 %v2085, %v2105
    %v2108 = vadd.f32 %v2102, %v2107
    %v2109 = vmul.f32 %v2088, %v2100
    %v2110 = vadd.f32 %v2108, %v2109
    %vm2111 = vcmp.lt.f32.partialorder %v2110, 0.0
    %v2112 = vceil.f32 %v2110
    %v2113 = vfloor.f32 %v2110
    %v2114 = vsel %vm2111, %v2112, %v2113
    %v2115 = vsub.f32 %v2110, %v2114
    %2117 = vrot.lane.b32.xlu0 %v2115, 127
    %v2118 = vpop.permute.xlu0 %2117
    %vm2120 = vcmask 7168
    %v2121 = vsel %vm2120, %v2118, %v2096
    %2123 = vset.pattern.permute.xlu0 0
    %2124 = vperm.xlu0 %2123, %v2121
    %v2125 = vpop.permute.xlu0 %2124
    %v2127 = vmul.f32 %v2125, %v1736
    %v2128 = vmul.f32 %v2125, %v1740
    %v2129 = vmul.f32 %v2125, %v1744
    %v2130 = vmul.f32 %v2125, %v1748
    %2131 = vset.pattern.permute.xlu0 1
    %2132 = vperm.xlu0 %2131, %v2121
    %v2133 = vpop.permute.xlu0 %2132
    %v2135 = vmul.f32 %v2133, %v1780
    %v2136 = vmul.f32 %v2133, %v1784
    %v2137 = vmul.f32 %v2133, %v1788
    %v2138 = vmul.f32 %v2133, %v1792
    %v2139 = vadd.f32 %v2127, %v2135
    %v2140 = vadd.f32 %v2128, %v2136
    %v2141 = vadd.f32 %v2129, %v2137
    %v2142 = vadd.f32 %v2130, %v2138
    %v2143 = vadd.f32 %v2139, %v1805
    %v2144 = vadd.f32 %v2140, %v1809
    %v2145 = vadd.f32 %v2141, %v1813
    %v2146 = vadd.f32 %v2142, %v1817
    %2147 = vmatprep.subr.mxu0 %v42
    %2148 = vmatpush1.msra.mxu0 %v41
    %2149 = vmatprep.subr.mxu0 %v46
    %2150 = vmatpush1.msra.mxu0 %v45
    %2151 = vmatprep.subr.mxu0 %v50
    %2152 = vmatpush1.msra.mxu0 %v49
    %2153 = vmatprep.subr.mxu0 %v54
    %2154 = vmatpush1.msra.mxu0 %v53
    %2155 = vmatprep.subr.mxu0 %v58
    %2156 = vmatpush1.msra.mxu0 %v57
    %2157 = vmatprep.subr.mxu0 %v62
    %2158 = vmatpush1.msra.mxu0 %v61
    %2159 = vmatprep.subr.mxu0 %v66
    %2160 = vmatpush1.msra.mxu0 %v65
    %2161 = vmatprep.subr.mxu0 %v70
    %2162 = vmatpush1.msra.mxu0 %v69
    %2163 = vmatprep.subr.mxu0 %v74
    %2164 = vmatpush1.msra.mxu0 %v73
    %2165 = vmatprep.subr.mxu0 %v78
    %2166 = vmatpush1.msra.mxu0 %v77
    %2167 = vmatprep.subr.mxu0 %v82
    %2168 = vmatpush1.msra.mxu0 %v81
    %2169 = vmatprep.subr.mxu0 %v86
    %2170 = vmatpush1.msra.mxu0 %v85
    %2171 = vmatprep.subr.mxu0 %v90
    %2172 = vmatpush1.msra.mxu0 %v89
    %2173 = vmatprep.subr.mxu0 %v94
    %2174 = vmatpush1.msra.mxu0 %v93
    %2175 = vmatprep.subr.mxu0 %v98
    %2176 = vmatpush1.msra.mxu0 %v97
    %2177 = vmatprep.subr.mxu0 %v102
    %2178 = vmatpush1.msra.mxu0 %v101
    %2179 = vmatprep.subr.mxu0 0.0
    %2180 = vmatpush1.msra.mxu0 0.0
    %2181 = vmatprep.subr.mxu0 0.0
    %2182 = vmatpush1.msra.mxu0 0.0
    %2183 = vmatprep.subr.mxu0 0.0
    %2184 = vmatpush1.msra.mxu0 0.0
    %2185 = vmatprep.subr.mxu0 0.0
    %2186 = vmatpush1.msra.mxu0 0.0
    %2187 = vmatprep.subr.mxu0 0.0
    %2188 = vmatpush1.msra.mxu0 0.0
    %2189 = vmatprep.subr.mxu0 0.0
    %2190 = vmatpush1.msra.mxu0 0.0
    %2191 = vmatprep.subr.mxu0 0.0
    %2192 = vmatpush1.msra.mxu0 0.0
    %2193 = vmatprep.subr.mxu0 0.0
    %2194 = vmatpush1.msra.mxu0 0.0
    %2195 = vmatprep.subr.mxu0 0.0
    %2196 = vmatpush1.msra.mxu0 0.0
    %2197 = vmatprep.subr.mxu0 0.0
    %2198 = vmatpush1.msra.mxu0 0.0
    %2199 = vmatprep.subr.mxu0 0.0
    %2200 = vmatpush1.msra.mxu0 0.0
    %2201 = vmatprep.subr.mxu0 0.0
    %2202 = vmatpush1.msra.mxu0 0.0
    %2203 = vmatprep.subr.mxu0 0.0
    %2204 = vmatpush1.msra.mxu0 0.0
    %2205 = vmatprep.subr.mxu0 0.0
    %2206 = vmatpush1.msra.mxu0 0.0
    %2207 = vmatprep.subr.mxu0 0.0
    %2208 = vmatpush1.msra.mxu0 0.0
    %2209 = vmatprep.subr.mxu0 0.0
    %2210 = vmatpush1.msra.mxu0 0.0
    %2211 = vmatprep.mubr.f32.mxu0 0.0
    %2212 = vmatmul.mubr.f32.gmra.mrb[0].mxu0 %v1995
    %v2213 = vpop.f32.mrb[0].mxu0
    %v2214 = vadd.f32 0.0, %v2213
    %v2215 = vpop.f32.mrb[0].mxu0
    %v2216 = vadd.f32 0.0, %v2215
    %2217 = vdwg.mxu0
    %2218 = vmatprep.subr.mxu0 %v44
    %2219 = vmatpush1.msra.mxu0 %v43
    %2220 = vmatprep.subr.mxu0 %v48
    %2221 = vmatpush1.msra.mxu0 %v47
    %2222 = vmatprep.subr.mxu0 %v52
    %2223 = vmatpush1.msra.mxu0 %v51
    %2224 = vmatprep.subr.mxu0 %v56
    %2225 = vmatpush1.msra.mxu0 %v55
    %2226 = vmatprep.subr.mxu0 %v60
    %2227 = vmatpush1.msra.mxu0 %v59
    %2228 = vmatprep.subr.mxu0 %v64
    %2229 = vmatpush1.msra.mxu0 %v63
    %2230 = vmatprep.subr.mxu0 %v68
    %2231 = vmatpush1.msra.mxu0 %v67
    %2232 = vmatprep.subr.mxu0 %v72
    %2233 = vmatpush1.msra.mxu0 %v71
    %2234 = vmatprep.subr.mxu0 %v76
    %2235 = vmatpush1.msra.mxu0 %v75
    %2236 = vmatprep.subr.mxu0 %v80
    %2237 = vmatpush1.msra.mxu0 %v79
    %2238 = vmatprep.subr.mxu0 %v84
    %2239 = vmatpush1.msra.mxu0 %v83
    %2240 = vmatprep.subr.mxu0 %v88
    %2241 = vmatpush1.msra.mxu0 %v87
    %2242 = vmatprep.subr.mxu0 %v92
    %2243 = vmatpush1.msra.mxu0 %v91
    %2244 = vmatprep.subr.mxu0 %v96
    %2245 = vmatpush1.msra.mxu0 %v95
    %2246 = vmatprep.subr.mxu0 %v100
    %2247 = vmatpush1.msra.mxu0 %v99
    %2248 = vmatprep.subr.mxu0 %v104
    %2249 = vmatpush1.msra.mxu0 %v103
    %2250 = vmatprep.subr.mxu0 0.0
    %2251 = vmatpush1.msra.mxu0 0.0
    %2252 = vmatprep.subr.mxu0 0.0
    %2253 = vmatpush1.msra.mxu0 0.0
    %2254 = vmatprep.subr.mxu0 0.0
    %2255 = vmatpush1.msra.mxu0 0.0
    %2256 = vmatprep.subr.mxu0 0.0
    %2257 = vmatpush1.msra.mxu0 0.0
    %2258 = vmatprep.subr.mxu0 0.0
    %2259 = vmatpush1.msra.mxu0 0.0
    %2260 = vmatprep.subr.mxu0 0.0
    %2261 = vmatpush1.msra.mxu0 0.0
    %2262 = vmatprep.subr.mxu0 0.0
    %2263 = vmatpush1.msra.mxu0 0.0
    %2264 = vmatprep.subr.mxu0 0.0
    %2265 = vmatpush1.msra.mxu0 0.0
    %2266 = vmatprep.subr.mxu0 0.0
    %2267 = vmatpush1.msra.mxu0 0.0
    %2268 = vmatprep.subr.mxu0 0.0
    %2269 = vmatpush1.msra.mxu0 0.0
    %2270 = vmatprep.subr.mxu0 0.0
    %2271 = vmatpush1.msra.mxu0 0.0
    %2272 = vmatprep.subr.mxu0 0.0
    %2273 = vmatpush1.msra.mxu0 0.0
    %2274 = vmatprep.subr.mxu0 0.0
    %2275 = vmatpush1.msra.mxu0 0.0
    %2276 = vmatprep.subr.mxu0 0.0
    %2277 = vmatpush1.msra.mxu0 0.0
    %2278 = vmatprep.subr.mxu0 0.0
    %2279 = vmatpush1.msra.mxu0 0.0
    %2280 = vmatprep.subr.mxu0 0.0
    %2281 = vmatpush1.msra.mxu0 0.0
    %2282 = vmatprep.mubr.f32.mxu0 0.0
    %2283 = vmatmul.mubr.f32.gmra.mrb[0].mxu0 %v1995
    %v2284 = vpop.f32.mrb[0].mxu0
    %v2285 = vadd.f32 0.0, %v2284
    %v2286 = vpop.f32.mrb[0].mxu0
    %v2287 = vadd.f32 0.0, %v2286
    %2288 = vdwg.mxu0
    %v2289 = vadd.f32 %v2143, %v2214
    %v2290 = vadd.f32 %v2144, %v2216
    %v2291 = vadd.f32 %v2145, %v2285
    %v2292 = vadd.f32 %v2146, %v2287
    %v2293 = vxor.u32 %v2289, 2147483648
    %v2294 = vmul.f32 %v2293, 1.442695
    %v2295 = vpow.pop %v2294
    %v2296 = vadd.f32 %v2295, 1.0
    %v2297 = vrcp.pop %v2296
    %v2298 = vmul.f32 1.0, %v2297
    %v2299 = vxor.u32 %v2290, 2147483648
    %v2300 = vmul.f32 %v2299, 1.442695
    %v2301 = vpow.pop %v2300
    %v2302 = vadd.f32 %v2301, 1.0
    %v2303 = vrcp.pop %v2302
    %v2304 = vmul.f32 1.0, %v2303
    %v2305 = vtanh.pop %v2291
    %v2306 = vxor.u32 %v2292, 2147483648
    %v2307 = vmul.f32 %v2306, 1.442695
    %v2308 = vpow.pop %v2307
    %v2309 = vadd.f32 %v2308, 1.0
    %v2310 = vrcp.pop %v2309
    %v2311 = vmul.f32 1.0, %v2310
    %v2312 = vmul.f32 %v2304, %v1993
    %v2313 = vmul.f32 %v2298, %v2305
    %v2314 = vadd.f32 %v2312, %v2313
    %v2315 = vtanh.pop %v2314
    %v2316 = vmul.f32 %v2311, %v2315
    %2317 = vmatprep.subr.mxu0 0.0
    %2318 = vmatpush1.msra.mxu0 %v106
    %2319 = vmatprep.subr.mxu0 0.0
    %2320 = vmatpush1.msra.mxu0 %v107
    %2321 = vmatprep.subr.mxu0 0.0
    %2322 = vmatpush1.msra.mxu0 %v108
    %2323 = vmatprep.subr.mxu0 0.0
    %2324 = vmatpush1.msra.mxu0 %v109
    %2325 = vmatprep.subr.mxu0 0.0
    %2326 = vmatpush1.msra.mxu0 %v110
    %2327 = vmatprep.subr.mxu0 0.0
    %2328 = vmatpush1.msra.mxu0 %v111
    %2329 = vmatprep.subr.mxu0 0.0
    %2330 = vmatpush1.msra.mxu0 %v112
    %2331 = vmatprep.subr.mxu0 0.0
    %2332 = vmatpush1.msra.mxu0 %v113
    %2333 = vmatprep.subr.mxu0 0.0
    %2334 = vmatpush1.msra.mxu0 %v114
    %2335 = vmatprep.subr.mxu0 0.0
    %2336 = vmatpush1.msra.mxu0 %v115
    %2337 = vmatprep.subr.mxu0 0.0
    %2338 = vmatpush1.msra.mxu0 %v116
    %2339 = vmatprep.subr.mxu0 0.0
    %2340 = vmatpush1.msra.mxu0 %v117
    %2341 = vmatprep.subr.mxu0 0.0
    %2342 = vmatpush1.msra.mxu0 %v118
    %2343 = vmatprep.subr.mxu0 0.0
    %2344 = vmatpush1.msra.mxu0 %v119
    %2345 = vmatprep.subr.mxu0 0.0
    %2346 = vmatpush1.msra.mxu0 %v120
    %2347 = vmatprep.subr.mxu0 0.0
    %2348 = vmatpush1.msra.mxu0 %v121
    %2349 = vmatprep.subr.mxu0 0.0
    %2350 = vmatpush1.msra.mxu0 0.0
    %2351 = vmatprep.subr.mxu0 0.0
    %2352 = vmatpush1.msra.mxu0 0.0
    %2353 = vmatprep.subr.mxu0 0.0
    %2354 = vmatpush1.msra.mxu0 0.0
    %2355 = vmatprep.subr.mxu0 0.0
    %2356 = vmatpush1.msra.mxu0 0.0
    %2357 = vmatprep.subr.mxu0 0.0
    %2358 = vmatpush1.msra.mxu0 0.0
    %2359 = vmatprep.subr.mxu0 0.0
    %2360 = vmatpush1.msra.mxu0 0.0
    %2361 = vmatprep.subr.mxu0 0.0
    %2362 = vmatpush1.msra.mxu0 0.0
    %2363 = vmatprep.subr.mxu0 0.0
    %2364 = vmatpush1.msra.mxu0 0.0
    %2365 = vmatprep.subr.mxu0 0.0
    %2366 = vmatpush1.msra.mxu0 0.0
    %2367 = vmatprep.subr.mxu0 0.0
    %2368 = vmatpush1.msra.mxu0 0.0
    %2369 = vmatprep.subr.mxu0 0.0
    %2370 = vmatpush1.msra.mxu0 0.0
    %2371 = vmatprep.subr.mxu0 0.0
    %2372 = vmatpush1.msra.mxu0 0.0
    %2373 = vmatprep.subr.mxu0 0.0
    %2374 = vmatpush1.msra.mxu0 0.0
    %2375 = vmatprep.subr.mxu0 0.0
    %2376 = vmatpush1.msra.mxu0 0.0
    %2377 = vmatprep.subr.mxu0 0.0
    %2378 = vmatpush1.msra.mxu0 0.0
    %2379 = vmatprep.subr.mxu0 0.0
    %2380 = vmatpush1.msra.mxu0 0.0
    %2381 = vmatprep.mubr.f32.mxu0 0.0
    %2382 = vmatmul.mubr.f32.gmra.mrb[0].mxu0 %v2316
    %v2383 = vpop.f32.mrb[0].mxu0
    %v2384 = vadd.f32 %v2000, %v2383
    %v2385 = vpop.f32.mrb[0].mxu0
    %2386 = vdwg.mxu0
    %2388 = vrot.lane.b32.xlu0 %v2384, 126
    %v2389 = vpop.permute.xlu0 %2388
    %v2391 = vmul.f32 %v2384, %v2389
    %v2392 = vadd.f32 %v2121, %v2391
    %vm2393 = vcmp.gt.f32.partialorder %v2392, 1.0
    %v2394 = vsel %vm2393, 1, 0
    %v2395 = vcvt.s32.f32 %v2394
    %vm2396 = vcmp.le.f32.partialorder %v2392, 1.0
    %vm2397 = vcmp.ge.f32.partialorder %v2392, 0.0
    %vm2398 = vmand %vm2396, %vm2397
    %v2399 = vsel %vm2398, 1, 0
    %v2400 = vcvt.s32.f32 %v2399
    %vm2401 = vcmp.lt.f32.partialorder %v2392, 0.0
    %v2402 = vsel %vm2401, 1, 0
    %v2403 = vcvt.s32.f32 %v2402
    %v2404 = vsub.f32 %v2392, 1.0
    %v2405 = vsub.f32 1.0, %v2404
    %v2406 = vmul.f32 %v2395, %v2405
    %v2407 = vmul.f32 %v2400, %v2392
    %v2408 = vadd.f32 %v2406, %v2407
    %v2409 = vsub.f32 0.0, %v2392
    %v2410 = vmul.f32 %v2403, %v2409
    %v2411 = vadd.f32 %v2408, %v2410
    %v2412 = vsub.f32 %v2392, 0.5
    %2414 = vrot.lane.b32.xlu0 %v2412, 1
    %v2415 = vpop.permute.xlu0 %2414
    %v2417 = vmul.f32 %v2395, %v2415
    %2419 = vrot.lane.b32.xlu0 %v2392, 1
    %v2420 = vpop.permute.xlu0 %2419
    %v2422 = vmul.f32 %v2400, %v2420
    %v2423 = vadd.f32 %v2417, %v2422
    %v2424 = vmul.f32 %v2403, %v2415
    %v2425 = vadd.f32 %v2423, %v2424
    %vm2426 = vcmp.lt.f32.partialorder %v2425, 0.0
    %v2427 = vceil.f32 %v2425
    %v2428 = vfloor.f32 %v2425
    %v2429 = vsel %vm2426, %v2427, %v2428
    %v2430 = vsub.f32 %v2425, %v2429
    %2432 = vrot.lane.b32.xlu0 %v2430, 127
    %v2433 = vpop.permute.xlu0 %2432
    %v2435 = vsel %vm2120, %v2433, %v2411
    %2437 = vset.pattern.permute.xlu0 0
    %2438 = vperm.xlu0 %2437, %v2435
    %v2439 = vpop.permute.xlu0 %2438
    %v2441 = vmul.f32 %v2439, %v1736
    %v2442 = vmul.f32 %v2439, %v1740
    %v2443 = vmul.f32 %v2439, %v1744
    %v2444 = vmul.f32 %v2439, %v1748
    %2445 = vset.pattern.permute.xlu0 1
    %2446 = vperm.xlu0 %2445, %v2435
    %v2447 = vpop.permute.xlu0 %2446
    %v2449 = vmul.f32 %v2447, %v1780
    %v2450 = vmul.f32 %v2447, %v1784
    %v2451 = vmul.f32 %v2447, %v1788
    %v2452 = vmul.f32 %v2447, %v1792
    %v2453 = vadd.f32 %v2441, %v2449
    %v2454 = vadd.f32 %v2442, %v2450
    %v2455 = vadd.f32 %v2443, %v2451
    %v2456 = vadd.f32 %v2444, %v2452
    %v2457 = vadd.f32 %v2453, %v1805
    %v2458 = vadd.f32 %v2454, %v1809
    %v2459 = vadd.f32 %v2455, %v1813
    %v2460 = vadd.f32 %v2456, %v1817
    %2461 = vmatprep.subr.mxu0 %v42
    %2462 = vmatpush1.msra.mxu0 %v41
    %2463 = vmatprep.subr.mxu0 %v46
    %2464 = vmatpush1.msra.mxu0 %v45
    %2465 = vmatprep.subr.mxu0 %v50
    %2466 = vmatpush1.msra.mxu0 %v49
    %2467 = vmatprep.subr.mxu0 %v54
    %2468 = vmatpush1.msra.mxu0 %v53
    %2469 = vmatprep.subr.mxu0 %v58
    %2470 = vmatpush1.msra.mxu0 %v57
    %2471 = vmatprep.subr.mxu0 %v62
    %2472 = vmatpush1.msra.mxu0 %v61
    %2473 = vmatprep.subr.mxu0 %v66
    %2474 = vmatpush1.msra.mxu0 %v65
    %2475 = vmatprep.subr.mxu0 %v70
    %2476 = vmatpush1.msra.mxu0 %v69
    %2477 = vmatprep.subr.mxu0 %v74
    %2478 = vmatpush1.msra.mxu0 %v73
    %2479 = vmatprep.subr.mxu0 %v78
    %2480 = vmatpush1.msra.mxu0 %v77
    %2481 = vmatprep.subr.mxu0 %v82
    %2482 = vmatpush1.msra.mxu0 %v81
    %2483 = vmatprep.subr.mxu0 %v86
    %2484 = vmatpush1.msra.mxu0 %v85
    %2485 = vmatprep.subr.mxu0 %v90
    %2486 = vmatpush1.msra.mxu0 %v89
    %2487 = vmatprep.subr.mxu0 %v94
    %2488 = vmatpush1.msra.mxu0 %v93
    %2489 = vmatprep.subr.mxu0 %v98
    %2490 = vmatpush1.msra.mxu0 %v97
    %2491 = vmatprep.subr.mxu0 %v102
    %2492 = vmatpush1.msra.mxu0 %v101
    %2493 = vmatprep.subr.mxu0 0.0
    %2494 = vmatpush1.msra.mxu0 0.0
    %2495 = vmatprep.subr.mxu0 0.0
    %2496 = vmatpush1.msra.mxu0 0.0
    %2497 = vmatprep.subr.mxu0 0.0
    %2498 = vmatpush1.msra.mxu0 0.0
    %2499 = vmatprep.subr.mxu0 0.0
    %2500 = vmatpush1.msra.mxu0 0.0
    %2501 = vmatprep.subr.mxu0 0.0
    %2502 = vmatpush1.msra.mxu0 0.0
    %2503 = vmatprep.subr.mxu0 0.0
    %2504 = vmatpush1.msra.mxu0 0.0
    %2505 = vmatprep.subr.mxu0 0.0
    %2506 = vmatpush1.msra.mxu0 0.0
    %2507 = vmatprep.subr.mxu0 0.0
    %2508 = vmatpush1.msra.mxu0 0.0
    %2509 = vmatprep.subr.mxu0 0.0
    %2510 = vmatpush1.msra.mxu0 0.0
    %2511 = vmatprep.subr.mxu0 0.0
    %2512 = vmatpush1.msra.mxu0 0.0
    %2513 = vmatprep.subr.mxu0 0.0
    %2514 = vmatpush1.msra.mxu0 0.0
    %2515 = vmatprep.subr.mxu0 0.0
    %2516 = vmatpush1.msra.mxu0 0.0
    %2517 = vmatprep.subr.mxu0 0.0
    %2518 = vmatpush1.msra.mxu0 0.0
    %2519 = vmatprep.subr.mxu0 0.0
    %2520 = vmatpush1.msra.mxu0 0.0
    %2521 = vmatprep.subr.mxu0 0.0
    %2522 = vmatpush1.msra.mxu0 0.0
    %2523 = vmatprep.subr.mxu0 0.0
    %2524 = vmatpush1.msra.mxu0 0.0
    %2525 = vmatprep.mubr.f32.mxu0 0.0
    %2526 = vmatmul.mubr.f32.gmra.mrb[0].mxu0 %v2316
    %v2527 = vpop.f32.mrb[0].mxu0
    %v2528 = vadd.f32 0.0, %v2527
    %v2529 = vpop.f32.mrb[0].mxu0
    %v2530 = vadd.f32 0.0, %v2529
    %2531 = vdwg.mxu0
    %2532 = vmatprep.subr.mxu0 %v44
    %2533 = vmatpush1.msra.mxu0 %v43
    %2534 = vmatprep.subr.mxu0 %v48
    %2535 = vmatpush1.msra.mxu0 %v47
    %2536 = vmatprep.subr.mxu0 %v52
    %2537 = vmatpush1.msra.mxu0 %v51
    %2538 = vmatprep.subr.mxu0 %v56
    %2539 = vmatpush1.msra.mxu0 %v55
    %2540 = vmatprep.subr.mxu0 %v60
    %2541 = vmatpush1.msra.mxu0 %v59
    %2542 = vmatprep.subr.mxu0 %v64
    %2543 = vmatpush1.msra.mxu0 %v63
    %2544 = vmatprep.subr.mxu0 %v68
    %2545 = vmatpush1.msra.mxu0 %v67
    %2546 = vmatprep.subr.mxu0 %v72
    %2547 = vmatpush1.msra.mxu0 %v71
    %2548 = vmatprep.subr.mxu0 %v76
    %2549 = vmatpush1.msra.mxu0 %v75
    %2550 = vmatprep.subr.mxu0 %v80
    %2551 = vmatpush1.msra.mxu0 %v79
    %2552 = vmatprep.subr.mxu0 %v84
    %2553 = vmatpush1.msra.mxu0 %v83
    %2554 = vmatprep.subr.mxu0 %v88
    %2555 = vmatpush1.msra.mxu0 %v87
    %2556 = vmatprep.subr.mxu0 %v92
    %2557 = vmatpush1.msra.mxu0 %v91
    %2558 = vmatprep.subr.mxu0 %v96
    %2559 = vmatpush1.msra.mxu0 %v95
    %2560 = vmatprep.subr.mxu0 %v100
    %2561 = vmatpush1.msra.mxu0 %v99
    %2562 = vmatprep.subr.mxu0 %v104
    %2563 = vmatpush1.msra.mxu0 %v103
    %2564 = vmatprep.subr.mxu0 0.0
    %2565 = vmatpush1.msra.mxu0 0.0
    %2566 = vmatprep.subr.mxu0 0.0
    %2567 = vmatpush1.msra.mxu0 0.0
    %2568 = vmatprep.subr.mxu0 0.0
    %2569 = vmatpush1.msra.mxu0 0.0
    %2570 = vmatprep.subr.mxu0 0.0
    %2571 = vmatpush1.msra.mxu0 0.0
    %2572 = vmatprep.subr.mxu0 0.0
    %2573 = vmatpush1.msra.mxu0 0.0
    %2574 = vmatprep.subr.mxu0 0.0
    %2575 = vmatpush1.msra.mxu0 0.0
    %2576 = vmatprep.subr.mxu0 0.0
    %2577 = vmatpush1.msra.mxu0 0.0
    %2578 = vmatprep.subr.mxu0 0.0
    %2579 = vmatpush1.msra.mxu0 0.0
    %2580 = vmatprep.subr.mxu0 0.0
    %2581 = vmatpush1.msra.mxu0 0.0
    %2582 = vmatprep.subr.mxu0 0.0
    %2583 = vmatpush1.msra.mxu0 0.0
    %2584 = vmatprep.subr.mxu0 0.0
    %2585 = vmatpush1.msra.mxu0 0.0
    %2586 = vmatprep.subr.mxu0 0.0
    %2587 = vmatpush1.msra.mxu0 0.0
    %2588 = vmatprep.subr.mxu0 0.0
    %2589 = vmatpush1.msra.mxu0 0.0
    %2590 = vmatprep.subr.mxu0 0.0
    %2591 = vmatpush1.msra.mxu0 0.0
    %2592 = vmatprep.subr.mxu0 0.0
    %2593 = vmatpush1.msra.mxu0 0.0
    %2594 = vmatprep.subr.mxu0 0.0
    %2595 = vmatpush1.msra.mxu0 0.0
    %2596 = vmatprep.mubr.f32.mxu0 0.0
    %2597 = vmatmul.mubr.f32.gmra.mrb[0].mxu0 %v2316
    %v2598 = vpop.f32.mrb[0].mxu0
    %v2599 = vadd.f32 0.0, %v2598
    %v2600 = vpop.f32.mrb[0].mxu0
    %v2601 = vadd.f32 0.0, %v2600
    %2602 = vdwg.mxu0
    %v2603 = vadd.f32 %v2457, %v2528
    %v2604 = vadd.f32 %v2458, %v2530
    %v2605 = vadd.f32 %v2459, %v2599
    %v2606 = vadd.f32 %v2460, %v2601
    %v2607 = vxor.u32 %v2603, 2147483648
    %v2608 = vmul.f32 %v2607, 1.442695
    %v2609 = vpow.pop %v2608
    %v2610 = vadd.f32 %v2609, 1.0
    %v2611 = vrcp.pop %v2610
    %v2612 = vmul.f32 1.0, %v2611
    %v2613 = vxor.u32 %v2604, 2147483648
    %v2614 = vmul.f32 %v2613, 1.442695
    %v2615 = vpow.pop %v2614
    %v2616 = vadd.f32 %v2615, 1.0
    %v2617 = vrcp.pop %v2616
    %v2618 = vmul.f32 1.0, %v2617
    %v2619 = vtanh.pop %v2605
    %v2620 = vxor.u32 %v2606, 2147483648
    %v2621 = vmul.f32 %v2620, 1.442695
    %v2622 = vpow.pop %v2621
    %v2623 = vadd.f32 %v2622, 1.0
    %v2624 = vrcp.pop %v2623
    %v2625 = vmul.f32 1.0, %v2624
    %v2626 = vmul.f32 %v2618, %v2314
    %v2627 = vmul.f32 %v2612, %v2619
    %v2628 = vadd.f32 %v2626, %v2627
    %v2629 = vtanh.pop %v2628
    %v2630 = vmul.f32 %v2625, %v2629
    %2631 = vmatprep.subr.mxu0 0.0
    %2632 = vmatpush1.msra.mxu0 %v106
    %2633 = vmatprep.subr.mxu0 0.0
    %2634 = vmatpush1.msra.mxu0 %v107
    %2635 = vmatprep.subr.mxu0 0.0
    %2636 = vmatpush1.msra.mxu0 %v108
    %2637 = vmatprep.subr.mxu0 0.0
    %2638 = vmatpush1.msra.mxu0 %v109
    %2639 = vmatprep.subr.mxu0 0.0
    %2640 = vmatpush1.msra.mxu0 %v110
    %2641 = vmatprep.subr.mxu0 0.0
    %2642 = vmatpush1.msra.mxu0 %v111
    %2643 = vmatprep.subr.mxu0 0.0
    %2644 = vmatpush1.msra.mxu0 %v112
    %2645 = vmatprep.subr.mxu0 0.0
    %2646 = vmatpush1.msra.mxu0 %v113
    %2647 = vmatprep.subr.mxu0 0.0
    %2648 = vmatpush1.msra.mxu0 %v114
    %2649 = vmatprep.subr.mxu0 0.0
    %2650 = vmatpush1.msra.mxu0 %v115
    %2651 = vmatprep.subr.mxu0 0.0
    %2652 = vmatpush1.msra.mxu0 %v116
    %2653 = vmatprep.subr.mxu0 0.0
    %2654 = vmatpush1.msra.mxu0 %v117
    %2655 = vmatprep.subr.mxu0 0.0
    %2656 = vmatpush1.msra.mxu0 %v118
    %2657 = vmatprep.subr.mxu0 0.0
    %2658 = vmatpush1.msra.mxu0 %v119
    %2659 = vmatprep.subr.mxu0 0.0
    %2660 = vmatpush1.msra.mxu0 %v120
    %2661 = vmatprep.subr.mxu0 0.0
    %2662 = vmatpush1.msra.mxu0 %v121
    %2663 = vmatprep.subr.mxu0 0.0
    %2664 = vmatpush1.msra.mxu0 0.0
    %2665 = vmatprep.subr.mxu0 0.0
    %2666 = vmatpush1.msra.mxu0 0.0
    %2667 = vmatprep.subr.mxu0 0.0
    %2668 = vmatpush1.msra.mxu0 0.0
    %2669 = vmatprep.subr.mxu0 0.0
    %2670 = vmatpush1.msra.mxu0 0.0
    %2671 = vmatprep.subr.mxu0 0.0
    %2672 = vmatpush1.msra.mxu0 0.0
    %2673 = vmatprep.subr.mxu0 0.0
    %2674 = vmatpush1.msra.mxu0 0.0
    %2675 = vmatprep.subr.mxu0 0.0
    %2676 = vmatpush1.msra.mxu0 0.0
    %2677 = vmatprep.subr.mxu0 0.0
    %2678 = vmatpush1.msra.mxu0 0.0
    %2679 = vmatprep.subr.mxu0 0.0
    %2680 = vmatpush1.msra.mxu0 0.0
    %2681 = vmatprep.subr.mxu0 0.0
    %2682 = vmatpush1.msra.mxu0 0.0
    %2683 = vmatprep.subr.mxu0 0.0
    %2684 = vmatpush1.msra.mxu0 0.0
    %2685 = vmatprep.subr.mxu0 0.0
    %2686 = vmatpush1.msra.mxu0 0.0
    %2687 = vmatprep.subr.mxu0 0.0
    %2688 = vmatpush1.msra.mxu0 0.0
    %2689 = vmatprep.subr.mxu0 0.0
    %2690 = vmatpush1.msra.mxu0 0.0
    %2691 = vmatprep.subr.mxu0 0.0
    %2692 = vmatpush1.msra.mxu0 0.0
    %2693 = vmatprep.subr.mxu0 0.0
    %2694 = vmatpush1.msra.mxu0 0.0
    %2695 = vmatprep.mubr.f32.mxu0 0.0
    %2696 = vmatmul.mubr.f32.gmra.mrb[0].mxu0 %v2630
    %v2697 = vpop.f32.mrb[0].mxu0
    %v2698 = vadd.f32 %v2000, %v2697
    %v2699 = vpop.f32.mrb[0].mxu0
    %2700 = vdwg.mxu0
    %2702 = vrot.lane.b32.xlu0 %v2698, 126
    %v2703 = vpop.permute.xlu0 %2702
    %v2705 = vmul.f32 %v2698, %v2703
    %v2706 = vadd.f32 %v2435, %v2705
    %vm2707 = vcmp.gt.f32.partialorder %v2706, 1.0
    %v2708 = vsel %vm2707, 1, 0
    %v2709 = vcvt.s32.f32 %v2708
    %vm2710 = vcmp.le.f32.partialorder %v2706, 1.0
    %vm2711 = vcmp.ge.f32.partialorder %v2706, 0.0
    %vm2712 = vmand %vm2710, %vm2711
    %v2713 = vsel %vm2712, 1, 0
    %v2714 = vcvt.s32.f32 %v2713
    %vm2715 = vcmp.lt.f32.partialorder %v2706, 0.0
    %v2716 = vsel %vm2715, 1, 0
    %v2717 = vcvt.s32.f32 %v2716
    %v2718 = vsub.f32 %v2706, 1.0
    %v2719 = vsub.f32 1.0, %v2718
    %v2720 = vmul.f32 %v2709, %v2719
    %v2721 = vmul.f32 %v2714, %v2706
    %v2722 = vadd.f32 %v2720, %v2721
    %v2723 = vsub.f32 0.0, %v2706
    %v2724 = vmul.f32 %v2717, %v2723
    %v2725 = vadd.f32 %v2722, %v2724
    %v2726 = vsub.f32 %v2706, 0.5
    %2728 = vrot.lane.b32.xlu0 %v2726, 1
    %v2729 = vpop.permute.xlu0 %2728
    %v2731 = vmul.f32 %v2709, %v2729
    %2733 = vrot.lane.b32.xlu0 %v2706, 1
    %v2734 = vpop.permute.xlu0 %2733
    %v2736 = vmul.f32 %v2714, %v2734
    %v2737 = vadd.f32 %v2731, %v2736
    %v2738 = vmul.f32 %v2717, %v2729
    %v2739 = vadd.f32 %v2737, %v2738
    %vm2740 = vcmp.lt.f32.partialorder %v2739, 0.0
    %v2741 = vceil.f32 %v2739
    %v2742 = vfloor.f32 %v2739
    %v2743 = vsel %vm2740, %v2741, %v2742
    %v2744 = vsub.f32 %v2739, %v2743
    %2746 = vrot.lane.b32.xlu0 %v2744, 127
    %v2747 = vpop.permute.xlu0 %2746
    %v2749 = vsel %vm2120, %v2747, %v2725
    %2751 = vset.pattern.permute.xlu0 0
    %2752 = vperm.xlu0 %2751, %v2749
    %v2753 = vpop.permute.xlu0 %2752
    %v2755 = vmul.f32 %v2753, %v1736
    %v2756 = vmul.f32 %v2753, %v1740
    %v2757 = vmul.f32 %v2753, %v1744
    %v2758 = vmul.f32 %v2753, %v1748
    %2759 = vset.pattern.permute.xlu0 1
    %2760 = vperm.xlu0 %2759, %v2749
    %v2761 = vpop.permute.xlu0 %2760
    %v2763 = vmul.f32 %v2761, %v1780
    %v2764 = vmul.f32 %v2761, %v1784
    %v2765 = vmul.f32 %v2761, %v1788
    %v2766 = vmul.f32 %v2761, %v1792
    %v2767 = vadd.f32 %v2755, %v2763
    %v2768 = vadd.f32 %v2756, %v2764
    %v2769 = vadd.f32 %v2757, %v2765
    %v2770 = vadd.f32 %v2758, %v2766
    %v2771 = vadd.f32 %v2767, %v1805
    %v2772 = vadd.f32 %v2768, %v1809
    %v2773 = vadd.f32 %v2769, %v1813
    %v2774 = vadd.f32 %v2770, %v1817
    %2775 = vmatprep.subr.mxu0 %v42
    %2776 = vmatpush1.msra.mxu0 %v41
    %2777 = vmatprep.subr.mxu0 %v46
    %2778 = vmatpush1.msra.mxu0 %v45
    %2779 = vmatprep.subr.mxu0 %v50
    %2780 = vmatpush1.msra.mxu0 %v49
    %2781 = vmatprep.subr.mxu0 %v54
    %2782 = vmatpush1.msra.mxu0 %v53
    %2783 = vmatprep.subr.mxu0 %v58
    %2784 = vmatpush1.msra.mxu0 %v57
    %2785 = vmatprep.subr.mxu0 %v62
    %2786 = vmatpush1.msra.mxu0 %v61
    %2787 = vmatprep.subr.mxu0 %v66
    %2788 = vmatpush1.msra.mxu0 %v65
    %2789 = vmatprep.subr.mxu0 %v70
    %2790 = vmatpush1.msra.mxu0 %v69
    %2791 = vmatprep.subr.mxu0 %v74
    %2792 = vmatpush1.msra.mxu0 %v73
    %2793 = vmatprep.subr.mxu0 %v78
    %2794 = vmatpush1.msra.mxu0 %v77
    %2795 = vmatprep.subr.mxu0 %v82
    %2796 = vmatpush1.msra.mxu0 %v81
    %2797 = vmatprep.subr.mxu0 %v86
    %2798 = vmatpush1.msra.mxu0 %v85
    %2799 = vmatprep.subr.mxu0 %v90
    %2800 = vmatpush1.msra.mxu0 %v89
    %2801 = vmatprep.subr.mxu0 %v94
    %2802 = vmatpush1.msra.mxu0 %v93
    %2803 = vmatprep.subr.mxu0 %v98
    %2804 = vmatpush1.msra.mxu0 %v97
    %2805 = vmatprep.subr.mxu0 %v102
    %2806 = vmatpush1.msra.mxu0 %v101
    %2807 = vmatprep.subr.mxu0 0.0
    %2808 = vmatpush1.msra.mxu0 0.0
    %2809 = vmatprep.subr.mxu0 0.0
    %2810 = vmatpush1.msra.mxu0 0.0
    %2811 = vmatprep.subr.mxu0 0.0
    %2812 = vmatpush1.msra.mxu0 0.0
    %2813 = vmatprep.subr.mxu0 0.0
    %2814 = vmatpush1.msra.mxu0 0.0
    %2815 = vmatprep.subr.mxu0 0.0
    %2816 = vmatpush1.msra.mxu0 0.0
    %2817 = vmatprep.subr.mxu0 0.0
    %2818 = vmatpush1.msra.mxu0 0.0
    %2819 = vmatprep.subr.mxu0 0.0
    %2820 = vmatpush1.msra.mxu0 0.0
    %2821 = vmatprep.subr.mxu0 0.0
    %2822 = vmatpush1.msra.mxu0 0.0
    %2823 = vmatprep.subr.mxu0 0.0
    %2824 = vmatpush1.msra.mxu0 0.0
    %2825 = vmatprep.subr.mxu0 0.0
    %2826 = vmatpush1.msra.mxu0 0.0
    %2827 = vmatprep.subr.mxu0 0.0
    %2828 = vmatpush1.msra.mxu0 0.0
    %2829 = vmatprep.subr.mxu0 0.0
    %2830 = vmatpush1.msra.mxu0 0.0
    %2831 = vmatprep.subr.mxu0 0.0
    %2832 = vmatpush1.msra.mxu0 0.0
    %2833 = vmatprep.subr.mxu0 0.0
    %2834 = vmatpush1.msra.mxu0 0.0
    %2835 = vmatprep.subr.mxu0 0.0
    %2836 = vmatpush1.msra.mxu0 0.0
    %2837 = vmatprep.subr.mxu0 0.0
    %2838 = vmatpush1.msra.mxu0 0.0
    %2839 = vmatprep.mubr.f32.mxu0 0.0
    %2840 = vmatmul.mubr.f32.gmra.mrb[0].mxu0 %v2630
    %v2841 = vpop.f32.mrb[0].mxu0
    %v2842 = vadd.f32 0.0, %v2841
    %v2843 = vpop.f32.mrb[0].mxu0
    %v2844 = vadd.f32 0.0, %v2843
    %2845 = vdwg.mxu0
    %2846 = vmatprep.subr.mxu0 %v44
    %2847 = vmatpush1.msra.mxu0 %v43
    %2848 = vmatprep.subr.mxu0 %v48
    %2849 = vmatpush1.msra.mxu0 %v47
    %2850 = vmatprep.subr.mxu0 %v52
    %2851 = vmatpush1.msra.mxu0 %v51
    %2852 = vmatprep.subr.mxu0 %v56
    %2853 = vmatpush1.msra.mxu0 %v55
    %2854 = vmatprep.subr.mxu0 %v60
    %2855 = vmatpush1.msra.mxu0 %v59
    %2856 = vmatprep.subr.mxu0 %v64
    %2857 = vmatpush1.msra.mxu0 %v63
    %2858 = vmatprep.subr.mxu0 %v68
    %2859 = vmatpush1.msra.mxu0 %v67
    %2860 = vmatprep.subr.mxu0 %v72
    %2861 = vmatpush1.msra.mxu0 %v71
    %2862 = vmatprep.subr.mxu0 %v76
    %2863 = vmatpush1.msra.mxu0 %v75
    %2864 = vmatprep.subr.mxu0 %v80
    %2865 = vmatpush1.msra.mxu0 %v79
    %2866 = vmatprep.subr.mxu0 %v84
    %2867 = vmatpush1.msra.mxu0 %v83
    %2868 = vmatprep.subr.mxu0 %v88
    %2869 = vmatpush1.msra.mxu0 %v87
    %2870 = vmatprep.subr.mxu0 %v92
    %2871 = vmatpush1.msra.mxu0 %v91
    %2872 = vmatprep.subr.mxu0 %v96
    %2873 = vmatpush1.msra.mxu0 %v95
    %2874 = vmatprep.subr.mxu0 %v100
    %2875 = vmatpush1.msra.mxu0 %v99
    %2876 = vmatprep.subr.mxu0 %v104
    %2877 = vmatpush1.msra.mxu0 %v103
    %2878 = vmatprep.subr.mxu0 0.0
    %2879 = vmatpush1.msra.mxu0 0.0
    %2880 = vmatprep.subr.mxu0 0.0
    %2881 = vmatpush1.msra.mxu0 0.0
    %2882 = vmatprep.subr.mxu0 0.0
    %2883 = vmatpush1.msra.mxu0 0.0
    %2884 = vmatprep.subr.mxu0 0.0
    %2885 = vmatpush1.msra.mxu0 0.0
    %2886 = vmatprep.subr.mxu0 0.0
    %2887 = vmatpush1.msra.mxu0 0.0
    %2888 = vmatprep.subr.mxu0 0.0
    %2889 = vmatpush1.msra.mxu0 0.0
    %2890 = vmatprep.subr.mxu0 0.0
    %2891 = vmatpush1.msra.mxu0 0.0
    %2892 = vmatprep.subr.mxu0 0.0
    %2893 = vmatpush1.msra.mxu0 0.0
    %2894 = vmatprep.subr.mxu0 0.0
    %2895 = vmatpush1.msra.mxu0 0.0
    %2896 = vmatprep.subr.mxu0 0.0
    %2897 = vmatpush1.msra.mxu0 0.0
    %2898 = vmatprep.subr.mxu0 0.0
    %2899 = vmatpush1.msra.mxu0 0.0
    %2900 = vmatprep.subr.mxu0 0.0
    %2901 = vmatpush1.msra.mxu0 0.0
    %2902 = vmatprep.subr.mxu0 0.0
    %2903 = vmatpush1.msra.mxu0 0.0
    %2904 = vmatprep.subr.mxu0 0.0
    %2905 = vmatpush1.msra.mxu0 0.0
    %2906 = vmatprep.subr.mxu0 0.0
    %2907 = vmatpush1.msra.mxu0 0.0
    %2908 = vmatprep.subr.mxu0 0.0
    %2909 = vmatpush1.msra.mxu0 0.0
    %2910 = vmatprep.mubr.f32.mxu0 0.0
    %2911 = vmatmul.mubr.f32.gmra.mrb[0].mxu0 %v2630
    %v2912 = vpop.f32.mrb[0].mxu0
    %v2913 = vadd.f32 0.0, %v2912
    %v2914 = vpop.f32.mrb[0].mxu0
    %v2915 = vadd.f32 0.0, %v2914
    %2916 = vdwg.mxu0
    %v2917 = vadd.f32 %v2771, %v2842
    %v2918 = vadd.f32 %v2772, %v2844
    %v2919 = vadd.f32 %v2773, %v2913
    %v2920 = vadd.f32 %v2774, %v2915
    %v2921 = vxor.u32 %v2917, 2147483648
    %v2922 = vmul.f32 %v2921, 1.442695
    %v2923 = vpow.pop %v2922
    %v2924 = vadd.f32 %v2923, 1.0
    %v2925 = vrcp.pop %v2924
    %v2926 = vmul.f32 1.0, %v2925
    %v2927 = vxor.u32 %v2918, 2147483648
    %v2928 = vmul.f32 %v2927, 1.442695
    %v2929 = vpow.pop %v2928
    %v2930 = vadd.f32 %v2929, 1.0
    %v2931 = vrcp.pop %v2930
    %v2932 = vmul.f32 1.0, %v2931
    %v2933 = vtanh.pop %v2919
    %v2934 = vxor.u32 %v2920, 2147483648
    %v2935 = vmul.f32 %v2934, 1.442695
    %v2936 = vpow.pop %v2935
    %v2937 = vadd.f32 %v2936, 1.0
    %v2938 = vrcp.pop %v2937
    %v2939 = vmul.f32 1.0, %v2938
    %v2940 = vmul.f32 %v2932, %v2628
    %v2941 = vmul.f32 %v2926, %v2933
    %v2942 = vadd.f32 %v2940, %v2941
    %v2943 = vtanh.pop %v2942
    %v2944 = vmul.f32 %v2939, %v2943
    %2945 = vmatprep.subr.mxu0 0.0
    %2946 = vmatpush1.msra.mxu0 %v106
    %2947 = vmatprep.subr.mxu0 0.0
    %2948 = vmatpush1.msra.mxu0 %v107
    %2949 = vmatprep.subr.mxu0 0.0
    %2950 = vmatpush1.msra.mxu0 %v108
    %2951 = vmatprep.subr.mxu0 0.0
    %2952 = vmatpush1.msra.mxu0 %v109
    %2953 = vmatprep.subr.mxu0 0.0
    %2954 = vmatpush1.msra.mxu0 %v110
    %2955 = vmatprep.subr.mxu0 0.0
    %2956 = vmatpush1.msra.mxu0 %v111
    %2957 = vmatprep.subr.mxu0 0.0
    %2958 = vmatpush1.msra.mxu0 %v112
    %2959 = vmatprep.subr.mxu0 0.0
    %2960 = vmatpush1.msra.mxu0 %v113
    %2961 = vmatprep.subr.mxu0 0.0
    %2962 = vmatpush1.msra.mxu0 %v114
    %2963 = vmatprep.subr.mxu0 0.0
    %2964 = vmatpush1.msra.mxu0 %v115
    %2965 = vmatprep.subr.mxu0 0.0
    %2966 = vmatpush1.msra.mxu0 %v116
    %2967 = vmatprep.subr.mxu0 0.0
    %2968 = vmatpush1.msra.mxu0 %v117
    %2969 = vmatprep.subr.mxu0 0.0
    %2970 = vmatpush1.msra.mxu0 %v118
    %2971 = vmatprep.subr.mxu0 0.0
    %2972 = vmatpush1.msra.mxu0 %v119
    %2973 = vmatprep.subr.mxu0 0.0
    %2974 = vmatpush1.msra.mxu0 %v120
    %2975 = vmatprep.subr.mxu0 0.0
    %2976 = vmatpush1.msra.mxu0 %v121
    %2977 = vmatprep.subr.mxu0 0.0
    %2978 = vmatpush1.msra.mxu0 0.0
    %2979 = vmatprep.subr.mxu0 0.0
    %2980 = vmatpush1.msra.mxu0 0.0
    %2981 = vmatprep.subr.mxu0 0.0
    %2982 = vmatpush1.msra.mxu0 0.0
    %2983 = vmatprep.subr.mxu0 0.0
    %2984 = vmatpush1.msra.mxu0 0.0
    %2985 = vmatprep.subr.mxu0 0.0
    %2986 = vmatpush1.msra.mxu0 0.0
    %2987 = vmatprep.subr.mxu0 0.0
    %2988 = vmatpush1.msra.mxu0 0.0
    %2989 = vmatprep.subr.mxu0 0.0
    %2990 = vmatpush1.msra.mxu0 0.0
    %2991 = vmatprep.subr.mxu0 0.0
    %2992 = vmatpush1.msra.mxu0 0.0
    %2993 = vmatprep.subr.mxu0 0.0
    %2994 = vmatpush1.msra.mxu0 0.0
    %2995 = vmatprep.subr.mxu0 0.0
    %2996 = vmatpush1.msra.mxu0 0.0
    %2997 = vmatprep.subr.mxu0 0.0
    %2998 = vmatpush1.msra.mxu0 0.0
    %2999 = vmatprep.subr.mxu0 0.0
    %3000 = vmatpush1.msra.mxu0 0.0
    %3001 = vmatprep.subr.mxu0 0.0
    %3002 = vmatpush1.msra.mxu0 0.0
    %3003 = vmatprep.subr.mxu0 0.0
    %3004 = vmatpush1.msra.mxu0 0.0
    %3005 = vmatprep.subr.mxu0 0.0
    %3006 = vmatpush1.msra.mxu0 0.0
    %3007 = vmatprep.subr.mxu0 0.0
    %3008 = vmatpush1.msra.mxu0 0.0
    %3009 = vmatprep.mubr.f32.mxu0 0.0
    %3010 = vmatmul.mubr.f32.gmra.mrb[0].mxu0 %v2944
    %v3011 = vpop.f32.mrb[0].mxu0
    %v3012 = vadd.f32 %v2000, %v3011
    %v3013 = vpop.f32.mrb[0].mxu0
    %3014 = vdwg.mxu0
    %3016 = vrot.lane.b32.xlu0 %v3012, 126
    %v3017 = vpop.permute.xlu0 %3016
    %v3019 = vmul.f32 %v3012, %v3017
    %v3020 = vadd.f32 %v2749, %v3019
    %vm3021 = vcmp.gt.f32.partialorder %v3020, 1.0
    %v3022 = vsel %vm3021, 1, 0
    %v3023 = vcvt.s32.f32 %v3022
    %vm3024 = vcmp.le.f32.partialorder %v3020, 1.0
    %vm3025 = vcmp.ge.f32.partialorder %v3020, 0.0
    %vm3026 = vmand %vm3024, %vm3025
    %v3027 = vsel %vm3026, 1, 0
    %v3028 = vcvt.s32.f32 %v3027
    %vm3029 = vcmp.lt.f32.partialorder %v3020, 0.0
    %v3030 = vsel %vm3029, 1, 0
    %v3031 = vcvt.s32.f32 %v3030
    %v3032 = vsub.f32 %v3020, 1.0
    %v3033 = vsub.f32 1.0, %v3032
    %v3034 = vmul.f32 %v3023, %v3033
    %v3035 = vmul.f32 %v3028, %v3020
    %v3036 = vadd.f32 %v3034, %v3035
    %v3037 = vsub.f32 0.0, %v3020
    %v3038 = vmul.f32 %v3031, %v3037
    %v3039 = vadd.f32 %v3036, %v3038
    %v3040 = vsub.f32 %v3020, 0.5
    %3042 = vrot.lane.b32.xlu0 %v3040, 1
    %v3043 = vpop.permute.xlu0 %3042
    %v3045 = vmul.f32 %v3023, %v3043
    %3047 = vrot.lane.b32.xlu0 %v3020, 1
    %v3048 = vpop.permute.xlu0 %3047
    %v3050 = vmul.f32 %v3028, %v3048
    %v3051 = vadd.f32 %v3045, %v3050
    %v3052 = vmul.f32 %v3031, %v3043
    %v3053 = vadd.f32 %v3051, %v3052
    %vm3054 = vcmp.lt.f32.partialorder %v3053, 0.0
    %v3055 = vceil.f32 %v3053
    %v3056 = vfloor.f32 %v3053
    %v3057 = vsel %vm3054, %v3055, %v3056
    %v3058 = vsub.f32 %v3053, %v3057
    %3060 = vrot.lane.b32.xlu0 %v3058, 127
    %v3061 = vpop.permute.xlu0 %3060
    %v3063 = vsel %vm2120, %v3061, %v3039
    %vm3064 = vcmask 9216
    %3065 = vst.msk [vmem:[%s7] sm:$0x3] %vm3064, %v2121
    %3066 = vst.msk [vmem:[%s7 + $0x2] sm:$0x3] %vm3064, %v2435
    %3067 = vst.msk [vmem:[%s7 + $0x4] sm:$0x3] %vm3064, %v2749
    %3068 = vst.msk [vmem:[%s7 + $0x6] sm:$0x3] %vm3064, %v3063
    // Predicated region
    $region34: #{tpu_custom_call.1} parent=1 // pred_check
      _
    $region35: #{tpu_custom_call.1} parent=1 // pred_check_branch
      %3070 = sbr.rel (0) target = $region37
    $region36: #{tpu_custom_call.1} parent=1 // pred_region
      _
    $region37: #{tpu_custom_call.1} parent=1 // pred_fallthru
      _
    // Predicated region
    $region38: #{tpu_custom_call.1} parent=1 // pred_check
      _
    $region39: #{tpu_custom_call.1} parent=1 // pred_check_branch
      %3072 = sbr.rel (0) target = $region41
    $region40: #{tpu_custom_call.1} parent=1 // pred_region
      _
    $region41: #{tpu_custom_call.1} parent=1 // pred_fallthru
      _
    %3073 = vsyncpa [#allocation3], 1

</llo_original>
